<compile_context>
chip_gen: v6e
topology: v6e:2x2x1
jax: 0.10.0
libtpu: 0.0.40
codegen_flags: <defaults>
</compile_context>

<pallas_src>
import jax
import jax.numpy as jnp
from jax.experimental import pallas as pl
from jax.experimental.pallas import tpu as pltpu


# ----------------------------------------------------------------------------
# Kernels
# ----------------------------------------------------------------------------
def conv_relu_pool_kernel(col_ref, w_ref, b_ref, o_ref):
    """Fused 3x3 conv (single K=9*Cin matmul) + bias + ReLU + 2x2 max pool.

    col_ref: (1, P, 9*Cin) bf16 -- im2col rows for one image.  Rows are ordered
             pool-phase major: rows [phase*P/4 : (phase+1)*P/4] hold the conv
             output pixels (2*oy+dy, 2*ox+dx) with phase = dy*2 + dx, so the
             2x2 pool is a max over the 4 contiguous row slabs.
    w_ref:   (9*Cin, Cout) bf16   -- HWIO weight flattened as (ky, kx, ci).
    b_ref:   (1, Cout) f32
    o_ref:   (1, P//4, Cout) bf16 -- pooled output, rows = oy*(W/2) + ox.
    """
    p = col_ref.shape[1]
    cout = w_ref.shape[1]
    # One MXU matmul over the whole contraction (bf16 operands, f32 accumulate).
    acc = jnp.dot(col_ref[0], w_ref[...], preferred_element_type=jnp.float32)
    acc = jnp.maximum(acc + b_ref[...], 0.0)          # bias + ReLU in f32
    a = acc.reshape(4, p // 4, cout)                  # leading-dim split: layout-trivial
    pooled = jnp.maximum(jnp.maximum(a[0], a[1]),
                         jnp.maximum(a[2], a[3]))     # fused 2x2 max pool (f32)
    o_ref[...] = pooled.astype(o_ref.dtype)[None]


def mlp_kernel(x_ref, w1_ref, b1_ref, w2_ref, b2_ref, o_ref):
    """fc1 + ReLU + fc2.  bf16 matmul operands, f32 accumulation/epilogue.

    x_ref: (B, 4096) bf16, w1: (4096, 128) bf16, b1: (1, 128) f32,
    w2: (128, 10) bf16, b2: (1, 10) f32, o_ref: (B, 10) f32.
    """
    h = jnp.dot(x_ref[...], w1_ref[...],
                preferred_element_type=jnp.float32) + b1_ref[...]
    h = jnp.maximum(h, 0.0).astype(jnp.bfloat16)
    o_ref[...] = jnp.dot(h, w2_ref[...],
                         preferred_element_type=jnp.float32) + b2_ref[...]


# ----------------------------------------------------------------------------
# Wrappers (glue: im2col, layout plumbing)
# ----------------------------------------------------------------------------
def _im2col_pool_major(x_nhwc):
    """(B, H, W, C) -> (B, H*W, 9*C) bf16 im2col for a 3x3/pad-1 conv.

    Column order is (ky, kx, ci) to match w_hwio.reshape(9*C, Cout).
    Rows are ordered pool-phase major (see conv_relu_pool_kernel).
    """
    B, H, W, C = x_nhwc.shape
    xpad = jnp.pad(x_nhwc.astype(jnp.bfloat16),
                   ((0, 0), (1, 1), (1, 1), (0, 0)))           # (B, H+2, W+2, C)
    taps = jnp.concatenate(
        [xpad[:, ky:ky + H, kx:kx + W, :] for ky in range(3) for kx in range(3)],
        axis=-1)                                               # (B, H, W, 9C)
    t = taps.reshape(B, H // 2, 2, W // 2, 2, 9 * C)           # [b, oy, dy, ox, dx, k]
    t = jnp.transpose(t, (0, 2, 4, 1, 3, 5))                   # [b, dy, dx, oy, ox, k]
    return t.reshape(B, H * W, 9 * C)


def conv_relu_pool(x_nhwc, w_hwio, b):
    """conv3x3(pad=1) + ReLU + maxpool2x2, one pallas_call, grid over batch."""
    B, H, W, Cin = x_nhwc.shape
    Cout = w_hwio.shape[-1]
    P = H * W
    col = _im2col_pool_major(x_nhwc)                           # (B, P, 9*Cin) bf16
    wf = w_hwio.reshape(9 * Cin, Cout).astype(jnp.bfloat16)
    b2 = b.reshape(1, Cout).astype(jnp.float32)

    out = pl.pallas_call(
        conv_relu_pool_kernel,
        out_shape=jax.ShapeDtypeStruct((B, P // 4, Cout), jnp.bfloat16),
        grid=(B,),
        in_specs=[
            pl.BlockSpec((1, P, 9 * Cin), lambda i: (i, 0, 0)),
            pl.BlockSpec((9 * Cin, Cout), lambda i: (0, 0)),
            pl.BlockSpec((1, Cout), lambda i: (0, 0)),
        ],
        out_specs=pl.BlockSpec((1, P // 4, Cout), lambda i: (i, 0, 0)),
        compiler_params=pltpu.CompilerParams(
            dimension_semantics=("parallel",)),
    )(col, wf, b2)
    return out.reshape(B, H // 2, W // 2, Cout)                # bf16 NHWC


def mlp(x, w1, b1, w2, b2):
    """fc1 + ReLU + fc2 in one pallas_call, whole arrays resident in VMEM."""
    B, din = x.shape
    dh = w1.shape[1]
    dout = w2.shape[1]
    flops = 2 * B * din * dh + 2 * B * dh * dout
    bytes_accessed = (B * din * 2 + din * dh * 2 + dh * 4 +
                      dh * dout * 2 + dout * 4 + B * dout * 4)
    vmem = pl.BlockSpec(memory_space=pltpu.MemorySpace.VMEM)
    return pl.pallas_call(
        mlp_kernel,
        out_shape=jax.ShapeDtypeStruct((B, dout), jnp.float32),
        in_specs=[vmem, vmem, vmem, vmem, vmem],
        out_specs=vmem,
        cost_estimate=pl.CostEstimate(flops=flops, transcendentals=0,
                                      bytes_accessed=bytes_accessed),
    )(x.astype(jnp.bfloat16),
      w1.astype(jnp.bfloat16), b1.reshape(1, -1).astype(jnp.float32),
      w2.astype(jnp.bfloat16), b2.reshape(1, -1).astype(jnp.float32))


# ----------------------------------------------------------------------------
# Model: parameters + forward
# ----------------------------------------------------------------------------
def init_params(key):
    ks = jax.random.split(key, 8)

    def uniform(k, shape, fan_in):
        bound = 1.0 / jnp.sqrt(jnp.float32(fan_in))
        return jax.random.uniform(k, shape, jnp.float32, -bound, bound)

    return {
        # conv weights stored HWIO (kh, kw, Cin, Cout)
        "conv1_w": uniform(ks[0], (3, 3, 3, 32), 3 * 3 * 3),
        "conv1_b": uniform(ks[1], (32,), 3 * 3 * 3),
        "conv2_w": uniform(ks[2], (3, 3, 32, 64), 3 * 3 * 32),
        "conv2_b": uniform(ks[3], (64,), 3 * 3 * 32),
        # fc weights stored (in, out); fc1 rows in torch's CHW flatten order
        "fc1_w": uniform(ks[4], (64 * 8 * 8, 128), 64 * 8 * 8),
        "fc1_b": uniform(ks[5], (128,), 64 * 8 * 8),
        "fc2_w": uniform(ks[6], (128, 10), 128),
        "fc2_b": uniform(ks[7], (10,), 128),
    }


def simple_cnn_forward(x_nchw, params):
    # NCHW -> NHWC for the conv kernels (channels on the 128-lane axis).
    x = jnp.transpose(x_nchw, (0, 2, 3, 1)).astype(jnp.float32)
    x = conv_relu_pool(x, params["conv1_w"], params["conv1_b"])  # (B,16,16,32)
    x = conv_relu_pool(x, params["conv2_w"], params["conv2_b"])  # (B, 8, 8,64)
    B, h, w, c = x.shape
    xf = x.reshape(B, h * w * c)                                 # HWC flatten (free)
    # Absorb torch's view(B,-1) CHW flatten into fc1 weight rows (trace-time):
    # fc1_w rows are (c, oy, ox); permute them to (oy, ox, c) to match xf.
    w1 = (params["fc1_w"].astype(jnp.bfloat16)
          .reshape(c, h, w, -1).transpose(1, 2, 0, 3).reshape(h * w * c, -1))
    return mlp(xf, w1, params["fc1_b"],
               params["fc2_w"], params["fc2_b"])                 # (B, 10) f32


if __name__ == "__main__":
    key = jax.random.PRNGKey(0)
    k_params, k_x = jax.random.split(key)
    params = init_params(k_params)
    # CIFAR-shaped input: fc1 (64*8*8) implies 32x32 spatial; small batch = 2.
    x = jax.random.normal(k_x, (2, 3, 32, 32), dtype=jnp.float32)

    fwd = jax.jit(simple_cnn_forward)
    out = jax.block_until_ready(fwd(x, params))
    assert out.shape == (2, 10) and out.dtype == jnp.float32
    assert bool(jnp.all(jnp.isfinite(out)))
    print("KERNEL_OK")
</pallas_src>

<mosaic_0001>
module attributes {stable_mosaic.version = 11 : i64} {
  func.func @conv_relu_pool_kernel(%arg0: i32, %arg1: memref<1x1024x27xbf16, #tpu.memory_space<vmem>>, %arg2: memref<27x32xbf16, #tpu.memory_space<vmem>>, %arg3: memref<1x32xf32, #tpu.memory_space<vmem>>, %arg4: memref<1x256x32xbf16, #tpu.memory_space<vmem>>) attributes {dimension_semantics = [#tpu.dimension_semantics<parallel>], iteration_bounds = array<i64: 2>, scalar_prefetch = 0 : i64, scratch_operands = 0 : i64, tpu.core_type = #tpu.core_type<tc>, window_params = [{transform_indices = @transform_0, window_bounds = array<i64: 1, 1024, 27>}, {pipeline_mode = #tpu.pipeline_mode<synchronous>, transform_indices = @transform_1, window_bounds = array<i64: 27, 32>}, {pipeline_mode = #tpu.pipeline_mode<synchronous>, transform_indices = @transform_2, window_bounds = array<i64: 1, 32>}, {transform_indices = @transform_3, window_bounds = array<i64: 1, 256, 32>}]} {
    %c0 = arith.constant 0 : index
    %c0_0 = arith.constant 0 : index
    %c0_1 = arith.constant 0 : index
    %0 = vector.load %arg1[%c0, %c0_0, %c0_1] : memref<1x1024x27xbf16, #tpu.memory_space<vmem>>, vector<1x1024x27xbf16>
    %1 = vector.shape_cast %0 : vector<1x1024x27xbf16> to vector<1024x27xbf16>
    %c0_2 = arith.constant 0 : index
    %c0_3 = arith.constant 0 : index
    %2 = vector.load %arg2[%c0_2, %c0_3] : memref<27x32xbf16, #tpu.memory_space<vmem>>, vector<27x32xbf16>
    %cst = arith.constant dense<0.000000e+00> : vector<1024x32xf32>
    %3 = tpu.matmul %1, %2, %cst {dimension_numbers = #tpu.dot_dimension_numbers<[1], [0], [0], [1], [0, 0, 1, 1], [], []>} : vector<1024x27xbf16>, vector<27x32xbf16>, vector<1024x32xf32> -> vector<1024x32xf32>
    %c0_4 = arith.constant 0 : index
    %c0_5 = arith.constant 0 : index
    %4 = vector.load %arg3[%c0_4, %c0_5] : memref<1x32xf32, #tpu.memory_space<vmem>>, vector<1x32xf32>
    %5 = vector.broadcast %4 : vector<1x32xf32> to vector<1024x32xf32>
    %6 = arith.addf %3, %5 : vector<1024x32xf32>
    %cst_6 = arith.constant 0.000000e+00 : f32
    %7 = vector.broadcast %cst_6 : f32 to vector<1024x32xf32>
    %8 = arith.maximumf %6, %7 : vector<1024x32xf32>
    %9 = vector.shape_cast %8 : vector<1024x32xf32> to vector<4x256x32xf32>
    %10 = vector.extract_strided_slice %9 {offsets = [0, 0, 0], sizes = [1, 256, 32], strides = [1, 1, 1]} : vector<4x256x32xf32> to vector<1x256x32xf32>
    %11 = vector.shape_cast %10 : vector<1x256x32xf32> to vector<256x32xf32>
    %12 = vector.extract_strided_slice %9 {offsets = [1, 0, 0], sizes = [1, 256, 32], strides = [1, 1, 1]} : vector<4x256x32xf32> to vector<1x256x32xf32>
    %13 = vector.shape_cast %12 : vector<1x256x32xf32> to vector<256x32xf32>
    %14 = arith.maximumf %11, %13 : vector<256x32xf32>
    %15 = vector.extract_strided_slice %9 {offsets = [2, 0, 0], sizes = [1, 256, 32], strides = [1, 1, 1]} : vector<4x256x32xf32> to vector<1x256x32xf32>
    %16 = vector.shape_cast %15 : vector<1x256x32xf32> to vector<256x32xf32>
    %17 = vector.extract_strided_slice %9 {offsets = [3, 0, 0], sizes = [1, 256, 32], strides = [1, 1, 1]} : vector<4x256x32xf32> to vector<1x256x32xf32>
    %18 = vector.shape_cast %17 : vector<1x256x32xf32> to vector<256x32xf32>
    %19 = arith.maximumf %16, %18 : vector<256x32xf32>
    %20 = arith.maximumf %14, %19 : vector<256x32xf32>
    %21 = arith.truncf %20 : vector<256x32xf32> to vector<256x32xbf16>
    %22 = vector.shape_cast %21 : vector<256x32xbf16> to vector<1x256x32xbf16>
    %c0_7 = arith.constant 0 : index
    %c0_8 = arith.constant 0 : index
    %c0_9 = arith.constant 0 : index
    %23 = vector.load %arg4[%c0_7, %c0_8, %c0_9] : memref<1x256x32xbf16, #tpu.memory_space<vmem>>, vector<1x256x32xbf16>
    tpu.vector_store %arg4[%c0_7, %c0_8, %c0_9], %22 {strides = array<i32>} : memref<1x256x32xbf16, #tpu.memory_space<vmem>>, vector<1x256x32xbf16>,
    return
  }
  func.func @transform_0(%arg0: i32) -> (i32, i32, i32) {
    %c0_i32 = arith.constant 0 : i32
    %c0_i32_0 = arith.constant 0 : i32
    %c0_i32_1 = arith.constant 0 : i32
    return %arg0, %c0_i32, %c0_i32_0 : i32, i32, i32
  }
  func.func @transform_1(%arg0: i32) -> (i32, i32) {
    %c0_i32 = arith.constant 0 : i32
    %c0_i32_0 = arith.constant 0 : i32
    %c0_i32_1 = arith.constant 0 : i32
    return %c0_i32, %c0_i32_0 : i32, i32
  }
  func.func @transform_2(%arg0: i32) -> (i32, i32) {
    %c0_i32 = arith.constant 0 : i32
    %c0_i32_0 = arith.constant 0 : i32
    %c0_i32_1 = arith.constant 0 : i32
    return %c0_i32, %c0_i32_0 : i32, i32
  }
  func.func @transform_3(%arg0: i32) -> (i32, i32, i32) {
    %c0_i32 = arith.constant 0 : i32
    %c0_i32_0 = arith.constant 0 : i32
    %c0_i32_1 = arith.constant 0 : i32
    return %arg0, %c0_i32, %c0_i32_0 : i32, i32, i32
  }
}

module attributes {stable_mosaic.version = 11 : i64} {
  func.func @conv_relu_pool_kernel(%arg0: i32, %arg1: memref<1x256x288xbf16, #tpu.memory_space<vmem>>, %arg2: memref<288x64xbf16, #tpu.memory_space<vmem>>, %arg3: memref<1x64xf32, #tpu.memory_space<vmem>>, %arg4: memref<1x64x64xbf16, #tpu.memory_space<vmem>>) attributes {dimension_semantics = [#tpu.dimension_semantics<parallel>], iteration_bounds = array<i64: 2>, scalar_prefetch = 0 : i64, scratch_operands = 0 : i64, tpu.core_type = #tpu.core_type<tc>, window_params = [{transform_indices = @transform_0, window_bounds = array<i64: 1, 256, 288>}, {pipeline_mode = #tpu.pipeline_mode<synchronous>, transform_indices = @transform_1, window_bounds = array<i64: 288, 64>}, {pipeline_mode = #tpu.pipeline_mode<synchronous>, transform_indices = @transform_2, window_bounds = array<i64: 1, 64>}, {transform_indices = @transform_3, window_bounds = array<i64: 1, 64, 64>}]} {
    %c0 = arith.constant 0 : index
    %c0_0 = arith.constant 0 : index
    %c0_1 = arith.constant 0 : index
    %0 = vector.load %arg1[%c0, %c0_0, %c0_1] : memref<1x256x288xbf16, #tpu.memory_space<vmem>>, vector<1x256x288xbf16>
    %1 = vector.shape_cast %0 : vector<1x256x288xbf16> to vector<256x288xbf16>
    %c0_2 = arith.constant 0 : index
    %c0_3 = arith.constant 0 : index
    %2 = vector.load %arg2[%c0_2, %c0_3] : memref<288x64xbf16, #tpu.memory_space<vmem>>, vector<288x64xbf16>
    %cst = arith.constant dense<0.000000e+00> : vector<256x64xf32>
    %3 = tpu.matmul %1, %2, %cst {dimension_numbers = #tpu.dot_dimension_numbers<[1], [0], [0], [1], [0, 0, 1, 1], [], []>} : vector<256x288xbf16>, vector<288x64xbf16>, vector<256x64xf32> -> vector<256x64xf32>
    %c0_4 = arith.constant 0 : index
    %c0_5 = arith.constant 0 : index
    %4 = vector.load %arg3[%c0_4, %c0_5] : memref<1x64xf32, #tpu.memory_space<vmem>>, vector<1x64xf32>
    %5 = vector.broadcast %4 : vector<1x64xf32> to vector<256x64xf32>
    %6 = arith.addf %3, %5 : vector<256x64xf32>
    %cst_6 = arith.constant 0.000000e+00 : f32
    %7 = vector.broadcast %cst_6 : f32 to vector<256x64xf32>
    %8 = arith.maximumf %6, %7 : vector<256x64xf32>
    %9 = vector.shape_cast %8 : vector<256x64xf32> to vector<4x64x64xf32>
    %10 = vector.extract_strided_slice %9 {offsets = [0, 0, 0], sizes = [1, 64, 64], strides = [1, 1, 1]} : vector<4x64x64xf32> to vector<1x64x64xf32>
    %11 = vector.shape_cast %10 : vector<1x64x64xf32> to vector<64x64xf32>
    %12 = vector.extract_strided_slice %9 {offsets = [1, 0, 0], sizes = [1, 64, 64], strides = [1, 1, 1]} : vector<4x64x64xf32> to vector<1x64x64xf32>
    %13 = vector.shape_cast %12 : vector<1x64x64xf32> to vector<64x64xf32>
    %14 = arith.maximumf %11, %13 : vector<64x64xf32>
    %15 = vector.extract_strided_slice %9 {offsets = [2, 0, 0], sizes = [1, 64, 64], strides = [1, 1, 1]} : vector<4x64x64xf32> to vector<1x64x64xf32>
    %16 = vector.shape_cast %15 : vector<1x64x64xf32> to vector<64x64xf32>
    %17 = vector.extract_strided_slice %9 {offsets = [3, 0, 0], sizes = [1, 64, 64], strides = [1, 1, 1]} : vector<4x64x64xf32> to vector<1x64x64xf32>
    %18 = vector.shape_cast %17 : vector<1x64x64xf32> to vector<64x64xf32>
    %19 = arith.maximumf %16, %18 : vector<64x64xf32>
    %20 = arith.maximumf %14, %19 : vector<64x64xf32>
    %21 = arith.truncf %20 : vector<64x64xf32> to vector<64x64xbf16>
    %22 = vector.shape_cast %21 : vector<64x64xbf16> to vector<1x64x64xbf16>
    %c0_7 = arith.constant 0 : index
    %c0_8 = arith.constant 0 : index
    %c0_9 = arith.constant 0 : index
    %23 = vector.load %arg4[%c0_7, %c0_8, %c0_9] : memref<1x64x64xbf16, #tpu.memory_space<vmem>>, vector<1x64x64xbf16>
    tpu.vector_store %arg4[%c0_7, %c0_8, %c0_9], %22 {strides = array<i32>} : memref<1x64x64xbf16, #tpu.memory_space<vmem>>, vector<1x64x64xbf16>,
    return
  }
  func.func @transform_0(%arg0: i32) -> (i32, i32, i32) {
    %c0_i32 = arith.constant 0 : i32
    %c0_i32_0 = arith.constant 0 : i32
    %c0_i32_1 = arith.constant 0 : i32
    return %arg0, %c0_i32, %c0_i32_0 : i32, i32, i32
  }
  func.func @transform_1(%arg0: i32) -> (i32, i32) {
    %c0_i32 = arith.constant 0 : i32
    %c0_i32_0 = arith.constant 0 : i32
    %c0_i32_1 = arith.constant 0 : i32
    return %c0_i32, %c0_i32_0 : i32, i32
  }
  func.func @transform_2(%arg0: i32) -> (i32, i32) {
    %c0_i32 = arith.constant 0 : i32
    %c0_i32_0 = arith.constant 0 : i32
    %c0_i32_1 = arith.constant 0 : i32
    return %c0_i32, %c0_i32_0 : i32, i32
  }
  func.func @transform_3(%arg0: i32) -> (i32, i32, i32) {
    %c0_i32 = arith.constant 0 : i32
    %c0_i32_0 = arith.constant 0 : i32
    %c0_i32_1 = arith.constant 0 : i32
    return %arg0, %c0_i32, %c0_i32_0 : i32, i32, i32
  }
}

module attributes {stable_mosaic.version = 11 : i64} {
  func.func @mlp_kernel(%arg0: memref<2x4096xbf16, #tpu.memory_space<vmem>>, %arg1: memref<4096x128xbf16, #tpu.memory_space<vmem>>, %arg2: memref<1x128xf32, #tpu.memory_space<vmem>>, %arg3: memref<128x10xbf16, #tpu.memory_space<vmem>>, %arg4: memref<1x10xf32, #tpu.memory_space<vmem>>, %arg5: memref<2x10xf32, #tpu.memory_space<vmem>>) attributes {dimension_semantics = [], scalar_prefetch = 0 : i64, scratch_operands = 0 : i64, tpu.core_type = #tpu.core_type<tc>} {
    %c0 = arith.constant 0 : index
    %c0_0 = arith.constant 0 : index
    %0 = vector.load %arg0[%c0, %c0_0] : memref<2x4096xbf16, #tpu.memory_space<vmem>>, vector<2x4096xbf16>
    %c0_1 = arith.constant 0 : index
    %c0_2 = arith.constant 0 : index
    %1 = vector.load %arg1[%c0_1, %c0_2] : memref<4096x128xbf16, #tpu.memory_space<vmem>>, vector<4096x128xbf16>
    %cst = arith.constant dense<0.000000e+00> : vector<2x128xf32>
    %2 = tpu.matmul %0, %1, %cst {dimension_numbers = #tpu.dot_dimension_numbers<[1], [0], [0], [1], [0, 0, 1, 1], [], []>} : vector<2x4096xbf16>, vector<4096x128xbf16>, vector<2x128xf32> -> vector<2x128xf32>
    %c0_3 = arith.constant 0 : index
    %c0_4 = arith.constant 0 : index
    %3 = vector.load %arg2[%c0_3, %c0_4] : memref<1x128xf32, #tpu.memory_space<vmem>>, vector<1x128xf32>
    %4 = vector.broadcast %3 : vector<1x128xf32> to vector<2x128xf32>
    %5 = arith.addf %2, %4 : vector<2x128xf32>
    %cst_5 = arith.constant 0.000000e+00 : f32
    %6 = vector.broadcast %cst_5 : f32 to vector<2x128xf32>
    %7 = arith.maximumf %5, %6 : vector<2x128xf32>
    %8 = arith.truncf %7 : vector<2x128xf32> to vector<2x128xbf16>
    %c0_6 = arith.constant 0 : index
    %c0_7 = arith.constant 0 : index
    %9 = vector.load %arg3[%c0_6, %c0_7] : memref<128x10xbf16, #tpu.memory_space<vmem>>, vector<128x10xbf16>
    %cst_8 = arith.constant dense<0.000000e+00> : vector<2x10xf32>
    %10 = tpu.matmul %8, %9, %cst_8 {dimension_numbers = #tpu.dot_dimension_numbers<[1], [0], [0], [1], [0, 0, 1, 1], [], []>} : vector<2x128xbf16>, vector<128x10xbf16>, vector<2x10xf32> -> vector<2x10xf32>
    %c0_9 = arith.constant 0 : index
    %c0_10 = arith.constant 0 : index
    %11 = vector.load %arg4[%c0_9, %c0_10] : memref<1x10xf32, #tpu.memory_space<vmem>>, vector<1x10xf32>
    %12 = vector.broadcast %11 : vector<1x10xf32> to vector<2x10xf32>
    %13 = arith.addf %10, %12 : vector<2x10xf32>
    %c0_11 = arith.constant 0 : index
    %c0_12 = arith.constant 0 : index
    %14 = vector.load %arg5[%c0_11, %c0_12] : memref<2x10xf32, #tpu.memory_space<vmem>>, vector<2x10xf32>
    tpu.vector_store %arg5[%c0_11, %c0_12], %13 {strides = array<i32>} : memref<2x10xf32, #tpu.memory_space<vmem>>, vector<2x10xf32>,
    return
  }
}

</mosaic_0001>

<llo_original>
// kernel: simple_cnn_forward.3
$region0: #{simple_cnn_forward.3}
  #allocation0 [shape = 'u32[]', space=smem, size = 0x4, offset = 0x4, fixed_abs, tag = 'smem constant byte address 0x4 - core index']
  #allocation1 [shape = 'u32[144,128]{1,0:T(1,128)}', space=vmem, size = 0x12000, scoped, tag = 'internal scratch']
  %s0 = inlined_call_operand.vmem [shape: bf16[2,1024,27], index: 0, kind: input, shape index: {}]
  %s1 = inlined_call_operand.vmem [shape: bf16[27,32], index: 1, kind: input, shape index: {}]
  %s2 = inlined_call_operand.vmem [shape: f32[1,32], index: 2, kind: input, shape index: {}]
  %s3 = inlined_call_operand.vmem [shape: bf16[2,256,32], index: 3, kind: output, shape index: {}]
  %s4 = sld [smem:[#allocation0]]
  $region45: #{simple_cnn_forward.3} parent=0
    _
  %s6 = ssub.s32 1, %s4
  %s7 = scalar_select 0, %s6, %s4
  loop: start=0, step=1, limit=4
  $region2: #{simple_cnn_forward.3} parent=0 // loop_pre_header
    _
  $region3: #{simple_cnn_forward.3} parent=0 // loop_header
    %s9 = sphi 0, %s13
    %p10 = scmp.ge.s32.totalorder %s9, 4
    %s19 = sphi 0, %s21
    %s22 = sphi 0, %s19
    %s23 = sphi 0, %s22
    %s39 = sphi 0, %s23
    %s43 = sphi 0, %s43
    %s45 = sphi 0, %s43
    %s46 = sphi 0, %s45
    %s60 = sphi 0, %s46
    %s64 = sphi 0, %s64
    %s66 = sphi 0, %s64
    %s67 = sphi 0, %s66
    %s81 = sphi 0, %s67
    %s87 = sphi 0, %s89
    %s90 = sphi 0, %s87
    %s91 = sphi 0, %s90
    %s107 = sphi 0, %s91
  $region4: #{simple_cnn_forward.3} parent=0 // loop_header_branch
    %12 = sbr.rel (%p10) target = $region8
  $region5: #{simple_cnn_forward.3} parent=0 // loop_body
    %s14 = ssub.s32 %s9, 1
    %s15 = ssub.s32 %s9, 2
    %s16 = sadd.s32 %s9, 1
    %s17 = ssub.s32 %s9, %s16
    %p18 = scmp.eq.s32.totalorder %s17, 0
    %s20 = sadd.s32 %s19, 1
    %s21 = scalar_select %p18, %s19, %s20
    %p24 = pneg %p18
    %p25 = scmp.eq.s32.totalorder %s9, 1
    %p26 = por %p24, %p25
    %p27 = scmp.ne.s32.totalorder %s19, %s22
    %p28 = scmp.eq.s32.totalorder %s9, 0
    %p29 = por %p27, %p28
    %p30 = scmp.ne.s32.totalorder %s19, %s22
    %p31 = scmp.eq.s32.totalorder %s14, 1
    %p32 = por %p30, %p31
    %p33 = scmp.ne.s32.totalorder %s22, %s23
    %p34 = scmp.eq.s32.totalorder %s14, 0
    %p35 = por %p33, %p34
    %p36 = scmp.ne.s32.totalorder %s22, %s23
    %p37 = scmp.eq.s32.totalorder %s15, 1
    %p38 = por %p36, %p37
    %p40 = scmp.ne.s32.totalorder %s23, %s39
    %p41 = scmp.eq.s32.totalorder %s15, 0
    %p42 = por %p40, %p41
    %s44 = sadd.s32 %s43, 1
    %p47 = scmp.eq.s32.totalorder %s9, 1
    %p48 = scmp.ne.s32.totalorder %s43, %s45
    %p49 = scmp.eq.s32.totalorder %s9, 0
    %p50 = por %p48, %p49
    %p51 = scmp.ne.s32.totalorder %s43, %s45
    %p52 = scmp.eq.s32.totalorder %s14, 1
    %p53 = por %p51, %p52
    %p54 = scmp.ne.s32.totalorder %s45, %s46
    %p55 = scmp.eq.s32.totalorder %s14, 0
    %p56 = por %p54, %p55
    %p57 = scmp.ne.s32.totalorder %s45, %s46
    %p58 = scmp.eq.s32.totalorder %s15, 1
    %p59 = por %p57, %p58
    %p61 = scmp.ne.s32.totalorder %s46, %s60
    %p62 = scmp.eq.s32.totalorder %s15, 0
    %p63 = por %p61, %p62
    %s65 = sadd.s32 %s64, 1
    %p68 = scmp.eq.s32.totalorder %s9, 1
    %p69 = scmp.ne.s32.totalorder %s64, %s66
    %p70 = scmp.eq.s32.totalorder %s9, 0
    %p71 = por %p69, %p70
    %p72 = scmp.ne.s32.totalorder %s64, %s66
    %p73 = scmp.eq.s32.totalorder %s14, 1
    %p74 = por %p72, %p73
    %p75 = scmp.ne.s32.totalorder %s66, %s67
    %p76 = scmp.eq.s32.totalorder %s14, 0
    %p77 = por %p75, %p76
    %p78 = scmp.ne.s32.totalorder %s66, %s67
    %p79 = scmp.eq.s32.totalorder %s15, 1
    %p80 = por %p78, %p79
    %p82 = scmp.ne.s32.totalorder %s67, %s81
    %p83 = scmp.eq.s32.totalorder %s15, 0
    %p84 = por %p82, %p83
    %s85 = ssub.s32 %s9, %s16
    %p86 = scmp.eq.s32.totalorder %s85, 0
    %s88 = sadd.s32 %s87, 1
    %s89 = scalar_select %p86, %s87, %s88
    %p92 = pneg %p86
    %p93 = scmp.eq.s32.totalorder %s9, 1
    %p94 = por %p92, %p93
    %p95 = scmp.ne.s32.totalorder %s87, %s90
    %p96 = scmp.eq.s32.totalorder %s9, 0
    %p97 = por %p95, %p96
    %p98 = scmp.ne.s32.totalorder %s87, %s90
    %p99 = scmp.eq.s32.totalorder %s14, 1
    %p100 = por %p98, %p99
    %p101 = scmp.ne.s32.totalorder %s90, %s91
    %p102 = scmp.eq.s32.totalorder %s14, 0
    %p103 = por %p101, %p102
    %p104 = scmp.ne.s32.totalorder %s90, %s91
    %p105 = scmp.eq.s32.totalorder %s15, 1
    %p106 = por %p104, %p105
    %p108 = scmp.ne.s32.totalorder %s91, %s107
    %p109 = scmp.eq.s32.totalorder %s15, 0
    %p110 = por %p108, %p109
    %p111 = scmp.le.s32.totalorder 1, %s9
    %p112 = scmp.lt.s32.totalorder %s9, 3
    %p113 = pnand %p111, %p112
    %p114 = pneg %p113
    // Predicated region
    $region9: #{simple_cnn_forward.3} parent=5 // pred_check
      _
    $region10: #{simple_cnn_forward.3} parent=5 // pred_check_branch
      %116 = sbr.rel (%p113) target = $region12
    $region11: #{simple_cnn_forward.3} parent=5 // pred_region
      %s117 = ssub.s32 %s9, 1
      // Predicated region
      $region13: #{simple_cnn_forward.3} parent=11 // pred_check
        %p118 = pneg %p56
      $region14: #{simple_cnn_forward.3} parent=11 // pred_check_branch
        %120 = sbr.rel (%p118) target = $region16
      $region15: #{simple_cnn_forward.3} parent=11 // pred_region
        _
      $region16: #{simple_cnn_forward.3} parent=11 // pred_fallthru
        _
      // Predicated region
      $region17: #{simple_cnn_forward.3} parent=11 // pred_check
        %p121 = pneg %p77
      $region18: #{simple_cnn_forward.3} parent=11 // pred_check_branch
        %123 = sbr.rel (%p121) target = $region20
      $region19: #{simple_cnn_forward.3} parent=11 // pred_region
        _
      $region20: #{simple_cnn_forward.3} parent=11 // pred_fallthru
        _
    $region12: #{simple_cnn_forward.3} parent=5 // pred_fallthru
      _
    %p124 = scmp.lt.s32.totalorder %s9, 2
    // Predicated region
    $region21: #{simple_cnn_forward.3} parent=5 // pred_check
      %p125 = pneg %p124
    $region22: #{simple_cnn_forward.3} parent=5 // pred_check_branch
      %127 = sbr.rel (%p125) target = $region24
    $region23: #{simple_cnn_forward.3} parent=5 // pred_region
      // Predicated region
      $region25: #{simple_cnn_forward.3} parent=23 // pred_check
        %p128 = pneg %p29
      $region26: #{simple_cnn_forward.3} parent=23 // pred_check_branch
        %130 = sbr.rel (%p128) target = $region28
      $region27: #{simple_cnn_forward.3} parent=23 // pred_region
        %p131 = scmp.lt.s32.totalorder %s9, 1
        %s132 = scalar_select %p131, %s9, 1
        %s133 = smul.addr %s132, 128
        %s134 = smul.addr %s133, 4
        %s135 = scalar_lea.vmem %s0, %s134
      $region28: #{simple_cnn_forward.3} parent=23 // pred_fallthru
        _
    $region24: #{simple_cnn_forward.3} parent=5 // pred_fallthru
      _
    %p136 = scmp.le.s32.totalorder 1, %s9
    %p137 = scmp.lt.s32.totalorder %s9, 3
    %p138 = pnand %p136, %p137
    %p139 = pneg %p138
    // Predicated region
    $region29: #{simple_cnn_forward.3} parent=5 // pred_check
      _
    $region30: #{simple_cnn_forward.3} parent=5 // pred_check_branch
      %141 = sbr.rel (%p138) target = $region32
    $region31: #{simple_cnn_forward.3} parent=5 // pred_region
      %s142 = ssub.s32 %s9, 1
      %p143 = scmp.lt.s32.totalorder %s14, 1
      %s144 = scalar_select %p143, %s14, 1
      %s145 = smul.addr %s144, 128
      %s146 = smul.addr %s145, 4
      %s147 = scalar_lea.vmem %s0, %s146
      %p148 = pneg %p35
      %p149 = pneg %p32
      %p150 = pneg %p56
      %p151 = pneg %p53
      %p152 = pneg %p77
      %p153 = pneg %p74
      %p154 = pneg %p103
      %p155 = pneg %p100
      %p156 = scmp.lt.s32.totalorder %s14, 1
      %s157 = scalar_select %p156, %s14, 1
      %s158 = smul.addr %s157, 32
      %s159 = smul.addr %s158, 4
      %s160 = scalar_lea.vmem %s3, %s159
      %p161 = scmp.lt.s32.totalorder %s14, 1
      %s162 = scalar_select %p161, %s14, 1
      %s163 = smul.addr %s162, 128
      %s164 = smul.addr %s163, 4
      %s165 = scalar_lea.vmem %s0, %s164
      %p166 = scmp.lt.s32.totalorder %s14, 1
      %s167 = scalar_select %p166, %s14, 1
      %s168 = smul.addr %s167, 32
      %s169 = smul.addr %s168, 4
      %s170 = scalar_lea.vmem %s3, %s169
      %v172 = vld [vmem:[%s165] sm:$0xf]
      %v173 = vld [vmem:[%s165 + $0x4] sm:$0xf]
      %v174 = vld [vmem:[%s165 + $0x8] sm:$0xf]
      %v175 = vld [vmem:[%s165 + $0xc] sm:$0xf]
      %v176 = vld [vmem:[%s165 + $0x10] sm:$0xf]
      %v177 = vld [vmem:[%s165 + $0x14] sm:$0xf]
      %v178 = vld [vmem:[%s165 + $0x18] sm:$0xf]
      %v179 = vld [vmem:[%s165 + $0x1c] sm:$0xf]
      %v180 = vld [vmem:[%s165 + $0x20] sm:$0xf]
      %v181 = vld [vmem:[%s165 + $0x24] sm:$0xf]
      %v182 = vld [vmem:[%s165 + $0x28] sm:$0xf]
      %v183 = vld [vmem:[%s165 + $0x2c] sm:$0xf]
      %v184 = vld [vmem:[%s165 + $0x30] sm:$0xf]
      %v185 = vld [vmem:[%s165 + $0x34] sm:$0xf]
      %v186 = vld [vmem:[%s165 + $0x38] sm:$0xf]
      %v187 = vld [vmem:[%s165 + $0x3c] sm:$0xf]
      %v188 = vld [vmem:[%s165 + $0x40] sm:$0xf]
      %v189 = vld [vmem:[%s165 + $0x44] sm:$0xf]
      %v190 = vld [vmem:[%s165 + $0x48] sm:$0xf]
      %v191 = vld [vmem:[%s165 + $0x4c] sm:$0xf]
      %v192 = vld [vmem:[%s165 + $0x50] sm:$0xf]
      %v193 = vld [vmem:[%s165 + $0x54] sm:$0xf]
      %v194 = vld [vmem:[%s165 + $0x58] sm:$0xf]
      %v195 = vld [vmem:[%s165 + $0x5c] sm:$0xf]
      %v196 = vld [vmem:[%s165 + $0x60] sm:$0xf]
      %v197 = vld [vmem:[%s165 + $0x64] sm:$0xf]
      %v198 = vld [vmem:[%s165 + $0x68] sm:$0xf]
      %v199 = vld [vmem:[%s165 + $0x6c] sm:$0xf]
      %v200 = vld [vmem:[%s165 + $0x70] sm:$0xf]
      %v201 = vld [vmem:[%s165 + $0x74] sm:$0xf]
      %v202 = vld [vmem:[%s165 + $0x78] sm:$0xf]
      %v203 = vld [vmem:[%s165 + $0x7c] sm:$0xf]
      %v204 = vld [vmem:[%s165 + $0x80] sm:$0xf]
      %v205 = vld [vmem:[%s165 + $0x84] sm:$0xf]
      %v206 = vld [vmem:[%s165 + $0x88] sm:$0xf]
      %v207 = vld [vmem:[%s165 + $0x8c] sm:$0xf]
      %v208 = vld [vmem:[%s165 + $0x90] sm:$0xf]
      %v209 = vld [vmem:[%s165 + $0x94] sm:$0xf]
      %v210 = vld [vmem:[%s165 + $0x98] sm:$0xf]
      %v211 = vld [vmem:[%s165 + $0x9c] sm:$0xf]
      %v212 = vld [vmem:[%s165 + $0xa0] sm:$0xf]
      %v213 = vld [vmem:[%s165 + $0xa4] sm:$0xf]
      %v214 = vld [vmem:[%s165 + $0xa8] sm:$0xf]
      %v215 = vld [vmem:[%s165 + $0xac] sm:$0xf]
      %v216 = vld [vmem:[%s165 + $0xb0] sm:$0xf]
      %v217 = vld [vmem:[%s165 + $0xb4] sm:$0xf]
      %v218 = vld [vmem:[%s165 + $0xb8] sm:$0xf]
      %v219 = vld [vmem:[%s165 + $0xbc] sm:$0xf]
      %v220 = vld [vmem:[%s165 + $0xc0] sm:$0xf]
      %v221 = vld [vmem:[%s165 + $0xc4] sm:$0xf]
      %v222 = vld [vmem:[%s165 + $0xc8] sm:$0xf]
      %v223 = vld [vmem:[%s165 + $0xcc] sm:$0xf]
      %v224 = vld [vmem:[%s165 + $0xd0] sm:$0xf]
      %v225 = vld [vmem:[%s165 + $0xd4] sm:$0xf]
      %v226 = vld [vmem:[%s165 + $0xd8] sm:$0xf]
      %v227 = vld [vmem:[%s165 + $0xdc] sm:$0xf]
      %v228 = vld [vmem:[%s165 + $0xe0] sm:$0xf]
      %v229 = vld [vmem:[%s165 + $0xe4] sm:$0xf]
      %v230 = vld [vmem:[%s165 + $0xe8] sm:$0xf]
      %v231 = vld [vmem:[%s165 + $0xec] sm:$0xf]
      %v232 = vld [vmem:[%s165 + $0xf0] sm:$0xf]
      %v233 = vld [vmem:[%s165 + $0xf4] sm:$0xf]
      %v234 = vld [vmem:[%s165 + $0xf8] sm:$0xf]
      %v235 = vld [vmem:[%s165 + $0xfc] sm:$0xf]
      %v236 = vld [vmem:[%s165 + $0x100] sm:$0xf]
      %v237 = vld [vmem:[%s165 + $0x104] sm:$0xf]
      %v238 = vld [vmem:[%s165 + $0x108] sm:$0xf]
      %v239 = vld [vmem:[%s165 + $0x10c] sm:$0xf]
      %v240 = vld [vmem:[%s165 + $0x110] sm:$0xf]
      %v241 = vld [vmem:[%s165 + $0x114] sm:$0xf]
      %v242 = vld [vmem:[%s165 + $0x118] sm:$0xf]
      %v243 = vld [vmem:[%s165 + $0x11c] sm:$0xf]
      %v244 = vld [vmem:[%s165 + $0x120] sm:$0xf]
      %v245 = vld [vmem:[%s165 + $0x124] sm:$0xf]
      %v246 = vld [vmem:[%s165 + $0x128] sm:$0xf]
      %v247 = vld [vmem:[%s165 + $0x12c] sm:$0xf]
      %v248 = vld [vmem:[%s165 + $0x130] sm:$0xf]
      %v249 = vld [vmem:[%s165 + $0x134] sm:$0xf]
      %v250 = vld [vmem:[%s165 + $0x138] sm:$0xf]
      %v251 = vld [vmem:[%s165 + $0x13c] sm:$0xf]
      %v252 = vld [vmem:[%s165 + $0x140] sm:$0xf]
      %v253 = vld [vmem:[%s165 + $0x144] sm:$0xf]
      %v254 = vld [vmem:[%s165 + $0x148] sm:$0xf]
      %v255 = vld [vmem:[%s165 + $0x14c] sm:$0xf]
      %v256 = vld [vmem:[%s165 + $0x150] sm:$0xf]
      %v257 = vld [vmem:[%s165 + $0x154] sm:$0xf]
      %v258 = vld [vmem:[%s165 + $0x158] sm:$0xf]
      %v259 = vld [vmem:[%s165 + $0x15c] sm:$0xf]
      %v260 = vld [vmem:[%s165 + $0x160] sm:$0xf]
      %v261 = vld [vmem:[%s165 + $0x164] sm:$0xf]
      %v262 = vld [vmem:[%s165 + $0x168] sm:$0xf]
      %v263 = vld [vmem:[%s165 + $0x16c] sm:$0xf]
      %v264 = vld [vmem:[%s165 + $0x170] sm:$0xf]
      %v265 = vld [vmem:[%s165 + $0x174] sm:$0xf]
      %v266 = vld [vmem:[%s165 + $0x178] sm:$0xf]
      %v267 = vld [vmem:[%s165 + $0x17c] sm:$0xf]
      %v268 = vld [vmem:[%s165 + $0x180] sm:$0xf]
      %v269 = vld [vmem:[%s165 + $0x184] sm:$0xf]
      %v270 = vld [vmem:[%s165 + $0x188] sm:$0xf]
      %v271 = vld [vmem:[%s165 + $0x18c] sm:$0xf]
      %v272 = vld [vmem:[%s165 + $0x190] sm:$0xf]
      %v273 = vld [vmem:[%s165 + $0x194] sm:$0xf]
      %v274 = vld [vmem:[%s165 + $0x198] sm:$0xf]
      %v275 = vld [vmem:[%s165 + $0x19c] sm:$0xf]
      %v276 = vld [vmem:[%s165 + $0x1a0] sm:$0xf]
      %v277 = vld [vmem:[%s165 + $0x1a4] sm:$0xf]
      %v278 = vld [vmem:[%s165 + $0x1a8] sm:$0xf]
      %v279 = vld [vmem:[%s165 + $0x1ac] sm:$0xf]
      %v280 = vld [vmem:[%s165 + $0x1b0] sm:$0xf]
      %v281 = vld [vmem:[%s165 + $0x1b4] sm:$0xf]
      %v282 = vld [vmem:[%s165 + $0x1b8] sm:$0xf]
      %v283 = vld [vmem:[%s165 + $0x1bc] sm:$0xf]
      %v284 = vld [vmem:[%s165 + $0x1c0] sm:$0xf]
      %v285 = vld [vmem:[%s165 + $0x1c4] sm:$0xf]
      %v286 = vld [vmem:[%s165 + $0x1c8] sm:$0xf]
      %v287 = vld [vmem:[%s165 + $0x1cc] sm:$0xf]
      %v288 = vld [vmem:[%s165 + $0x1d0] sm:$0xf]
      %v289 = vld [vmem:[%s165 + $0x1d4] sm:$0xf]
      %v290 = vld [vmem:[%s165 + $0x1d8] sm:$0xf]
      %v291 = vld [vmem:[%s165 + $0x1dc] sm:$0xf]
      %v292 = vld [vmem:[%s165 + $0x1e0] sm:$0xf]
      %v293 = vld [vmem:[%s165 + $0x1e4] sm:$0xf]
      %v294 = vld [vmem:[%s165 + $0x1e8] sm:$0xf]
      %v295 = vld [vmem:[%s165 + $0x1ec] sm:$0xf]
      %v296 = vld [vmem:[%s165 + $0x1f0] sm:$0xf]
      %v297 = vld [vmem:[%s165 + $0x1f4] sm:$0xf]
      %v298 = vld [vmem:[%s165 + $0x1f8] sm:$0xf]
      %v299 = vld [vmem:[%s165 + $0x1fc] sm:$0xf]
      %v300 = vld [vmem:[%s1] sm:$0xf]
      %v301 = vld [vmem:[%s1 + $0x4] sm:$0xf]
      %v302 = vld [vmem:[%s1 + $0x8] sm:$0xf]
      %v303 = vld [vmem:[%s1 + $0xc] sm:$0x3]
      %v304 = vld [vmem:[%s2] sm:$0x1]
      %v306 = vlaneseq
      %v307 = vshrl.u32 %v306, 7
      %v308 = vsub.s32 0, %v307
      %v309 = vrot.slane %v304, %v308
      %v439 = vunpack.c.l.b16 %v172
      %v440 = vunpack.c.l.b16 %v173
      %v441 = vunpack.c.l.b16 %v174
      %v442 = vunpack.c.l.b16 %v175
      %v443 = vunpack.c.l.b16 %v176
      %v444 = vunpack.c.l.b16 %v177
      %v445 = vunpack.c.l.b16 %v178
      %v446 = vunpack.c.l.b16 %v179
      %v447 = vunpack.c.l.b16 %v180
      %v448 = vunpack.c.l.b16 %v181
      %v449 = vunpack.c.l.b16 %v182
      %v450 = vunpack.c.l.b16 %v183
      %v451 = vunpack.c.l.b16 %v184
      %v452 = vunpack.c.l.b16 %v185
      %v453 = vunpack.c.l.b16 %v186
      %v454 = vunpack.c.l.b16 %v187
      %v455 = vunpack.c.l.b16 %v188
      %v456 = vunpack.c.l.b16 %v189
      %v457 = vunpack.c.l.b16 %v190
      %v458 = vunpack.c.l.b16 %v191
      %v459 = vunpack.c.l.b16 %v192
      %v460 = vunpack.c.l.b16 %v193
      %v461 = vunpack.c.l.b16 %v194
      %v462 = vunpack.c.l.b16 %v195
      %v463 = vunpack.c.l.b16 %v196
      %v464 = vunpack.c.l.b16 %v197
      %v465 = vunpack.c.l.b16 %v198
      %v466 = vunpack.c.l.b16 %v199
      %v467 = vunpack.c.l.b16 %v200
      %v468 = vunpack.c.l.b16 %v201
      %v469 = vunpack.c.l.b16 %v202
      %v470 = vunpack.c.l.b16 %v203
      %v471 = vunpack.c.l.b16 %v204
      %v472 = vunpack.c.l.b16 %v205
      %v473 = vunpack.c.l.b16 %v206
      %v474 = vunpack.c.l.b16 %v207
      %v475 = vunpack.c.l.b16 %v208
      %v476 = vunpack.c.l.b16 %v209
      %v477 = vunpack.c.l.b16 %v210
      %v478 = vunpack.c.l.b16 %v211
      %v479 = vunpack.c.l.b16 %v212
      %v480 = vunpack.c.l.b16 %v213
      %v481 = vunpack.c.l.b16 %v214
      %v482 = vunpack.c.l.b16 %v215
      %v483 = vunpack.c.l.b16 %v216
      %v484 = vunpack.c.l.b16 %v217
      %v485 = vunpack.c.l.b16 %v218
      %v486 = vunpack.c.l.b16 %v219
      %v487 = vunpack.c.l.b16 %v220
      %v488 = vunpack.c.l.b16 %v221
      %v489 = vunpack.c.l.b16 %v222
      %v490 = vunpack.c.l.b16 %v223
      %v491 = vunpack.c.l.b16 %v224
      %v492 = vunpack.c.l.b16 %v225
      %v493 = vunpack.c.l.b16 %v226
      %v494 = vunpack.c.l.b16 %v227
      %v495 = vunpack.c.l.b16 %v228
      %v496 = vunpack.c.l.b16 %v229
      %v497 = vunpack.c.l.b16 %v230
      %v498 = vunpack.c.l.b16 %v231
      %v499 = vunpack.c.l.b16 %v232
      %v500 = vunpack.c.l.b16 %v233
      %v501 = vunpack.c.l.b16 %v234
      %v502 = vunpack.c.l.b16 %v235
      %v503 = vunpack.c.l.b16 %v236
      %v504 = vunpack.c.l.b16 %v237
      %v505 = vunpack.c.l.b16 %v238
      %v506 = vunpack.c.l.b16 %v239
      %v507 = vunpack.c.l.b16 %v240
      %v508 = vunpack.c.l.b16 %v241
      %v509 = vunpack.c.l.b16 %v242
      %v510 = vunpack.c.l.b16 %v243
      %v511 = vunpack.c.l.b16 %v244
      %v512 = vunpack.c.l.b16 %v245
      %v513 = vunpack.c.l.b16 %v246
      %v514 = vunpack.c.l.b16 %v247
      %v515 = vunpack.c.l.b16 %v248
      %v516 = vunpack.c.l.b16 %v249
      %v517 = vunpack.c.l.b16 %v250
      %v518 = vunpack.c.l.b16 %v251
      %v519 = vunpack.c.l.b16 %v252
      %v520 = vunpack.c.l.b16 %v253
      %v521 = vunpack.c.l.b16 %v254
      %v522 = vunpack.c.l.b16 %v255
      %v523 = vunpack.c.l.b16 %v256
      %v524 = vunpack.c.l.b16 %v257
      %v525 = vunpack.c.l.b16 %v258
      %v526 = vunpack.c.l.b16 %v259
      %v527 = vunpack.c.l.b16 %v260
      %v528 = vunpack.c.l.b16 %v261
      %v529 = vunpack.c.l.b16 %v262
      %v530 = vunpack.c.l.b16 %v263
      %v531 = vunpack.c.l.b16 %v264
      %v532 = vunpack.c.l.b16 %v265
      %v533 = vunpack.c.l.b16 %v266
      %v534 = vunpack.c.l.b16 %v267
      %v535 = vunpack.c.l.b16 %v268
      %v536 = vunpack.c.l.b16 %v269
      %v537 = vunpack.c.l.b16 %v270
      %v538 = vunpack.c.l.b16 %v271
      %v539 = vunpack.c.l.b16 %v272
      %v540 = vunpack.c.l.b16 %v273
      %v541 = vunpack.c.l.b16 %v274
      %v542 = vunpack.c.l.b16 %v275
      %v543 = vunpack.c.l.b16 %v276
      %v544 = vunpack.c.l.b16 %v277
      %v545 = vunpack.c.l.b16 %v278
      %v546 = vunpack.c.l.b16 %v279
      %v547 = vunpack.c.l.b16 %v280
      %v548 = vunpack.c.l.b16 %v281
      %v549 = vunpack.c.l.b16 %v282
      %v550 = vunpack.c.l.b16 %v283
      %v551 = vunpack.c.l.b16 %v284
      %v552 = vunpack.c.l.b16 %v285
      %v553 = vunpack.c.l.b16 %v286
      %v554 = vunpack.c.l.b16 %v287
      %v555 = vunpack.c.l.b16 %v288
      %v556 = vunpack.c.l.b16 %v289
      %v557 = vunpack.c.l.b16 %v290
      %v558 = vunpack.c.l.b16 %v291
      %v559 = vunpack.c.l.b16 %v292
      %v560 = vunpack.c.l.b16 %v293
      %v561 = vunpack.c.l.b16 %v294
      %v562 = vunpack.c.l.b16 %v295
      %v563 = vunpack.c.l.b16 %v296
      %v564 = vunpack.c.l.b16 %v297
      %v565 = vunpack.c.l.b16 %v298
      %v566 = vunpack.c.l.b16 %v299
      %v567 = vpack.c.b16 %v440, %v439
      %v568 = vpack.c.b16 %v442, %v441
      %v569 = vpack.c.b16 %v444, %v443
      %v570 = vpack.c.b16 %v446, %v445
      %v571 = vpack.c.b16 %v448, %v447
      %v572 = vpack.c.b16 %v450, %v449
      %v573 = vpack.c.b16 %v452, %v451
      %v574 = vpack.c.b16 %v454, %v453
      %v575 = vpack.c.b16 %v456, %v455
      %v576 = vpack.c.b16 %v458, %v457
      %v577 = vpack.c.b16 %v460, %v459
      %v578 = vpack.c.b16 %v462, %v461
      %v579 = vpack.c.b16 %v464, %v463
      %v580 = vpack.c.b16 %v466, %v465
      %v581 = vpack.c.b16 %v468, %v467
      %v582 = vpack.c.b16 %v470, %v469
      %v583 = vpack.c.b16 %v472, %v471
      %v584 = vpack.c.b16 %v474, %v473
      %v585 = vpack.c.b16 %v476, %v475
      %v586 = vpack.c.b16 %v478, %v477
      %v587 = vpack.c.b16 %v480, %v479
      %v588 = vpack.c.b16 %v482, %v481
      %v589 = vpack.c.b16 %v484, %v483
      %v590 = vpack.c.b16 %v486, %v485
      %v591 = vpack.c.b16 %v488, %v487
      %v592 = vpack.c.b16 %v490, %v489
      %v593 = vpack.c.b16 %v492, %v491
      %v594 = vpack.c.b16 %v494, %v493
      %v595 = vpack.c.b16 %v496, %v495
      %v596 = vpack.c.b16 %v498, %v497
      %v597 = vpack.c.b16 %v500, %v499
      %v598 = vpack.c.b16 %v502, %v501
      %v599 = vpack.c.b16 %v504, %v503
      %v600 = vpack.c.b16 %v506, %v505
      %v601 = vpack.c.b16 %v508, %v507
      %v602 = vpack.c.b16 %v510, %v509
      %v603 = vpack.c.b16 %v512, %v511
      %v604 = vpack.c.b16 %v514, %v513
      %v605 = vpack.c.b16 %v516, %v515
      %v606 = vpack.c.b16 %v518, %v517
      %v607 = vpack.c.b16 %v520, %v519
      %v608 = vpack.c.b16 %v522, %v521
      %v609 = vpack.c.b16 %v524, %v523
      %v610 = vpack.c.b16 %v526, %v525
      %v611 = vpack.c.b16 %v528, %v527
      %v612 = vpack.c.b16 %v530, %v529
      %v613 = vpack.c.b16 %v532, %v531
      %v614 = vpack.c.b16 %v534, %v533
      %v615 = vpack.c.b16 %v536, %v535
      %v616 = vpack.c.b16 %v538, %v537
      %v617 = vpack.c.b16 %v540, %v539
      %v618 = vpack.c.b16 %v542, %v541
      %v619 = vpack.c.b16 %v544, %v543
      %v620 = vpack.c.b16 %v546, %v545
      %v621 = vpack.c.b16 %v548, %v547
      %v622 = vpack.c.b16 %v550, %v549
      %v623 = vpack.c.b16 %v552, %v551
      %v624 = vpack.c.b16 %v554, %v553
      %v625 = vpack.c.b16 %v556, %v555
      %v626 = vpack.c.b16 %v558, %v557
      %v627 = vpack.c.b16 %v560, %v559
      %v628 = vpack.c.b16 %v562, %v561
      %v629 = vpack.c.b16 %v564, %v563
      %v630 = vpack.c.b16 %v566, %v565
      %v635 = vunpack.c.l.b16 %v300
      %v636 = vunpack.c.l.b16 %v301
      %v637 = vunpack.c.l.b16 %v302
      %v638 = vunpack.c.l.b16 %v303
      %v639 = vpack.c.b16 %v636, %v635
      %v640 = vpack.c.b16 %v638, %v637
      %vm642 = vcmask 220160
      %v644 = vsel %vm642, %v567, 0
      %v647 = vsel %vm642, %v568, 0
      %v650 = vsel %vm642, %v569, 0
      %v653 = vsel %vm642, %v570, 0
      %v656 = vsel %vm642, %v571, 0
      %v659 = vsel %vm642, %v572, 0
      %v662 = vsel %vm642, %v573, 0
      %v665 = vsel %vm642, %v574, 0
      %v668 = vsel %vm642, %v575, 0
      %v671 = vsel %vm642, %v576, 0
      %v674 = vsel %vm642, %v577, 0
      %v677 = vsel %vm642, %v578, 0
      %v680 = vsel %vm642, %v579, 0
      %v683 = vsel %vm642, %v580, 0
      %v686 = vsel %vm642, %v581, 0
      %v689 = vsel %vm642, %v582, 0
      %v692 = vsel %vm642, %v583, 0
      %v695 = vsel %vm642, %v584, 0
      %v698 = vsel %vm642, %v585, 0
      %v701 = vsel %vm642, %v586, 0
      %v704 = vsel %vm642, %v587, 0
      %v707 = vsel %vm642, %v588, 0
      %v710 = vsel %vm642, %v589, 0
      %v713 = vsel %vm642, %v590, 0
      %v716 = vsel %vm642, %v591, 0
      %v719 = vsel %vm642, %v592, 0
      %v722 = vsel %vm642, %v593, 0
      %v725 = vsel %vm642, %v594, 0
      %v728 = vsel %vm642, %v595, 0
      %v731 = vsel %vm642, %v596, 0
      %v734 = vsel %vm642, %v597, 0
      %v737 = vsel %vm642, %v598, 0
      %v740 = vsel %vm642, %v599, 0
      %v743 = vsel %vm642, %v600, 0
      %v746 = vsel %vm642, %v601, 0
      %v749 = vsel %vm642, %v602, 0
      %v752 = vsel %vm642, %v603, 0
      %v755 = vsel %vm642, %v604, 0
      %v758 = vsel %vm642, %v605, 0
      %v761 = vsel %vm642, %v606, 0
      %v764 = vsel %vm642, %v607, 0
      %v767 = vsel %vm642, %v608, 0
      %v770 = vsel %vm642, %v609, 0
      %v773 = vsel %vm642, %v610, 0
      %v776 = vsel %vm642, %v611, 0
      %v779 = vsel %vm642, %v612, 0
      %v782 = vsel %vm642, %v613, 0
      %v785 = vsel %vm642, %v614, 0
      %v788 = vsel %vm642, %v615, 0
      %v791 = vsel %vm642, %v616, 0
      %v794 = vsel %vm642, %v617, 0
      %v797 = vsel %vm642, %v618, 0
      %v800 = vsel %vm642, %v619, 0
      %v803 = vsel %vm642, %v620, 0
      %v806 = vsel %vm642, %v621, 0
      %v809 = vsel %vm642, %v622, 0
      %v812 = vsel %vm642, %v623, 0
      %v815 = vsel %vm642, %v624, 0
      %v818 = vsel %vm642, %v625, 0
      %v821 = vsel %vm642, %v626, 0
      %v824 = vsel %vm642, %v627, 0
      %v827 = vsel %vm642, %v628, 0
      %v830 = vsel %vm642, %v629, 0
      %v833 = vsel %vm642, %v630, 0
      %vm835 = vcmask 1044480
      %vm836 = vcmask 1045504
      %v837 = vsel %vm835, 4294967295, 65535
      %v838 = vsel %vm836, %v837, 0
      %v840 = vand.u32 %v640, %v838
      %842 = vmatprep.subr.bf16.mxu0 0
      %843 = vmatpush1.bf16.msra.mxu0 0
      %844 = vmatprep.subr.bf16.mxu0 0
      %845 = vmatpush1.bf16.msra.mxu0 0
      %846 = vmatprep.subr.bf16.mxu0 0
      %847 = vmatpush1.bf16.msra.mxu0 0
      %848 = vmatprep.subr.bf16.mxu0 0
      %849 = vmatpush1.bf16.msra.mxu0 0
      %850 = vmatprep.subr.bf16.mxu0 0
      %851 = vmatpush1.bf16.msra.mxu0 0
      %852 = vmatprep.subr.bf16.mxu0 0
      %853 = vmatpush1.bf16.msra.mxu0 0
      %854 = vmatprep.subr.bf16.mxu0 0
      %855 = vmatpush1.bf16.msra.mxu0 %v840
      %856 = vmatprep.subr.bf16.mxu0 0
      %857 = vmatpush1.bf16.msra.mxu0 %v639
      %858 = vmatprep.subr.bf16.mxu0 0
      %859 = vmatpush2.bf16.msra.mxu0 0
      %860 = vmatprep.subr.bf16.mxu0 0
      %861 = vmatpush2.bf16.msra.mxu0 0
      %862 = vmatprep.subr.bf16.mxu0 0
      %863 = vmatpush2.bf16.msra.mxu0 0
      %864 = vmatprep.subr.bf16.mxu0 0
      %865 = vmatpush2.bf16.msra.mxu0 0
      %866 = vmatprep.subr.bf16.mxu0 0
      %867 = vmatpush2.bf16.msra.mxu0 0
      %868 = vmatprep.subr.bf16.mxu0 0
      %869 = vmatpush2.bf16.msra.mxu0 0
      %870 = vmatprep.subr.bf16.mxu0 0
      %871 = vmatpush2.bf16.msra.mxu0 0
      %872 = vmatprep.subr.bf16.mxu0 0
      %873 = vmatpush2.bf16.msra.mxu0 0
      %874 = vmatprep.mubr.bf16.mxu0 0
      %875 = vmatmul.mubr.bf16.gmra.mxu0 %v644
      %v876 = vpop.f32.mrf.mxu0
      %v877 = vadd.f32 %v309, %v876
      %v878 = vpop.f32.mrf.mxu0
      %v879 = vpop.f32.mrf.mxu0
      %v880 = vadd.f32 %v309, %v879
      %v881 = vpop.f32.mrf.mxu0
      %882 = vmatprep.mubr.bf16.mxu0 0
      %883 = vmatmul.mubr.bf16.gmra.mxu0 %v647
      %v884 = vpop.f32.mrf.mxu0
      %v885 = vadd.f32 %v309, %v884
      %v886 = vpop.f32.mrf.mxu0
      %v887 = vpop.f32.mrf.mxu0
      %v888 = vadd.f32 %v309, %v887
      %v889 = vpop.f32.mrf.mxu0
      %890 = vmatprep.mubr.bf16.mxu0 0
      %891 = vmatmul.mubr.bf16.gmra.mxu0 %v650
      %v892 = vpop.f32.mrf.mxu0
      %v893 = vadd.f32 %v309, %v892
      %v894 = vpop.f32.mrf.mxu0
      %v895 = vpop.f32.mrf.mxu0
      %v896 = vadd.f32 %v309, %v895
      %v897 = vpop.f32.mrf.mxu0
      %898 = vmatprep.mubr.bf16.mxu0 0
      %899 = vmatmul.mubr.bf16.gmra.mxu0 %v653
      %v900 = vpop.f32.mrf.mxu0
      %v901 = vadd.f32 %v309, %v900
      %v902 = vpop.f32.mrf.mxu0
      %v903 = vpop.f32.mrf.mxu0
      %v904 = vadd.f32 %v309, %v903
      %v905 = vpop.f32.mrf.mxu0
      %906 = vmatprep.mubr.bf16.mxu0 0
      %907 = vmatmul.mubr.bf16.gmra.mxu0 %v656
      %v908 = vpop.f32.mrf.mxu0
      %v909 = vadd.f32 %v309, %v908
      %v910 = vpop.f32.mrf.mxu0
      %v911 = vpop.f32.mrf.mxu0
      %v912 = vadd.f32 %v309, %v911
      %v913 = vpop.f32.mrf.mxu0
      %914 = vmatprep.mubr.bf16.mxu0 0
      %915 = vmatmul.mubr.bf16.gmra.mxu0 %v659
      %v916 = vpop.f32.mrf.mxu0
      %v917 = vadd.f32 %v309, %v916
      %v918 = vpop.f32.mrf.mxu0
      %v919 = vpop.f32.mrf.mxu0
      %v920 = vadd.f32 %v309, %v919
      %v921 = vpop.f32.mrf.mxu0
      %922 = vmatprep.mubr.bf16.mxu0 0
      %923 = vmatmul.mubr.bf16.gmra.mxu0 %v662
      %v924 = vpop.f32.mrf.mxu0
      %v925 = vadd.f32 %v309, %v924
      %v926 = vpop.f32.mrf.mxu0
      %v927 = vpop.f32.mrf.mxu0
      %v928 = vadd.f32 %v309, %v927
      %v929 = vpop.f32.mrf.mxu0
      %930 = vmatprep.mubr.bf16.mxu0 0
      %931 = vmatmul.mubr.bf16.gmra.mxu0 %v665
      %v932 = vpop.f32.mrf.mxu0
      %v933 = vadd.f32 %v309, %v932
      %v934 = vpop.f32.mrf.mxu0
      %v935 = vpop.f32.mrf.mxu0
      %v936 = vadd.f32 %v309, %v935
      %v937 = vpop.f32.mrf.mxu0
      %938 = vmatprep.mubr.bf16.mxu0 0
      %939 = vmatmul.mubr.bf16.gmra.mxu0 %v668
      %v940 = vpop.f32.mrf.mxu0
      %v941 = vadd.f32 %v309, %v940
      %v942 = vpop.f32.mrf.mxu0
      %v943 = vpop.f32.mrf.mxu0
      %v944 = vadd.f32 %v309, %v943
      %v945 = vpop.f32.mrf.mxu0
      %946 = vmatprep.mubr.bf16.mxu0 0
      %947 = vmatmul.mubr.bf16.gmra.mxu0 %v671
      %v948 = vpop.f32.mrf.mxu0
      %v949 = vadd.f32 %v309, %v948
      %v950 = vpop.f32.mrf.mxu0
      %v951 = vpop.f32.mrf.mxu0
      %v952 = vadd.f32 %v309, %v951
      %v953 = vpop.f32.mrf.mxu0
      %954 = vmatprep.mubr.bf16.mxu0 0
      %955 = vmatmul.mubr.bf16.gmra.mxu0 %v674
      %v956 = vpop.f32.mrf.mxu0
      %v957 = vadd.f32 %v309, %v956
      %v958 = vpop.f32.mrf.mxu0
      %v959 = vpop.f32.mrf.mxu0
      %v960 = vadd.f32 %v309, %v959
      %v961 = vpop.f32.mrf.mxu0
      %962 = vmatprep.mubr.bf16.mxu0 0
      %963 = vmatmul.mubr.bf16.gmra.mxu0 %v677
      %v964 = vpop.f32.mrf.mxu0
      %v965 = vadd.f32 %v309, %v964
      %v966 = vpop.f32.mrf.mxu0
      %v967 = vpop.f32.mrf.mxu0
      %v968 = vadd.f32 %v309, %v967
      %v969 = vpop.f32.mrf.mxu0
      %970 = vmatprep.mubr.bf16.mxu0 0
      %971 = vmatmul.mubr.bf16.gmra.mxu0 %v680
      %v972 = vpop.f32.mrf.mxu0
      %v973 = vadd.f32 %v309, %v972
      %v974 = vpop.f32.mrf.mxu0
      %v975 = vpop.f32.mrf.mxu0
      %v976 = vadd.f32 %v309, %v975
      %v977 = vpop.f32.mrf.mxu0
      %978 = vmatprep.mubr.bf16.mxu0 0
      %979 = vmatmul.mubr.bf16.gmra.mxu0 %v683
      %v980 = vpop.f32.mrf.mxu0
      %v981 = vadd.f32 %v309, %v980
      %v982 = vpop.f32.mrf.mxu0
      %v983 = vpop.f32.mrf.mxu0
      %v984 = vadd.f32 %v309, %v983
      %v985 = vpop.f32.mrf.mxu0
      %986 = vmatprep.mubr.bf16.mxu0 0
      %987 = vmatmul.mubr.bf16.gmra.mxu0 %v686
      %v988 = vpop.f32.mrf.mxu0
      %v989 = vadd.f32 %v309, %v988
      %v990 = vpop.f32.mrf.mxu0
      %v991 = vpop.f32.mrf.mxu0
      %v992 = vadd.f32 %v309, %v991
      %v993 = vpop.f32.mrf.mxu0
      %994 = vmatprep.mubr.bf16.mxu0 0
      %995 = vmatmul.mubr.bf16.gmra.mxu0 %v689
      %v996 = vpop.f32.mrf.mxu0
      %v997 = vadd.f32 %v309, %v996
      %v998 = vpop.f32.mrf.mxu0
      %v999 = vpop.f32.mrf.mxu0
      %v1000 = vadd.f32 %v309, %v999
      %v1001 = vpop.f32.mrf.mxu0
      %1002 = vmatprep.mubr.bf16.mxu0 0
      %1003 = vmatmul.mubr.bf16.gmra.mxu0 %v692
      %v1004 = vpop.f32.mrf.mxu0
      %v1005 = vadd.f32 %v309, %v1004
      %v1006 = vpop.f32.mrf.mxu0
      %v1007 = vpop.f32.mrf.mxu0
      %v1008 = vadd.f32 %v309, %v1007
      %v1009 = vpop.f32.mrf.mxu0
      %1010 = vmatprep.mubr.bf16.mxu0 0
      %1011 = vmatmul.mubr.bf16.gmra.mxu0 %v695
      %v1012 = vpop.f32.mrf.mxu0
      %v1013 = vadd.f32 %v309, %v1012
      %v1014 = vpop.f32.mrf.mxu0
      %v1015 = vpop.f32.mrf.mxu0
      %v1016 = vadd.f32 %v309, %v1015
      %v1017 = vpop.f32.mrf.mxu0
      %1018 = vmatprep.mubr.bf16.mxu0 0
      %1019 = vmatmul.mubr.bf16.gmra.mxu0 %v698
      %v1020 = vpop.f32.mrf.mxu0
      %v1021 = vadd.f32 %v309, %v1020
      %v1022 = vpop.f32.mrf.mxu0
      %v1023 = vpop.f32.mrf.mxu0
      %v1024 = vadd.f32 %v309, %v1023
      %v1025 = vpop.f32.mrf.mxu0
      %1026 = vmatprep.mubr.bf16.mxu0 0
      %1027 = vmatmul.mubr.bf16.gmra.mxu0 %v701
      %v1028 = vpop.f32.mrf.mxu0
      %v1029 = vadd.f32 %v309, %v1028
      %v1030 = vpop.f32.mrf.mxu0
      %v1031 = vpop.f32.mrf.mxu0
      %v1032 = vadd.f32 %v309, %v1031
      %v1033 = vpop.f32.mrf.mxu0
      %1034 = vmatprep.mubr.bf16.mxu0 0
      %1035 = vmatmul.mubr.bf16.gmra.mxu0 %v704
      %v1036 = vpop.f32.mrf.mxu0
      %v1037 = vadd.f32 %v309, %v1036
      %v1038 = vpop.f32.mrf.mxu0
      %v1039 = vpop.f32.mrf.mxu0
      %v1040 = vadd.f32 %v309, %v1039
      %v1041 = vpop.f32.mrf.mxu0
      %1042 = vmatprep.mubr.bf16.mxu0 0
      %1043 = vmatmul.mubr.bf16.gmra.mxu0 %v707
      %v1044 = vpop.f32.mrf.mxu0
      %v1045 = vadd.f32 %v309, %v1044
      %v1046 = vpop.f32.mrf.mxu0
      %v1047 = vpop.f32.mrf.mxu0
      %v1048 = vadd.f32 %v309, %v1047
      %v1049 = vpop.f32.mrf.mxu0
      %1050 = vmatprep.mubr.bf16.mxu0 0
      %1051 = vmatmul.mubr.bf16.gmra.mxu0 %v710
      %v1052 = vpop.f32.mrf.mxu0
      %v1053 = vadd.f32 %v309, %v1052
      %v1054 = vpop.f32.mrf.mxu0
      %v1055 = vpop.f32.mrf.mxu0
      %v1056 = vadd.f32 %v309, %v1055
      %v1057 = vpop.f32.mrf.mxu0
      %1058 = vmatprep.mubr.bf16.mxu0 0
      %1059 = vmatmul.mubr.bf16.gmra.mxu0 %v713
      %v1060 = vpop.f32.mrf.mxu0
      %v1061 = vadd.f32 %v309, %v1060
      %v1062 = vpop.f32.mrf.mxu0
      %v1063 = vpop.f32.mrf.mxu0
      %v1064 = vadd.f32 %v309, %v1063
      %v1065 = vpop.f32.mrf.mxu0
      %1066 = vmatprep.mubr.bf16.mxu0 0
      %1067 = vmatmul.mubr.bf16.gmra.mxu0 %v716
      %v1068 = vpop.f32.mrf.mxu0
      %v1069 = vadd.f32 %v309, %v1068
      %v1070 = vpop.f32.mrf.mxu0
      %v1071 = vpop.f32.mrf.mxu0
      %v1072 = vadd.f32 %v309, %v1071
      %v1073 = vpop.f32.mrf.mxu0
      %1074 = vmatprep.mubr.bf16.mxu0 0
      %1075 = vmatmul.mubr.bf16.gmra.mxu0 %v719
      %v1076 = vpop.f32.mrf.mxu0
      %v1077 = vadd.f32 %v309, %v1076
      %v1078 = vpop.f32.mrf.mxu0
      %v1079 = vpop.f32.mrf.mxu0
      %v1080 = vadd.f32 %v309, %v1079
      %v1081 = vpop.f32.mrf.mxu0
      %1082 = vmatprep.mubr.bf16.mxu0 0
      %1083 = vmatmul.mubr.bf16.gmra.mxu0 %v722
      %v1084 = vpop.f32.mrf.mxu0
      %v1085 = vadd.f32 %v309, %v1084
      %v1086 = vpop.f32.mrf.mxu0
      %v1087 = vpop.f32.mrf.mxu0
      %v1088 = vadd.f32 %v309, %v1087
      %v1089 = vpop.f32.mrf.mxu0
      %1090 = vmatprep.mubr.bf16.mxu0 0
      %1091 = vmatmul.mubr.bf16.gmra.mxu0 %v725
      %v1092 = vpop.f32.mrf.mxu0
      %v1093 = vadd.f32 %v309, %v1092
      %v1094 = vpop.f32.mrf.mxu0
      %v1095 = vpop.f32.mrf.mxu0
      %v1096 = vadd.f32 %v309, %v1095
      %v1097 = vpop.f32.mrf.mxu0
      %1098 = vmatprep.mubr.bf16.mxu0 0
      %1099 = vmatmul.mubr.bf16.gmra.mxu0 %v728
      %v1100 = vpop.f32.mrf.mxu0
      %v1101 = vadd.f32 %v309, %v1100
      %v1102 = vpop.f32.mrf.mxu0
      %v1103 = vpop.f32.mrf.mxu0
      %v1104 = vadd.f32 %v309, %v1103
      %v1105 = vpop.f32.mrf.mxu0
      %1106 = vmatprep.mubr.bf16.mxu0 0
      %1107 = vmatmul.mubr.bf16.gmra.mxu0 %v731
      %v1108 = vpop.f32.mrf.mxu0
      %v1109 = vadd.f32 %v309, %v1108
      %v1110 = vpop.f32.mrf.mxu0
      %v1111 = vpop.f32.mrf.mxu0
      %v1112 = vadd.f32 %v309, %v1111
      %v1113 = vpop.f32.mrf.mxu0
      %1114 = vmatprep.mubr.bf16.mxu0 0
      %1115 = vmatmul.mubr.bf16.gmra.mxu0 %v734
      %v1116 = vpop.f32.mrf.mxu0
      %v1117 = vadd.f32 %v309, %v1116
      %v1118 = vpop.f32.mrf.mxu0
      %v1119 = vpop.f32.mrf.mxu0
      %v1120 = vadd.f32 %v309, %v1119
      %v1121 = vpop.f32.mrf.mxu0
      %1122 = vmatprep.mubr.bf16.mxu0 0
      %1123 = vmatmul.mubr.bf16.gmra.mxu0 %v737
      %v1124 = vpop.f32.mrf.mxu0
      %v1125 = vadd.f32 %v309, %v1124
      %v1126 = vpop.f32.mrf.mxu0
      %v1127 = vpop.f32.mrf.mxu0
      %v1128 = vadd.f32 %v309, %v1127
      %v1129 = vpop.f32.mrf.mxu0
      %1130 = vmatprep.mubr.bf16.mxu0 0
      %1131 = vmatmul.mubr.bf16.gmra.mxu0 %v740
      %v1132 = vpop.f32.mrf.mxu0
      %v1133 = vadd.f32 %v309, %v1132
      %v1134 = vpop.f32.mrf.mxu0
      %v1135 = vpop.f32.mrf.mxu0
      %v1136 = vadd.f32 %v309, %v1135
      %v1137 = vpop.f32.mrf.mxu0
      %1138 = vmatprep.mubr.bf16.mxu0 0
      %1139 = vmatmul.mubr.bf16.gmra.mxu0 %v743
      %v1140 = vpop.f32.mrf.mxu0
      %v1141 = vadd.f32 %v309, %v1140
      %v1142 = vpop.f32.mrf.mxu0
      %v1143 = vpop.f32.mrf.mxu0
      %v1144 = vadd.f32 %v309, %v1143
      %v1145 = vpop.f32.mrf.mxu0
      %1146 = vmatprep.mubr.bf16.mxu0 0
      %1147 = vmatmul.mubr.bf16.gmra.mxu0 %v746
      %v1148 = vpop.f32.mrf.mxu0
      %v1149 = vadd.f32 %v309, %v1148
      %v1150 = vpop.f32.mrf.mxu0
      %v1151 = vpop.f32.mrf.mxu0
      %v1152 = vadd.f32 %v309, %v1151
      %v1153 = vpop.f32.mrf.mxu0
      %1154 = vmatprep.mubr.bf16.mxu0 0
      %1155 = vmatmul.mubr.bf16.gmra.mxu0 %v749
      %v1156 = vpop.f32.mrf.mxu0
      %v1157 = vadd.f32 %v309, %v1156
      %v1158 = vpop.f32.mrf.mxu0
      %v1159 = vpop.f32.mrf.mxu0
      %v1160 = vadd.f32 %v309, %v1159
      %v1161 = vpop.f32.mrf.mxu0
      %1162 = vmatprep.mubr.bf16.mxu0 0
      %1163 = vmatmul.mubr.bf16.gmra.mxu0 %v752
      %v1164 = vpop.f32.mrf.mxu0
      %v1165 = vadd.f32 %v309, %v1164
      %v1166 = vpop.f32.mrf.mxu0
      %v1167 = vpop.f32.mrf.mxu0
      %v1168 = vadd.f32 %v309, %v1167
      %v1169 = vpop.f32.mrf.mxu0
      %1170 = vmatprep.mubr.bf16.mxu0 0
      %1171 = vmatmul.mubr.bf16.gmra.mxu0 %v755
      %v1172 = vpop.f32.mrf.mxu0
      %v1173 = vadd.f32 %v309, %v1172
      %v1174 = vpop.f32.mrf.mxu0
      %v1175 = vpop.f32.mrf.mxu0
      %v1176 = vadd.f32 %v309, %v1175
      %v1177 = vpop.f32.mrf.mxu0
      %1178 = vmatprep.mubr.bf16.mxu0 0
      %1179 = vmatmul.mubr.bf16.gmra.mxu0 %v758
      %v1180 = vpop.f32.mrf.mxu0
      %v1181 = vadd.f32 %v309, %v1180
      %v1182 = vpop.f32.mrf.mxu0
      %v1183 = vpop.f32.mrf.mxu0
      %v1184 = vadd.f32 %v309, %v1183
      %v1185 = vpop.f32.mrf.mxu0
      %1186 = vmatprep.mubr.bf16.mxu0 0
      %1187 = vmatmul.mubr.bf16.gmra.mxu0 %v761
      %v1188 = vpop.f32.mrf.mxu0
      %v1189 = vadd.f32 %v309, %v1188
      %v1190 = vpop.f32.mrf.mxu0
      %v1191 = vpop.f32.mrf.mxu0
      %v1192 = vadd.f32 %v309, %v1191
      %v1193 = vpop.f32.mrf.mxu0
      %1194 = vmatprep.mubr.bf16.mxu0 0
      %1195 = vmatmul.mubr.bf16.gmra.mxu0 %v764
      %v1196 = vpop.f32.mrf.mxu0
      %v1197 = vadd.f32 %v309, %v1196
      %v1198 = vpop.f32.mrf.mxu0
      %v1199 = vpop.f32.mrf.mxu0
      %v1200 = vadd.f32 %v309, %v1199
      %v1201 = vpop.f32.mrf.mxu0
      %1202 = vmatprep.mubr.bf16.mxu0 0
      %1203 = vmatmul.mubr.bf16.gmra.mxu0 %v767
      %v1204 = vpop.f32.mrf.mxu0
      %v1205 = vadd.f32 %v309, %v1204
      %v1206 = vpop.f32.mrf.mxu0
      %v1207 = vpop.f32.mrf.mxu0
      %v1208 = vadd.f32 %v309, %v1207
      %v1209 = vpop.f32.mrf.mxu0
      %1210 = vmatprep.mubr.bf16.mxu0 0
      %1211 = vmatmul.mubr.bf16.gmra.mxu0 %v770
      %v1212 = vpop.f32.mrf.mxu0
      %v1213 = vadd.f32 %v309, %v1212
      %v1214 = vpop.f32.mrf.mxu0
      %v1215 = vpop.f32.mrf.mxu0
      %v1216 = vadd.f32 %v309, %v1215
      %v1217 = vpop.f32.mrf.mxu0
      %1218 = vmatprep.mubr.bf16.mxu0 0
      %1219 = vmatmul.mubr.bf16.gmra.mxu0 %v773
      %v1220 = vpop.f32.mrf.mxu0
      %v1221 = vadd.f32 %v309, %v1220
      %v1222 = vpop.f32.mrf.mxu0
      %v1223 = vpop.f32.mrf.mxu0
      %v1224 = vadd.f32 %v309, %v1223
      %v1225 = vpop.f32.mrf.mxu0
      %1226 = vmatprep.mubr.bf16.mxu0 0
      %1227 = vmatmul.mubr.bf16.gmra.mxu0 %v776
      %v1228 = vpop.f32.mrf.mxu0
      %v1229 = vadd.f32 %v309, %v1228
      %v1230 = vpop.f32.mrf.mxu0
      %v1231 = vpop.f32.mrf.mxu0
      %v1232 = vadd.f32 %v309, %v1231
      %v1233 = vpop.f32.mrf.mxu0
      %1234 = vmatprep.mubr.bf16.mxu0 0
      %1235 = vmatmul.mubr.bf16.gmra.mxu0 %v779
      %v1236 = vpop.f32.mrf.mxu0
      %v1237 = vadd.f32 %v309, %v1236
      %v1238 = vpop.f32.mrf.mxu0
      %v1239 = vpop.f32.mrf.mxu0
      %v1240 = vadd.f32 %v309, %v1239
      %v1241 = vpop.f32.mrf.mxu0
      %1242 = vmatprep.mubr.bf16.mxu0 0
      %1243 = vmatmul.mubr.bf16.gmra.mxu0 %v782
      %v1244 = vpop.f32.mrf.mxu0
      %v1245 = vadd.f32 %v309, %v1244
      %v1246 = vpop.f32.mrf.mxu0
      %v1247 = vpop.f32.mrf.mxu0
      %v1248 = vadd.f32 %v309, %v1247
      %v1249 = vpop.f32.mrf.mxu0
      %1250 = vmatprep.mubr.bf16.mxu0 0
      %1251 = vmatmul.mubr.bf16.gmra.mxu0 %v785
      %v1252 = vpop.f32.mrf.mxu0
      %v1253 = vadd.f32 %v309, %v1252
      %v1254 = vpop.f32.mrf.mxu0
      %v1255 = vpop.f32.mrf.mxu0
      %v1256 = vadd.f32 %v309, %v1255
      %v1257 = vpop.f32.mrf.mxu0
      %1258 = vmatprep.mubr.bf16.mxu0 0
      %1259 = vmatmul.mubr.bf16.gmra.mxu0 %v788
      %v1260 = vpop.f32.mrf.mxu0
      %v1261 = vadd.f32 %v309, %v1260
      %v1262 = vpop.f32.mrf.mxu0
      %v1263 = vpop.f32.mrf.mxu0
      %v1264 = vadd.f32 %v309, %v1263
      %v1265 = vpop.f32.mrf.mxu0
      %1266 = vmatprep.mubr.bf16.mxu0 0
      %1267 = vmatmul.mubr.bf16.gmra.mxu0 %v791
      %v1268 = vpop.f32.mrf.mxu0
      %v1269 = vadd.f32 %v309, %v1268
      %v1270 = vpop.f32.mrf.mxu0
      %v1271 = vpop.f32.mrf.mxu0
      %v1272 = vadd.f32 %v309, %v1271
      %v1273 = vpop.f32.mrf.mxu0
      %1274 = vmatprep.mubr.bf16.mxu0 0
      %1275 = vmatmul.mubr.bf16.gmra.mxu0 %v794
      %v1276 = vpop.f32.mrf.mxu0
      %v1277 = vadd.f32 %v309, %v1276
      %v1278 = vpop.f32.mrf.mxu0
      %v1279 = vpop.f32.mrf.mxu0
      %v1280 = vadd.f32 %v309, %v1279
      %v1281 = vpop.f32.mrf.mxu0
      %1282 = vmatprep.mubr.bf16.mxu0 0
      %1283 = vmatmul.mubr.bf16.gmra.mxu0 %v797
      %v1284 = vpop.f32.mrf.mxu0
      %v1285 = vadd.f32 %v309, %v1284
      %v1286 = vpop.f32.mrf.mxu0
      %v1287 = vpop.f32.mrf.mxu0
      %v1288 = vadd.f32 %v309, %v1287
      %v1289 = vpop.f32.mrf.mxu0
      %1290 = vmatprep.mubr.bf16.mxu0 0
      %1291 = vmatmul.mubr.bf16.gmra.mxu0 %v800
      %v1292 = vpop.f32.mrf.mxu0
      %v1293 = vadd.f32 %v309, %v1292
      %v1294 = vpop.f32.mrf.mxu0
      %v1295 = vpop.f32.mrf.mxu0
      %v1296 = vadd.f32 %v309, %v1295
      %v1297 = vpop.f32.mrf.mxu0
      %1298 = vmatprep.mubr.bf16.mxu0 0
      %1299 = vmatmul.mubr.bf16.gmra.mxu0 %v803
      %v1300 = vpop.f32.mrf.mxu0
      %v1301 = vadd.f32 %v309, %v1300
      %v1302 = vpop.f32.mrf.mxu0
      %v1303 = vpop.f32.mrf.mxu0
      %v1304 = vadd.f32 %v309, %v1303
      %v1305 = vpop.f32.mrf.mxu0
      %1306 = vmatprep.mubr.bf16.mxu0 0
      %1307 = vmatmul.mubr.bf16.gmra.mxu0 %v806
      %v1308 = vpop.f32.mrf.mxu0
      %v1309 = vadd.f32 %v309, %v1308
      %v1310 = vpop.f32.mrf.mxu0
      %v1311 = vpop.f32.mrf.mxu0
      %v1312 = vadd.f32 %v309, %v1311
      %v1313 = vpop.f32.mrf.mxu0
      %1314 = vmatprep.mubr.bf16.mxu0 0
      %1315 = vmatmul.mubr.bf16.gmra.mxu0 %v809
      %v1316 = vpop.f32.mrf.mxu0
      %v1317 = vadd.f32 %v309, %v1316
      %v1318 = vpop.f32.mrf.mxu0
      %v1319 = vpop.f32.mrf.mxu0
      %v1320 = vadd.f32 %v309, %v1319
      %v1321 = vpop.f32.mrf.mxu0
      %1322 = vmatprep.mubr.bf16.mxu0 0
      %1323 = vmatmul.mubr.bf16.gmra.mxu0 %v812
      %v1324 = vpop.f32.mrf.mxu0
      %v1325 = vadd.f32 %v309, %v1324
      %v1326 = vpop.f32.mrf.mxu0
      %v1327 = vpop.f32.mrf.mxu0
      %v1328 = vadd.f32 %v309, %v1327
      %v1329 = vpop.f32.mrf.mxu0
      %1330 = vmatprep.mubr.bf16.mxu0 0
      %1331 = vmatmul.mubr.bf16.gmra.mxu0 %v815
      %v1332 = vpop.f32.mrf.mxu0
      %v1333 = vadd.f32 %v309, %v1332
      %v1334 = vpop.f32.mrf.mxu0
      %v1335 = vpop.f32.mrf.mxu0
      %v1336 = vadd.f32 %v309, %v1335
      %v1337 = vpop.f32.mrf.mxu0
      %1338 = vmatprep.mubr.bf16.mxu0 0
      %1339 = vmatmul.mubr.bf16.gmra.mxu0 %v818
      %v1340 = vpop.f32.mrf.mxu0
      %v1341 = vadd.f32 %v309, %v1340
      %v1342 = vpop.f32.mrf.mxu0
      %v1343 = vpop.f32.mrf.mxu0
      %v1344 = vadd.f32 %v309, %v1343
      %v1345 = vpop.f32.mrf.mxu0
      %1346 = vmatprep.mubr.bf16.mxu0 0
      %1347 = vmatmul.mubr.bf16.gmra.mxu0 %v821
      %v1348 = vpop.f32.mrf.mxu0
      %v1349 = vadd.f32 %v309, %v1348
      %v1350 = vpop.f32.mrf.mxu0
      %v1351 = vpop.f32.mrf.mxu0
      %v1352 = vadd.f32 %v309, %v1351
      %v1353 = vpop.f32.mrf.mxu0
      %1354 = vmatprep.mubr.bf16.mxu0 0
      %1355 = vmatmul.mubr.bf16.gmra.mxu0 %v824
      %v1356 = vpop.f32.mrf.mxu0
      %v1357 = vadd.f32 %v309, %v1356
      %v1358 = vpop.f32.mrf.mxu0
      %v1359 = vpop.f32.mrf.mxu0
      %v1360 = vadd.f32 %v309, %v1359
      %v1361 = vpop.f32.mrf.mxu0
      %1362 = vmatprep.mubr.bf16.mxu0 0
      %1363 = vmatmul.mubr.bf16.gmra.mxu0 %v827
      %v1364 = vpop.f32.mrf.mxu0
      %v1365 = vadd.f32 %v309, %v1364
      %v1366 = vpop.f32.mrf.mxu0
      %v1367 = vpop.f32.mrf.mxu0
      %v1368 = vadd.f32 %v309, %v1367
      %v1369 = vpop.f32.mrf.mxu0
      %1370 = vmatprep.mubr.bf16.mxu0 0
      %1371 = vmatmul.mubr.bf16.gmra.mxu0 %v830
      %v1372 = vpop.f32.mrf.mxu0
      %v1373 = vadd.f32 %v309, %v1372
      %v1374 = vpop.f32.mrf.mxu0
      %v1375 = vpop.f32.mrf.mxu0
      %v1376 = vadd.f32 %v309, %v1375
      %v1377 = vpop.f32.mrf.mxu0
      %1378 = vmatprep.mubr.bf16.mxu0 0
      %1379 = vmatmul.mubr.bf16.gmra.mxu0 %v833
      %v1380 = vpop.f32.mrf.mxu0
      %v1381 = vadd.f32 %v309, %v1380
      %v1382 = vpop.f32.mrf.mxu0
      %v1383 = vpop.f32.mrf.mxu0
      %v1384 = vadd.f32 %v309, %v1383
      %v1385 = vpop.f32.mrf.mxu0
      %1386 = vdwg.mxu0
      %v1387 = vmax.f32 %v877, 0.0
      %v1388 = vmax.f32 %v880, 0.0
      %v1389 = vmax.f32 %v885, 0.0
      %v1390 = vmax.f32 %v888, 0.0
      %v1391 = vmax.f32 %v893, 0.0
      %v1392 = vmax.f32 %v896, 0.0
      %v1393 = vmax.f32 %v901, 0.0
      %v1394 = vmax.f32 %v904, 0.0
      %v1395 = vmax.f32 %v909, 0.0
      %v1396 = vmax.f32 %v912, 0.0
      %v1397 = vmax.f32 %v917, 0.0
      %v1398 = vmax.f32 %v920, 0.0
      %v1399 = vmax.f32 %v925, 0.0
      %v1400 = vmax.f32 %v928, 0.0
      %v1401 = vmax.f32 %v933, 0.0
      %v1402 = vmax.f32 %v936, 0.0
      %v1403 = vmax.f32 %v941, 0.0
      %v1404 = vmax.f32 %v944, 0.0
      %v1405 = vmax.f32 %v949, 0.0
      %v1406 = vmax.f32 %v952, 0.0
      %v1407 = vmax.f32 %v957, 0.0
      %v1408 = vmax.f32 %v960, 0.0
      %v1409 = vmax.f32 %v965, 0.0
      %v1410 = vmax.f32 %v968, 0.0
      %v1411 = vmax.f32 %v973, 0.0
      %v1412 = vmax.f32 %v976, 0.0
      %v1413 = vmax.f32 %v981, 0.0
      %v1414 = vmax.f32 %v984, 0.0
      %v1415 = vmax.f32 %v989, 0.0
      %v1416 = vmax.f32 %v992, 0.0
      %v1417 = vmax.f32 %v997, 0.0
      %v1418 = vmax.f32 %v1000, 0.0
      %v1419 = vmax.f32 %v1005, 0.0
      %v1420 = vmax.f32 %v1008, 0.0
      %v1421 = vmax.f32 %v1013, 0.0
      %v1422 = vmax.f32 %v1016, 0.0
      %v1423 = vmax.f32 %v1021, 0.0
      %v1424 = vmax.f32 %v1024, 0.0
      %v1425 = vmax.f32 %v1029, 0.0
      %v1426 = vmax.f32 %v1032, 0.0
      %v1427 = vmax.f32 %v1037, 0.0
      %v1428 = vmax.f32 %v1040, 0.0
      %v1429 = vmax.f32 %v1045, 0.0
      %v1430 = vmax.f32 %v1048, 0.0
      %v1431 = vmax.f32 %v1053, 0.0
      %v1432 = vmax.f32 %v1056, 0.0
      %v1433 = vmax.f32 %v1061, 0.0
      %v1434 = vmax.f32 %v1064, 0.0
      %v1435 = vmax.f32 %v1069, 0.0
      %v1436 = vmax.f32 %v1072, 0.0
      %v1437 = vmax.f32 %v1077, 0.0
      %v1438 = vmax.f32 %v1080, 0.0
      %v1439 = vmax.f32 %v1085, 0.0
      %v1440 = vmax.f32 %v1088, 0.0
      %v1441 = vmax.f32 %v1093, 0.0
      %v1442 = vmax.f32 %v1096, 0.0
      %v1443 = vmax.f32 %v1101, 0.0
      %v1444 = vmax.f32 %v1104, 0.0
      %v1445 = vmax.f32 %v1109, 0.0
      %v1446 = vmax.f32 %v1112, 0.0
      %v1447 = vmax.f32 %v1117, 0.0
      %v1448 = vmax.f32 %v1120, 0.0
      %v1449 = vmax.f32 %v1125, 0.0
      %v1450 = vmax.f32 %v1128, 0.0
      %v1451 = vmax.f32 %v1133, 0.0
      %v1452 = vmax.f32 %v1136, 0.0
      %v1453 = vmax.f32 %v1141, 0.0
      %v1454 = vmax.f32 %v1144, 0.0
      %v1455 = vmax.f32 %v1149, 0.0
      %v1456 = vmax.f32 %v1152, 0.0
      %v1457 = vmax.f32 %v1157, 0.0
      %v1458 = vmax.f32 %v1160, 0.0
      %v1459 = vmax.f32 %v1165, 0.0
      %v1460 = vmax.f32 %v1168, 0.0
      %v1461 = vmax.f32 %v1173, 0.0
      %v1462 = vmax.f32 %v1176, 0.0
      %v1463 = vmax.f32 %v1181, 0.0
      %v1464 = vmax.f32 %v1184, 0.0
      %v1465 = vmax.f32 %v1189, 0.0
      %v1466 = vmax.f32 %v1192, 0.0
      %v1467 = vmax.f32 %v1197, 0.0
      %v1468 = vmax.f32 %v1200, 0.0
      %v1469 = vmax.f32 %v1205, 0.0
      %v1470 = vmax.f32 %v1208, 0.0
      %v1471 = vmax.f32 %v1213, 0.0
      %v1472 = vmax.f32 %v1216, 0.0
      %v1473 = vmax.f32 %v1221, 0.0
      %v1474 = vmax.f32 %v1224, 0.0
      %v1475 = vmax.f32 %v1229, 0.0
      %v1476 = vmax.f32 %v1232, 0.0
      %v1477 = vmax.f32 %v1237, 0.0
      %v1478 = vmax.f32 %v1240, 0.0
      %v1479 = vmax.f32 %v1245, 0.0
      %v1480 = vmax.f32 %v1248, 0.0
      %v1481 = vmax.f32 %v1253, 0.0
      %v1482 = vmax.f32 %v1256, 0.0
      %v1483 = vmax.f32 %v1261, 0.0
      %v1484 = vmax.f32 %v1264, 0.0
      %v1485 = vmax.f32 %v1269, 0.0
      %v1486 = vmax.f32 %v1272, 0.0
      %v1487 = vmax.f32 %v1277, 0.0
      %v1488 = vmax.f32 %v1280, 0.0
      %v1489 = vmax.f32 %v1285, 0.0
      %v1490 = vmax.f32 %v1288, 0.0
      %v1491 = vmax.f32 %v1293, 0.0
      %v1492 = vmax.f32 %v1296, 0.0
      %v1493 = vmax.f32 %v1301, 0.0
      %v1494 = vmax.f32 %v1304, 0.0
      %v1495 = vmax.f32 %v1309, 0.0
      %v1496 = vmax.f32 %v1312, 0.0
      %v1497 = vmax.f32 %v1317, 0.0
      %v1498 = vmax.f32 %v1320, 0.0
      %v1499 = vmax.f32 %v1325, 0.0
      %v1500 = vmax.f32 %v1328, 0.0
      %v1501 = vmax.f32 %v1333, 0.0
      %v1502 = vmax.f32 %v1336, 0.0
      %v1503 = vmax.f32 %v1341, 0.0
      %v1504 = vmax.f32 %v1344, 0.0
      %v1505 = vmax.f32 %v1349, 0.0
      %v1506 = vmax.f32 %v1352, 0.0
      %v1507 = vmax.f32 %v1357, 0.0
      %v1508 = vmax.f32 %v1360, 0.0
      %v1509 = vmax.f32 %v1365, 0.0
      %v1510 = vmax.f32 %v1368, 0.0
      %v1511 = vmax.f32 %v1373, 0.0
      %v1512 = vmax.f32 %v1376, 0.0
      %v1513 = vmax.f32 %v1381, 0.0
      %v1514 = vmax.f32 %v1384, 0.0
      %v1515 = vmax.f32 %v1387, %v1419
      %v1516 = vmax.f32 %v1388, %v1420
      %v1517 = vmax.f32 %v1389, %v1421
      %v1518 = vmax.f32 %v1390, %v1422
      %v1519 = vmax.f32 %v1391, %v1423
      %v1520 = vmax.f32 %v1392, %v1424
      %v1521 = vmax.f32 %v1393, %v1425
      %v1522 = vmax.f32 %v1394, %v1426
      %v1523 = vmax.f32 %v1395, %v1427
      %v1524 = vmax.f32 %v1396, %v1428
      %v1525 = vmax.f32 %v1397, %v1429
      %v1526 = vmax.f32 %v1398, %v1430
      %v1527 = vmax.f32 %v1399, %v1431
      %v1528 = vmax.f32 %v1400, %v1432
      %v1529 = vmax.f32 %v1401, %v1433
      %v1530 = vmax.f32 %v1402, %v1434
      %v1531 = vmax.f32 %v1403, %v1435
      %v1532 = vmax.f32 %v1404, %v1436
      %v1533 = vmax.f32 %v1405, %v1437
      %v1534 = vmax.f32 %v1406, %v1438
      %v1535 = vmax.f32 %v1407, %v1439
      %v1536 = vmax.f32 %v1408, %v1440
      %v1537 = vmax.f32 %v1409, %v1441
      %v1538 = vmax.f32 %v1410, %v1442
      %v1539 = vmax.f32 %v1411, %v1443
      %v1540 = vmax.f32 %v1412, %v1444
      %v1541 = vmax.f32 %v1413, %v1445
      %v1542 = vmax.f32 %v1414, %v1446
      %v1543 = vmax.f32 %v1415, %v1447
      %v1544 = vmax.f32 %v1416, %v1448
      %v1545 = vmax.f32 %v1417, %v1449
      %v1546 = vmax.f32 %v1418, %v1450
      %v1547 = vmax.f32 %v1451, %v1483
      %v1548 = vmax.f32 %v1452, %v1484
      %v1549 = vmax.f32 %v1453, %v1485
      %v1550 = vmax.f32 %v1454, %v1486
      %v1551 = vmax.f32 %v1455, %v1487
      %v1552 = vmax.f32 %v1456, %v1488
      %v1553 = vmax.f32 %v1457, %v1489
      %v1554 = vmax.f32 %v1458, %v1490
      %v1555 = vmax.f32 %v1459, %v1491
      %v1556 = vmax.f32 %v1460, %v1492
      %v1557 = vmax.f32 %v1461, %v1493
      %v1558 = vmax.f32 %v1462, %v1494
      %v1559 = vmax.f32 %v1463, %v1495
      %v1560 = vmax.f32 %v1464, %v1496
      %v1561 = vmax.f32 %v1465, %v1497
      %v1562 = vmax.f32 %v1466, %v1498
      %v1563 = vmax.f32 %v1467, %v1499
      %v1564 = vmax.f32 %v1468, %v1500
      %v1565 = vmax.f32 %v1469, %v1501
      %v1566 = vmax.f32 %v1470, %v1502
      %v1567 = vmax.f32 %v1471, %v1503
      %v1568 = vmax.f32 %v1472, %v1504
      %v1569 = vmax.f32 %v1473, %v1505
      %v1570 = vmax.f32 %v1474, %v1506
      %v1571 = vmax.f32 %v1475, %v1507
      %v1572 = vmax.f32 %v1476, %v1508
      %v1573 = vmax.f32 %v1477, %v1509
      %v1574 = vmax.f32 %v1478, %v1510
      %v1575 = vmax.f32 %v1479, %v1511
      %v1576 = vmax.f32 %v1480, %v1512
      %v1577 = vmax.f32 %v1481, %v1513
      %v1578 = vmax.f32 %v1482, %v1514
      %v1579 = vmax.f32 %v1515, %v1547
      %v1580 = vmax.f32 %v1516, %v1548
      %v1581 = vmax.f32 %v1517, %v1549
      %v1582 = vmax.f32 %v1518, %v1550
      %v1583 = vmax.f32 %v1519, %v1551
      %v1584 = vmax.f32 %v1520, %v1552
      %v1585 = vmax.f32 %v1521, %v1553
      %v1586 = vmax.f32 %v1522, %v1554
      %v1587 = vmax.f32 %v1523, %v1555
      %v1588 = vmax.f32 %v1524, %v1556
      %v1589 = vmax.f32 %v1525, %v1557
      %v1590 = vmax.f32 %v1526, %v1558
      %v1591 = vmax.f32 %v1527, %v1559
      %v1592 = vmax.f32 %v1528, %v1560
      %v1593 = vmax.f32 %v1529, %v1561
      %v1594 = vmax.f32 %v1530, %v1562
      %v1595 = vmax.f32 %v1531, %v1563
      %v1596 = vmax.f32 %v1532, %v1564
      %v1597 = vmax.f32 %v1533, %v1565
      %v1598 = vmax.f32 %v1534, %v1566
      %v1599 = vmax.f32 %v1535, %v1567
      %v1600 = vmax.f32 %v1536, %v1568
      %v1601 = vmax.f32 %v1537, %v1569
      %v1602 = vmax.f32 %v1538, %v1570
      %v1603 = vmax.f32 %v1539, %v1571
      %v1604 = vmax.f32 %v1540, %v1572
      %v1605 = vmax.f32 %v1541, %v1573
      %v1606 = vmax.f32 %v1542, %v1574
      %v1607 = vmax.f32 %v1543, %v1575
      %v1608 = vmax.f32 %v1544, %v1576
      %v1609 = vmax.f32 %v1545, %v1577
      %v1610 = vmax.f32 %v1546, %v1578
      %v1611 = vpack.c.bf16 %v1580, %v1579
      %v1612 = vpack.c.bf16 %v1582, %v1581
      %v1613 = vpack.c.bf16 %v1584, %v1583
      %v1614 = vpack.c.bf16 %v1586, %v1585
      %v1615 = vpack.c.bf16 %v1588, %v1587
      %v1616 = vpack.c.bf16 %v1590, %v1589
      %v1617 = vpack.c.bf16 %v1592, %v1591
      %v1618 = vpack.c.bf16 %v1594, %v1593
      %v1619 = vpack.c.bf16 %v1596, %v1595
      %v1620 = vpack.c.bf16 %v1598, %v1597
      %v1621 = vpack.c.bf16 %v1600, %v1599
      %v1622 = vpack.c.bf16 %v1602, %v1601
      %v1623 = vpack.c.bf16 %v1604, %v1603
      %v1624 = vpack.c.bf16 %v1606, %v1605
      %v1625 = vpack.c.bf16 %v1608, %v1607
      %v1626 = vpack.c.bf16 %v1610, %v1609
      %v1643 = vunpack.c.l.b16 %v1611
      %v1644 = vunpack.c.h.b16 %v1611
      %v1645 = vunpack.c.l.b16 %v1612
      %v1646 = vunpack.c.h.b16 %v1612
      %v1647 = vunpack.c.l.b16 %v1613
      %v1648 = vunpack.c.h.b16 %v1613
      %v1649 = vunpack.c.l.b16 %v1614
      %v1650 = vunpack.c.h.b16 %v1614
      %v1651 = vunpack.c.l.b16 %v1615
      %v1652 = vunpack.c.h.b16 %v1615
      %v1653 = vunpack.c.l.b16 %v1616
      %v1654 = vunpack.c.h.b16 %v1616
      %v1655 = vunpack.c.l.b16 %v1617
      %v1656 = vunpack.c.h.b16 %v1617
      %v1657 = vunpack.c.l.b16 %v1618
      %v1658 = vunpack.c.h.b16 %v1618
      %v1659 = vunpack.c.l.b16 %v1619
      %v1660 = vunpack.c.h.b16 %v1619
      %v1661 = vunpack.c.l.b16 %v1620
      %v1662 = vunpack.c.h.b16 %v1620
      %v1663 = vunpack.c.l.b16 %v1621
      %v1664 = vunpack.c.h.b16 %v1621
      %v1665 = vunpack.c.l.b16 %v1622
      %v1666 = vunpack.c.h.b16 %v1622
      %v1667 = vunpack.c.l.b16 %v1623
      %v1668 = vunpack.c.h.b16 %v1623
      %v1669 = vunpack.c.l.b16 %v1624
      %v1670 = vunpack.c.h.b16 %v1624
      %v1671 = vunpack.c.l.b16 %v1625
      %v1672 = vunpack.c.h.b16 %v1625
      %v1673 = vunpack.c.l.b16 %v1626
      %v1674 = vunpack.c.h.b16 %v1626
      %v1675 = vpack.c.b16 %v1643, %v1643
      %v1676 = vpack.c.b16 %v1644, %v1644
      %v1677 = vpack.c.b16 %v1645, %v1645
      %v1678 = vpack.c.b16 %v1646, %v1646
      %v1679 = vpack.c.b16 %v1647, %v1647
      %v1680 = vpack.c.b16 %v1648, %v1648
      %v1681 = vpack.c.b16 %v1649, %v1649
      %v1682 = vpack.c.b16 %v1650, %v1650
      %v1683 = vpack.c.b16 %v1651, %v1651
      %v1684 = vpack.c.b16 %v1652, %v1652
      %v1685 = vpack.c.b16 %v1653, %v1653
      %v1686 = vpack.c.b16 %v1654, %v1654
      %v1687 = vpack.c.b16 %v1655, %v1655
      %v1688 = vpack.c.b16 %v1656, %v1656
      %v1689 = vpack.c.b16 %v1657, %v1657
      %v1690 = vpack.c.b16 %v1658, %v1658
      %v1691 = vpack.c.b16 %v1659, %v1659
      %v1692 = vpack.c.b16 %v1660, %v1660
      %v1693 = vpack.c.b16 %v1661, %v1661
      %v1694 = vpack.c.b16 %v1662, %v1662
      %v1695 = vpack.c.b16 %v1663, %v1663
      %v1696 = vpack.c.b16 %v1664, %v1664
      %v1697 = vpack.c.b16 %v1665, %v1665
      %v1698 = vpack.c.b16 %v1666, %v1666
      %v1699 = vpack.c.b16 %v1667, %v1667
      %v1700 = vpack.c.b16 %v1668, %v1668
      %v1701 = vpack.c.b16 %v1669, %v1669
      %v1702 = vpack.c.b16 %v1670, %v1670
      %v1703 = vpack.c.b16 %v1671, %v1671
      %v1704 = vpack.c.b16 %v1672, %v1672
      %v1705 = vpack.c.b16 %v1673, %v1673
      %v1706 = vpack.c.b16 %v1674, %v1674
      %vm1739 = vcmask 257024
      %1740 = vst.msk [vmem:[%s170] sm:$0xf] %vm1739, %v1675
      %1741 = vst.msk [vmem:[%s170 + $0x4] sm:$0xf] %vm1739, %v1676
      %1742 = vst.msk [vmem:[%s170 + $0x8] sm:$0xf] %vm1739, %v1677
      %1743 = vst.msk [vmem:[%s170 + $0xc] sm:$0xf] %vm1739, %v1678
      %1744 = vst.msk [vmem:[%s170 + $0x10] sm:$0xf] %vm1739, %v1679
      %1745 = vst.msk [vmem:[%s170 + $0x14] sm:$0xf] %vm1739, %v1680
      %1746 = vst.msk [vmem:[%s170 + $0x18] sm:$0xf] %vm1739, %v1681
      %1747 = vst.msk [vmem:[%s170 + $0x1c] sm:$0xf] %vm1739, %v1682
      %1748 = vst.msk [vmem:[%s170 + $0x20] sm:$0xf] %vm1739, %v1683
      %1749 = vst.msk [vmem:[%s170 + $0x24] sm:$0xf] %vm1739, %v1684
      %1750 = vst.msk [vmem:[%s170 + $0x28] sm:$0xf] %vm1739, %v1685
      %1751 = vst.msk [vmem:[%s170 + $0x2c] sm:$0xf] %vm1739, %v1686
      %1752 = vst.msk [vmem:[%s170 + $0x30] sm:$0xf] %vm1739, %v1687
      %1753 = vst.msk [vmem:[%s170 + $0x34] sm:$0xf] %vm1739, %v1688
      %1754 = vst.msk [vmem:[%s170 + $0x38] sm:$0xf] %vm1739, %v1689
      %1755 = vst.msk [vmem:[%s170 + $0x3c] sm:$0xf] %vm1739, %v1690
      %1756 = vst.msk [vmem:[%s170 + $0x40] sm:$0xf] %vm1739, %v1691
      %1757 = vst.msk [vmem:[%s170 + $0x44] sm:$0xf] %vm1739, %v1692
      %1758 = vst.msk [vmem:[%s170 + $0x48] sm:$0xf] %vm1739, %v1693
      %1759 = vst.msk [vmem:[%s170 + $0x4c] sm:$0xf] %vm1739, %v1694
      %1760 = vst.msk [vmem:[%s170 + $0x50] sm:$0xf] %vm1739, %v1695
      %1761 = vst.msk [vmem:[%s170 + $0x54] sm:$0xf] %vm1739, %v1696
      %1762 = vst.msk [vmem:[%s170 + $0x58] sm:$0xf] %vm1739, %v1697
      %1763 = vst.msk [vmem:[%s170 + $0x5c] sm:$0xf] %vm1739, %v1698
      %1764 = vst.msk [vmem:[%s170 + $0x60] sm:$0xf] %vm1739, %v1699
      %1765 = vst.msk [vmem:[%s170 + $0x64] sm:$0xf] %vm1739, %v1700
      %1766 = vst.msk [vmem:[%s170 + $0x68] sm:$0xf] %vm1739, %v1701
      %1767 = vst.msk [vmem:[%s170 + $0x6c] sm:$0xf] %vm1739, %v1702
      %1768 = vst.msk [vmem:[%s170 + $0x70] sm:$0xf] %vm1739, %v1703
      %1769 = vst.msk [vmem:[%s170 + $0x74] sm:$0xf] %vm1739, %v1704
      %1770 = vst.msk [vmem:[%s170 + $0x78] sm:$0xf] %vm1739, %v1705
      %1771 = vst.msk [vmem:[%s170 + $0x7c] sm:$0xf] %vm1739, %v1706
      %p1772 = scmp.lt.s32.totalorder %s14, 1
      %s1773 = scalar_select %p1772, %s14, 1
      %s1774 = smul.addr %s1773, 32
      %s1775 = smul.addr %s1774, 4
      %s1776 = scalar_lea.vmem %s3, %s1775
      // Predicated region
      $region33: #{simple_cnn_forward.3} parent=31 // pred_check
        %p1777 = pneg %p100
      $region34: #{simple_cnn_forward.3} parent=31 // pred_check_branch
        %1779 = sbr.rel (%p1777) target = $region36
      $region35: #{simple_cnn_forward.3} parent=31 // pred_region
        _
      $region36: #{simple_cnn_forward.3} parent=31 // pred_fallthru
        _
    $region32: #{simple_cnn_forward.3} parent=5 // pred_fallthru
      _
    %p1780 = scmp.le.s32.totalorder 2, %s9
    // Predicated region
    $region37: #{simple_cnn_forward.3} parent=5 // pred_check
      %p1781 = pneg %p1780
    $region38: #{simple_cnn_forward.3} parent=5 // pred_check_branch
      %1783 = sbr.rel (%p1781) target = $region40
    $region39: #{simple_cnn_forward.3} parent=5 // pred_region
      %s1784 = ssub.s32 %s9, 2
      // Predicated region
      $region41: #{simple_cnn_forward.3} parent=39 // pred_check
        %p1785 = pneg %p106
      $region42: #{simple_cnn_forward.3} parent=39 // pred_check_branch
        %1787 = sbr.rel (%p1785) target = $region44
      $region43: #{simple_cnn_forward.3} parent=39 // pred_region
        %p1788 = scmp.lt.s32.totalorder %s15, 1
        %s1789 = scalar_select %p1788, %s15, 1
        %s1790 = smul.addr %s1789, 32
        %s1791 = smul.addr %s1790, 4
        %s1792 = scalar_lea.vmem %s3, %s1791
      $region44: #{simple_cnn_forward.3} parent=39 // pred_fallthru
        _
    $region40: #{simple_cnn_forward.3} parent=5 // pred_fallthru
      _
  $region6: #{simple_cnn_forward.3} parent=0 // loop_footer
    %s13 = sadd.s32 1, %s9
  $region7: #{simple_cnn_forward.3} parent=0 // loop_footer_branch
    %8 = sbr.rel target = $region3
  $region8: #{simple_cnn_forward.3} parent=0 // loop_exit
    _

// kernel: simple_cnn_forward.4
$region0: #{simple_cnn_forward.4}
  #allocation0 [shape = 'u32[]', space=smem, size = 0x4, offset = 0x4, fixed_abs, tag = 'smem constant byte address 0x4 - core index']
  #allocation1 [shape = 'u32[144,128]{1,0:T(1,128)}', space=vmem, size = 0x12000, scoped, tag = 'internal scratch']
  %s0 = inlined_call_operand.vmem [shape: bf16[2,256,288], index: 0, kind: input, shape index: {}]
  %s1 = inlined_call_operand.vmem [shape: bf16[288,64], index: 1, kind: input, shape index: {}]
  %s2 = inlined_call_operand.vmem [shape: f32[1,64], index: 2, kind: input, shape index: {}]
  %s3 = inlined_call_operand.vmem [shape: bf16[2,64,64], index: 3, kind: output, shape index: {}]
  %s4 = sld [smem:[#allocation0]]
  $region45: #{simple_cnn_forward.4} parent=0
    _
  %s6 = ssub.s32 1, %s4
  %s7 = scalar_select 0, %s6, %s4
  loop: start=0, step=1, limit=4
  $region2: #{simple_cnn_forward.4} parent=0 // loop_pre_header
    _
  $region3: #{simple_cnn_forward.4} parent=0 // loop_header
    %s9 = sphi 0, %s13
    %p10 = scmp.ge.s32.totalorder %s9, 4
    %s19 = sphi 0, %s21
    %s22 = sphi 0, %s19
    %s23 = sphi 0, %s22
    %s39 = sphi 0, %s23
    %s43 = sphi 0, %s43
    %s45 = sphi 0, %s43
    %s46 = sphi 0, %s45
    %s60 = sphi 0, %s46
    %s64 = sphi 0, %s64
    %s66 = sphi 0, %s64
    %s67 = sphi 0, %s66
    %s81 = sphi 0, %s67
    %s87 = sphi 0, %s89
    %s90 = sphi 0, %s87
    %s91 = sphi 0, %s90
    %s107 = sphi 0, %s91
  $region4: #{simple_cnn_forward.4} parent=0 // loop_header_branch
    %12 = sbr.rel (%p10) target = $region8
  $region5: #{simple_cnn_forward.4} parent=0 // loop_body
    %s14 = ssub.s32 %s9, 1
    %s15 = ssub.s32 %s9, 2
    %s16 = sadd.s32 %s9, 1
    %s17 = ssub.s32 %s9, %s16
    %p18 = scmp.eq.s32.totalorder %s17, 0
    %s20 = sadd.s32 %s19, 1
    %s21 = scalar_select %p18, %s19, %s20
    %p24 = pneg %p18
    %p25 = scmp.eq.s32.totalorder %s9, 1
    %p26 = por %p24, %p25
    %p27 = scmp.ne.s32.totalorder %s19, %s22
    %p28 = scmp.eq.s32.totalorder %s9, 0
    %p29 = por %p27, %p28
    %p30 = scmp.ne.s32.totalorder %s19, %s22
    %p31 = scmp.eq.s32.totalorder %s14, 1
    %p32 = por %p30, %p31
    %p33 = scmp.ne.s32.totalorder %s22, %s23
    %p34 = scmp.eq.s32.totalorder %s14, 0
    %p35 = por %p33, %p34
    %p36 = scmp.ne.s32.totalorder %s22, %s23
    %p37 = scmp.eq.s32.totalorder %s15, 1
    %p38 = por %p36, %p37
    %p40 = scmp.ne.s32.totalorder %s23, %s39
    %p41 = scmp.eq.s32.totalorder %s15, 0
    %p42 = por %p40, %p41
    %s44 = sadd.s32 %s43, 1
    %p47 = scmp.eq.s32.totalorder %s9, 1
    %p48 = scmp.ne.s32.totalorder %s43, %s45
    %p49 = scmp.eq.s32.totalorder %s9, 0
    %p50 = por %p48, %p49
    %p51 = scmp.ne.s32.totalorder %s43, %s45
    %p52 = scmp.eq.s32.totalorder %s14, 1
    %p53 = por %p51, %p52
    %p54 = scmp.ne.s32.totalorder %s45, %s46
    %p55 = scmp.eq.s32.totalorder %s14, 0
    %p56 = por %p54, %p55
    %p57 = scmp.ne.s32.totalorder %s45, %s46
    %p58 = scmp.eq.s32.totalorder %s15, 1
    %p59 = por %p57, %p58
    %p61 = scmp.ne.s32.totalorder %s46, %s60
    %p62 = scmp.eq.s32.totalorder %s15, 0
    %p63 = por %p61, %p62
    %s65 = sadd.s32 %s64, 1
    %p68 = scmp.eq.s32.totalorder %s9, 1
    %p69 = scmp.ne.s32.totalorder %s64, %s66
    %p70 = scmp.eq.s32.totalorder %s9, 0
    %p71 = por %p69, %p70
    %p72 = scmp.ne.s32.totalorder %s64, %s66
    %p73 = scmp.eq.s32.totalorder %s14, 1
    %p74 = por %p72, %p73
    %p75 = scmp.ne.s32.totalorder %s66, %s67
    %p76 = scmp.eq.s32.totalorder %s14, 0
    %p77 = por %p75, %p76
    %p78 = scmp.ne.s32.totalorder %s66, %s67
    %p79 = scmp.eq.s32.totalorder %s15, 1
    %p80 = por %p78, %p79
    %p82 = scmp.ne.s32.totalorder %s67, %s81
    %p83 = scmp.eq.s32.totalorder %s15, 0
    %p84 = por %p82, %p83
    %s85 = ssub.s32 %s9, %s16
    %p86 = scmp.eq.s32.totalorder %s85, 0
    %s88 = sadd.s32 %s87, 1
    %s89 = scalar_select %p86, %s87, %s88
    %p92 = pneg %p86
    %p93 = scmp.eq.s32.totalorder %s9, 1
    %p94 = por %p92, %p93
    %p95 = scmp.ne.s32.totalorder %s87, %s90
    %p96 = scmp.eq.s32.totalorder %s9, 0
    %p97 = por %p95, %p96
    %p98 = scmp.ne.s32.totalorder %s87, %s90
    %p99 = scmp.eq.s32.totalorder %s14, 1
    %p100 = por %p98, %p99
    %p101 = scmp.ne.s32.totalorder %s90, %s91
    %p102 = scmp.eq.s32.totalorder %s14, 0
    %p103 = por %p101, %p102
    %p104 = scmp.ne.s32.totalorder %s90, %s91
    %p105 = scmp.eq.s32.totalorder %s15, 1
    %p106 = por %p104, %p105
    %p108 = scmp.ne.s32.totalorder %s91, %s107
    %p109 = scmp.eq.s32.totalorder %s15, 0
    %p110 = por %p108, %p109
    %p111 = scmp.le.s32.totalorder 1, %s9
    %p112 = scmp.lt.s32.totalorder %s9, 3
    %p113 = pnand %p111, %p112
    %p114 = pneg %p113
    // Predicated region
    $region9: #{simple_cnn_forward.4} parent=5 // pred_check
      _
    $region10: #{simple_cnn_forward.4} parent=5 // pred_check_branch
      %116 = sbr.rel (%p113) target = $region12
    $region11: #{simple_cnn_forward.4} parent=5 // pred_region
      %s117 = ssub.s32 %s9, 1
      // Predicated region
      $region13: #{simple_cnn_forward.4} parent=11 // pred_check
        %p118 = pneg %p56
      $region14: #{simple_cnn_forward.4} parent=11 // pred_check_branch
        %120 = sbr.rel (%p118) target = $region16
      $region15: #{simple_cnn_forward.4} parent=11 // pred_region
        _
      $region16: #{simple_cnn_forward.4} parent=11 // pred_fallthru
        _
      // Predicated region
      $region17: #{simple_cnn_forward.4} parent=11 // pred_check
        %p121 = pneg %p77
      $region18: #{simple_cnn_forward.4} parent=11 // pred_check_branch
        %123 = sbr.rel (%p121) target = $region20
      $region19: #{simple_cnn_forward.4} parent=11 // pred_region
        _
      $region20: #{simple_cnn_forward.4} parent=11 // pred_fallthru
        _
    $region12: #{simple_cnn_forward.4} parent=5 // pred_fallthru
      _
    %p124 = scmp.lt.s32.totalorder %s9, 2
    // Predicated region
    $region21: #{simple_cnn_forward.4} parent=5 // pred_check
      %p125 = pneg %p124
    $region22: #{simple_cnn_forward.4} parent=5 // pred_check_branch
      %127 = sbr.rel (%p125) target = $region24
    $region23: #{simple_cnn_forward.4} parent=5 // pred_region
      // Predicated region
      $region25: #{simple_cnn_forward.4} parent=23 // pred_check
        %p128 = pneg %p29
      $region26: #{simple_cnn_forward.4} parent=23 // pred_check_branch
        %130 = sbr.rel (%p128) target = $region28
      $region27: #{simple_cnn_forward.4} parent=23 // pred_region
        %p131 = scmp.lt.s32.totalorder %s9, 1
        %s132 = scalar_select %p131, %s9, 1
        %s133 = smul.addr %s132, 96
        %s134 = smul.addr %s133, 4
        %s135 = scalar_lea.vmem %s0, %s134
      $region28: #{simple_cnn_forward.4} parent=23 // pred_fallthru
        _
    $region24: #{simple_cnn_forward.4} parent=5 // pred_fallthru
      _
    %p136 = scmp.le.s32.totalorder 1, %s9
    %p137 = scmp.lt.s32.totalorder %s9, 3
    %p138 = pnand %p136, %p137
    %p139 = pneg %p138
    // Predicated region
    $region29: #{simple_cnn_forward.4} parent=5 // pred_check
      _
    $region30: #{simple_cnn_forward.4} parent=5 // pred_check_branch
      %141 = sbr.rel (%p138) target = $region32
    $region31: #{simple_cnn_forward.4} parent=5 // pred_region
      %s142 = ssub.s32 %s9, 1
      %p143 = scmp.lt.s32.totalorder %s14, 1
      %s144 = scalar_select %p143, %s14, 1
      %s145 = smul.addr %s144, 96
      %s146 = smul.addr %s145, 4
      %s147 = scalar_lea.vmem %s0, %s146
      %p148 = pneg %p35
      %p149 = pneg %p32
      %p150 = pneg %p56
      %p151 = pneg %p53
      %p152 = pneg %p77
      %p153 = pneg %p74
      %p154 = pneg %p103
      %p155 = pneg %p100
      %p156 = scmp.lt.s32.totalorder %s14, 1
      %s157 = scalar_select %p156, %s14, 1
      %s158 = smul.addr %s157, 8
      %s159 = smul.addr %s158, 4
      %s160 = scalar_lea.vmem %s3, %s159
      %p161 = scmp.lt.s32.totalorder %s14, 1
      %s162 = scalar_select %p161, %s14, 1
      %s163 = smul.addr %s162, 96
      %s164 = smul.addr %s163, 4
      %s165 = scalar_lea.vmem %s0, %s164
      %p166 = scmp.lt.s32.totalorder %s14, 1
      %s167 = scalar_select %p166, %s14, 1
      %s168 = smul.addr %s167, 8
      %s169 = smul.addr %s168, 4
      %s170 = scalar_lea.vmem %s3, %s169
      %v172 = vld [vmem:[%s165] sm:$0xff]
      %v173 = vld [vmem:[%s165 + $0x8] sm:$0xf]
      %v174 = vld [vmem:[%s165 + $0xc] sm:$0xff]
      %v175 = vld [vmem:[%s165 + $0x14] sm:$0xf]
      %v176 = vld [vmem:[%s165 + $0x18] sm:$0xff]
      %v177 = vld [vmem:[%s165 + $0x20] sm:$0xf]
      %v178 = vld [vmem:[%s165 + $0x24] sm:$0xff]
      %v179 = vld [vmem:[%s165 + $0x2c] sm:$0xf]
      %v180 = vld [vmem:[%s165 + $0x30] sm:$0xff]
      %v181 = vld [vmem:[%s165 + $0x38] sm:$0xf]
      %v182 = vld [vmem:[%s165 + $0x3c] sm:$0xff]
      %v183 = vld [vmem:[%s165 + $0x44] sm:$0xf]
      %v184 = vld [vmem:[%s165 + $0x48] sm:$0xff]
      %v185 = vld [vmem:[%s165 + $0x50] sm:$0xf]
      %v186 = vld [vmem:[%s165 + $0x54] sm:$0xff]
      %v187 = vld [vmem:[%s165 + $0x5c] sm:$0xf]
      %v188 = vld [vmem:[%s165 + $0x60] sm:$0xff]
      %v189 = vld [vmem:[%s165 + $0x68] sm:$0xf]
      %v190 = vld [vmem:[%s165 + $0x6c] sm:$0xff]
      %v191 = vld [vmem:[%s165 + $0x74] sm:$0xf]
      %v192 = vld [vmem:[%s165 + $0x78] sm:$0xff]
      %v193 = vld [vmem:[%s165 + $0x80] sm:$0xf]
      %v194 = vld [vmem:[%s165 + $0x84] sm:$0xff]
      %v195 = vld [vmem:[%s165 + $0x8c] sm:$0xf]
      %v196 = vld [vmem:[%s165 + $0x90] sm:$0xff]
      %v197 = vld [vmem:[%s165 + $0x98] sm:$0xf]
      %v198 = vld [vmem:[%s165 + $0x9c] sm:$0xff]
      %v199 = vld [vmem:[%s165 + $0xa4] sm:$0xf]
      %v200 = vld [vmem:[%s165 + $0xa8] sm:$0xff]
      %v201 = vld [vmem:[%s165 + $0xb0] sm:$0xf]
      %v202 = vld [vmem:[%s165 + $0xb4] sm:$0xff]
      %v203 = vld [vmem:[%s165 + $0xbc] sm:$0xf]
      %v204 = vld [vmem:[%s165 + $0xc0] sm:$0xff]
      %v205 = vld [vmem:[%s165 + $0xc8] sm:$0xf]
      %v206 = vld [vmem:[%s165 + $0xcc] sm:$0xff]
      %v207 = vld [vmem:[%s165 + $0xd4] sm:$0xf]
      %v208 = vld [vmem:[%s165 + $0xd8] sm:$0xff]
      %v209 = vld [vmem:[%s165 + $0xe0] sm:$0xf]
      %v210 = vld [vmem:[%s165 + $0xe4] sm:$0xff]
      %v211 = vld [vmem:[%s165 + $0xec] sm:$0xf]
      %v212 = vld [vmem:[%s165 + $0xf0] sm:$0xff]
      %v213 = vld [vmem:[%s165 + $0xf8] sm:$0xf]
      %v214 = vld [vmem:[%s165 + $0xfc] sm:$0xff]
      %v215 = vld [vmem:[%s165 + $0x104] sm:$0xf]
      %v216 = vld [vmem:[%s165 + $0x108] sm:$0xff]
      %v217 = vld [vmem:[%s165 + $0x110] sm:$0xf]
      %v218 = vld [vmem:[%s165 + $0x114] sm:$0xff]
      %v219 = vld [vmem:[%s165 + $0x11c] sm:$0xf]
      %v220 = vld [vmem:[%s165 + $0x120] sm:$0xff]
      %v221 = vld [vmem:[%s165 + $0x128] sm:$0xf]
      %v222 = vld [vmem:[%s165 + $0x12c] sm:$0xff]
      %v223 = vld [vmem:[%s165 + $0x134] sm:$0xf]
      %v224 = vld [vmem:[%s165 + $0x138] sm:$0xff]
      %v225 = vld [vmem:[%s165 + $0x140] sm:$0xf]
      %v226 = vld [vmem:[%s165 + $0x144] sm:$0xff]
      %v227 = vld [vmem:[%s165 + $0x14c] sm:$0xf]
      %v228 = vld [vmem:[%s165 + $0x150] sm:$0xff]
      %v229 = vld [vmem:[%s165 + $0x158] sm:$0xf]
      %v230 = vld [vmem:[%s165 + $0x15c] sm:$0xff]
      %v231 = vld [vmem:[%s165 + $0x164] sm:$0xf]
      %v232 = vld [vmem:[%s165 + $0x168] sm:$0xff]
      %v233 = vld [vmem:[%s165 + $0x170] sm:$0xf]
      %v234 = vld [vmem:[%s165 + $0x174] sm:$0xff]
      %v235 = vld [vmem:[%s165 + $0x17c] sm:$0xf]
      %v236 = vld [vmem:[%s1] sm:$0xf]
      %v237 = vld [vmem:[%s1 + $0x4] sm:$0xf]
      %v238 = vld [vmem:[%s1 + $0x8] sm:$0xf]
      %v239 = vld [vmem:[%s1 + $0xc] sm:$0xf]
      %v240 = vld [vmem:[%s1 + $0x10] sm:$0xf]
      %v241 = vld [vmem:[%s1 + $0x14] sm:$0xf]
      %v242 = vld [vmem:[%s1 + $0x18] sm:$0xf]
      %v243 = vld [vmem:[%s1 + $0x1c] sm:$0xf]
      %v244 = vld [vmem:[%s1 + $0x20] sm:$0xf]
      %v245 = vld [vmem:[%s1 + $0x24] sm:$0xf]
      %v246 = vld [vmem:[%s1 + $0x28] sm:$0xf]
      %v247 = vld [vmem:[%s1 + $0x2c] sm:$0xf]
      %v248 = vld [vmem:[%s1 + $0x30] sm:$0xf]
      %v249 = vld [vmem:[%s1 + $0x34] sm:$0xf]
      %v250 = vld [vmem:[%s1 + $0x38] sm:$0xf]
      %v251 = vld [vmem:[%s1 + $0x3c] sm:$0xf]
      %v252 = vld [vmem:[%s1 + $0x40] sm:$0xf]
      %v253 = vld [vmem:[%s1 + $0x44] sm:$0xf]
      %v254 = vld [vmem:[%s1 + $0x48] sm:$0xf]
      %v255 = vld [vmem:[%s1 + $0x4c] sm:$0xf]
      %v256 = vld [vmem:[%s1 + $0x50] sm:$0xf]
      %v257 = vld [vmem:[%s1 + $0x54] sm:$0xf]
      %v258 = vld [vmem:[%s1 + $0x58] sm:$0xf]
      %v259 = vld [vmem:[%s1 + $0x5c] sm:$0xf]
      %v260 = vld [vmem:[%s1 + $0x60] sm:$0xf]
      %v261 = vld [vmem:[%s1 + $0x64] sm:$0xf]
      %v262 = vld [vmem:[%s1 + $0x68] sm:$0xf]
      %v263 = vld [vmem:[%s1 + $0x6c] sm:$0xf]
      %v264 = vld [vmem:[%s1 + $0x70] sm:$0xf]
      %v265 = vld [vmem:[%s1 + $0x74] sm:$0xf]
      %v266 = vld [vmem:[%s1 + $0x78] sm:$0xf]
      %v267 = vld [vmem:[%s1 + $0x7c] sm:$0xf]
      %v268 = vld [vmem:[%s1 + $0x80] sm:$0xf]
      %v269 = vld [vmem:[%s1 + $0x84] sm:$0xf]
      %v270 = vld [vmem:[%s1 + $0x88] sm:$0xf]
      %v271 = vld [vmem:[%s1 + $0x8c] sm:$0xf]
      %v272 = vld [vmem:[%s2] sm:$0x1]
      %v274 = vlaneseq
      %v275 = vshrl.u32 %v274, 7
      %v276 = vsub.s32 0, %v275
      %v277 = vrot.slane %v272, %v276
      %v343 = vunpack.c.l.b16 %v172
      %v344 = vunpack.c.h.b16 %v172
      %v345 = vunpack.c.l.b16 %v173
      %v346 = vunpack.c.l.b16 %v174
      %v347 = vunpack.c.h.b16 %v174
      %v348 = vunpack.c.l.b16 %v175
      %v349 = vunpack.c.l.b16 %v176
      %v350 = vunpack.c.h.b16 %v176
      %v351 = vunpack.c.l.b16 %v177
      %v352 = vunpack.c.l.b16 %v178
      %v353 = vunpack.c.h.b16 %v178
      %v354 = vunpack.c.l.b16 %v179
      %v355 = vunpack.c.l.b16 %v180
      %v356 = vunpack.c.h.b16 %v180
      %v357 = vunpack.c.l.b16 %v181
      %v358 = vunpack.c.l.b16 %v182
      %v359 = vunpack.c.h.b16 %v182
      %v360 = vunpack.c.l.b16 %v183
      %v361 = vunpack.c.l.b16 %v184
      %v362 = vunpack.c.h.b16 %v184
      %v363 = vunpack.c.l.b16 %v185
      %v364 = vunpack.c.l.b16 %v186
      %v365 = vunpack.c.h.b16 %v186
      %v366 = vunpack.c.l.b16 %v187
      %v367 = vunpack.c.l.b16 %v188
      %v368 = vunpack.c.h.b16 %v188
      %v369 = vunpack.c.l.b16 %v189
      %v370 = vunpack.c.l.b16 %v190
      %v371 = vunpack.c.h.b16 %v190
      %v372 = vunpack.c.l.b16 %v191
      %v373 = vunpack.c.l.b16 %v192
      %v374 = vunpack.c.h.b16 %v192
      %v375 = vunpack.c.l.b16 %v193
      %v376 = vunpack.c.l.b16 %v194
      %v377 = vunpack.c.h.b16 %v194
      %v378 = vunpack.c.l.b16 %v195
      %v379 = vunpack.c.l.b16 %v196
      %v380 = vunpack.c.h.b16 %v196
      %v381 = vunpack.c.l.b16 %v197
      %v382 = vunpack.c.l.b16 %v198
      %v383 = vunpack.c.h.b16 %v198
      %v384 = vunpack.c.l.b16 %v199
      %v385 = vunpack.c.l.b16 %v200
      %v386 = vunpack.c.h.b16 %v200
      %v387 = vunpack.c.l.b16 %v201
      %v388 = vunpack.c.l.b16 %v202
      %v389 = vunpack.c.h.b16 %v202
      %v390 = vunpack.c.l.b16 %v203
      %v391 = vunpack.c.l.b16 %v204
      %v392 = vunpack.c.h.b16 %v204
      %v393 = vunpack.c.l.b16 %v205
      %v394 = vunpack.c.l.b16 %v206
      %v395 = vunpack.c.h.b16 %v206
      %v396 = vunpack.c.l.b16 %v207
      %v397 = vunpack.c.l.b16 %v208
      %v398 = vunpack.c.h.b16 %v208
      %v399 = vunpack.c.l.b16 %v209
      %v400 = vunpack.c.l.b16 %v210
      %v401 = vunpack.c.h.b16 %v210
      %v402 = vunpack.c.l.b16 %v211
      %v403 = vunpack.c.l.b16 %v212
      %v404 = vunpack.c.h.b16 %v212
      %v405 = vunpack.c.l.b16 %v213
      %v406 = vunpack.c.l.b16 %v214
      %v407 = vunpack.c.h.b16 %v214
      %v408 = vunpack.c.l.b16 %v215
      %v409 = vunpack.c.l.b16 %v216
      %v410 = vunpack.c.h.b16 %v216
      %v411 = vunpack.c.l.b16 %v217
      %v412 = vunpack.c.l.b16 %v218
      %v413 = vunpack.c.h.b16 %v218
      %v414 = vunpack.c.l.b16 %v219
      %v415 = vunpack.c.l.b16 %v220
      %v416 = vunpack.c.h.b16 %v220
      %v417 = vunpack.c.l.b16 %v221
      %v418 = vunpack.c.l.b16 %v222
      %v419 = vunpack.c.h.b16 %v222
      %v420 = vunpack.c.l.b16 %v223
      %v421 = vunpack.c.l.b16 %v224
      %v422 = vunpack.c.h.b16 %v224
      %v423 = vunpack.c.l.b16 %v225
      %v424 = vunpack.c.l.b16 %v226
      %v425 = vunpack.c.h.b16 %v226
      %v426 = vunpack.c.l.b16 %v227
      %v427 = vunpack.c.l.b16 %v228
      %v428 = vunpack.c.h.b16 %v228
      %v429 = vunpack.c.l.b16 %v229
      %v430 = vunpack.c.l.b16 %v230
      %v431 = vunpack.c.h.b16 %v230
      %v432 = vunpack.c.l.b16 %v231
      %v433 = vunpack.c.l.b16 %v232
      %v434 = vunpack.c.h.b16 %v232
      %v435 = vunpack.c.l.b16 %v233
      %v436 = vunpack.c.l.b16 %v234
      %v437 = vunpack.c.h.b16 %v234
      %v438 = vunpack.c.l.b16 %v235
      %v439 = vpack.c.b16 %v346, %v343
      %v440 = vpack.c.b16 %v347, %v344
      %v441 = vpack.c.b16 %v348, %v345
      %v442 = vpack.c.b16 %v352, %v349
      %v443 = vpack.c.b16 %v353, %v350
      %v444 = vpack.c.b16 %v354, %v351
      %v445 = vpack.c.b16 %v358, %v355
      %v446 = vpack.c.b16 %v359, %v356
      %v447 = vpack.c.b16 %v360, %v357
      %v448 = vpack.c.b16 %v364, %v361
      %v449 = vpack.c.b16 %v365, %v362
      %v450 = vpack.c.b16 %v366, %v363
      %v451 = vpack.c.b16 %v370, %v367
      %v452 = vpack.c.b16 %v371, %v368
      %v453 = vpack.c.b16 %v372, %v369
      %v454 = vpack.c.b16 %v376, %v373
      %v455 = vpack.c.b16 %v377, %v374
      %v456 = vpack.c.b16 %v378, %v375
      %v457 = vpack.c.b16 %v382, %v379
      %v458 = vpack.c.b16 %v383, %v380
      %v459 = vpack.c.b16 %v384, %v381
      %v460 = vpack.c.b16 %v388, %v385
      %v461 = vpack.c.b16 %v389, %v386
      %v462 = vpack.c.b16 %v390, %v387
      %v463 = vpack.c.b16 %v394, %v391
      %v464 = vpack.c.b16 %v395, %v392
      %v465 = vpack.c.b16 %v396, %v393
      %v466 = vpack.c.b16 %v400, %v397
      %v467 = vpack.c.b16 %v401, %v398
      %v468 = vpack.c.b16 %v402, %v399
      %v469 = vpack.c.b16 %v406, %v403
      %v470 = vpack.c.b16 %v407, %v404
      %v471 = vpack.c.b16 %v408, %v405
      %v472 = vpack.c.b16 %v412, %v409
      %v473 = vpack.c.b16 %v413, %v410
      %v474 = vpack.c.b16 %v414, %v411
      %v475 = vpack.c.b16 %v418, %v415
      %v476 = vpack.c.b16 %v419, %v416
      %v477 = vpack.c.b16 %v420, %v417
      %v478 = vpack.c.b16 %v424, %v421
      %v479 = vpack.c.b16 %v425, %v422
      %v480 = vpack.c.b16 %v426, %v423
      %v481 = vpack.c.b16 %v430, %v427
      %v482 = vpack.c.b16 %v431, %v428
      %v483 = vpack.c.b16 %v432, %v429
      %v484 = vpack.c.b16 %v436, %v433
      %v485 = vpack.c.b16 %v437, %v434
      %v486 = vpack.c.b16 %v438, %v435
      %v555 = vunpack.c.l.b16 %v236
      %v556 = vunpack.c.l.b16 %v237
      %v557 = vunpack.c.l.b16 %v238
      %v558 = vunpack.c.l.b16 %v239
      %v559 = vunpack.c.l.b16 %v240
      %v560 = vunpack.c.l.b16 %v241
      %v561 = vunpack.c.l.b16 %v242
      %v562 = vunpack.c.l.b16 %v243
      %v563 = vunpack.c.l.b16 %v244
      %v564 = vunpack.c.l.b16 %v245
      %v565 = vunpack.c.l.b16 %v246
      %v566 = vunpack.c.l.b16 %v247
      %v567 = vunpack.c.l.b16 %v248
      %v568 = vunpack.c.l.b16 %v249
      %v569 = vunpack.c.l.b16 %v250
      %v570 = vunpack.c.l.b16 %v251
      %v571 = vunpack.c.l.b16 %v252
      %v572 = vunpack.c.l.b16 %v253
      %v573 = vunpack.c.l.b16 %v254
      %v574 = vunpack.c.l.b16 %v255
      %v575 = vunpack.c.l.b16 %v256
      %v576 = vunpack.c.l.b16 %v257
      %v577 = vunpack.c.l.b16 %v258
      %v578 = vunpack.c.l.b16 %v259
      %v579 = vunpack.c.l.b16 %v260
      %v580 = vunpack.c.l.b16 %v261
      %v581 = vunpack.c.l.b16 %v262
      %v582 = vunpack.c.l.b16 %v263
      %v583 = vunpack.c.l.b16 %v264
      %v584 = vunpack.c.l.b16 %v265
      %v585 = vunpack.c.l.b16 %v266
      %v586 = vunpack.c.l.b16 %v267
      %v587 = vunpack.c.l.b16 %v268
      %v588 = vunpack.c.l.b16 %v269
      %v589 = vunpack.c.l.b16 %v270
      %v590 = vunpack.c.l.b16 %v271
      %v591 = vpack.c.b16 %v556, %v555
      %v592 = vpack.c.b16 %v558, %v557
      %v593 = vpack.c.b16 %v560, %v559
      %v594 = vpack.c.b16 %v562, %v561
      %v595 = vpack.c.b16 %v564, %v563
      %v596 = vpack.c.b16 %v566, %v565
      %v597 = vpack.c.b16 %v568, %v567
      %v598 = vpack.c.b16 %v570, %v569
      %v599 = vpack.c.b16 %v572, %v571
      %v600 = vpack.c.b16 %v574, %v573
      %v601 = vpack.c.b16 %v576, %v575
      %v602 = vpack.c.b16 %v578, %v577
      %v603 = vpack.c.b16 %v580, %v579
      %v604 = vpack.c.b16 %v582, %v581
      %v605 = vpack.c.b16 %v584, %v583
      %v606 = vpack.c.b16 %v586, %v585
      %v607 = vpack.c.b16 %v588, %v587
      %v608 = vpack.c.b16 %v590, %v589
      %vm627 = vcmask 261120
      %v629 = vsel %vm627, %v441, 0
      %v632 = vsel %vm627, %v444, 0
      %v635 = vsel %vm627, %v447, 0
      %v638 = vsel %vm627, %v450, 0
      %v641 = vsel %vm627, %v453, 0
      %v644 = vsel %vm627, %v456, 0
      %v647 = vsel %vm627, %v459, 0
      %v650 = vsel %vm627, %v462, 0
      %v653 = vsel %vm627, %v465, 0
      %v656 = vsel %vm627, %v468, 0
      %v659 = vsel %vm627, %v471, 0
      %v662 = vsel %vm627, %v474, 0
      %v665 = vsel %vm627, %v477, 0
      %v668 = vsel %vm627, %v480, 0
      %v671 = vsel %vm627, %v483, 0
      %v674 = vsel %vm627, %v486, 0
      %676 = vmatprep.subr.bf16.mxu0 0
      %677 = vmatpush1.bf16.msra.mxu0 %v598
      %678 = vmatprep.subr.bf16.mxu0 0
      %679 = vmatpush1.bf16.msra.mxu0 %v597
      %680 = vmatprep.subr.bf16.mxu0 0
      %681 = vmatpush1.bf16.msra.mxu0 %v596
      %682 = vmatprep.subr.bf16.mxu0 0
      %683 = vmatpush1.bf16.msra.mxu0 %v595
      %684 = vmatprep.subr.bf16.mxu0 0
      %685 = vmatpush1.bf16.msra.mxu0 %v594
      %686 = vmatprep.subr.bf16.mxu0 0
      %687 = vmatpush1.bf16.msra.mxu0 %v593
      %688 = vmatprep.subr.bf16.mxu0 0
      %689 = vmatpush1.bf16.msra.mxu0 %v592
      %690 = vmatprep.subr.bf16.mxu0 0
      %691 = vmatpush1.bf16.msra.mxu0 %v591
      %692 = vmatprep.subr.bf16.mxu0 0
      %693 = vmatpush2.bf16.msra.mxu0 %v606
      %694 = vmatprep.subr.bf16.mxu0 0
      %695 = vmatpush2.bf16.msra.mxu0 %v605
      %696 = vmatprep.subr.bf16.mxu0 0
      %697 = vmatpush2.bf16.msra.mxu0 %v604
      %698 = vmatprep.subr.bf16.mxu0 0
      %699 = vmatpush2.bf16.msra.mxu0 %v603
      %700 = vmatprep.subr.bf16.mxu0 0
      %701 = vmatpush2.bf16.msra.mxu0 %v602
      %702 = vmatprep.subr.bf16.mxu0 0
      %703 = vmatpush2.bf16.msra.mxu0 %v601
      %704 = vmatprep.subr.bf16.mxu0 0
      %705 = vmatpush2.bf16.msra.mxu0 %v600
      %706 = vmatprep.subr.bf16.mxu0 0
      %707 = vmatpush2.bf16.msra.mxu0 %v599
      %708 = vmatprep.mubr.bf16.mxu0 %v440
      %709 = vmatmul.mubr.bf16.gmra.mxu0 %v439
      %v710 = vpop.f32.mrf.mxu0
      %v711 = vadd.f32 %v277, %v710
      %v712 = vpop.f32.mrf.mxu0
      %v713 = vpop.f32.mrf.mxu0
      %v714 = vadd.f32 %v277, %v713
      %v715 = vpop.f32.mrf.mxu0
      %716 = vmatprep.mubr.bf16.mxu0 %v443
      %717 = vmatmul.mubr.bf16.gmra.mxu0 %v442
      %v718 = vpop.f32.mrf.mxu0
      %v719 = vadd.f32 %v277, %v718
      %v720 = vpop.f32.mrf.mxu0
      %v721 = vpop.f32.mrf.mxu0
      %v722 = vadd.f32 %v277, %v721
      %v723 = vpop.f32.mrf.mxu0
      %724 = vmatprep.mubr.bf16.mxu0 %v446
      %725 = vmatmul.mubr.bf16.gmra.mxu0 %v445
      %v726 = vpop.f32.mrf.mxu0
      %v727 = vadd.f32 %v277, %v726
      %v728 = vpop.f32.mrf.mxu0
      %v729 = vpop.f32.mrf.mxu0
      %v730 = vadd.f32 %v277, %v729
      %v731 = vpop.f32.mrf.mxu0
      %732 = vmatprep.mubr.bf16.mxu0 %v449
      %733 = vmatmul.mubr.bf16.gmra.mxu0 %v448
      %v734 = vpop.f32.mrf.mxu0
      %v735 = vadd.f32 %v277, %v734
      %v736 = vpop.f32.mrf.mxu0
      %v737 = vpop.f32.mrf.mxu0
      %v738 = vadd.f32 %v277, %v737
      %v739 = vpop.f32.mrf.mxu0
      %740 = vmatprep.mubr.bf16.mxu0 %v452
      %741 = vmatmul.mubr.bf16.gmra.mxu0 %v451
      %v742 = vpop.f32.mrf.mxu0
      %v743 = vadd.f32 %v277, %v742
      %v744 = vpop.f32.mrf.mxu0
      %v745 = vpop.f32.mrf.mxu0
      %v746 = vadd.f32 %v277, %v745
      %v747 = vpop.f32.mrf.mxu0
      %748 = vmatprep.mubr.bf16.mxu0 %v455
      %749 = vmatmul.mubr.bf16.gmra.mxu0 %v454
      %v750 = vpop.f32.mrf.mxu0
      %v751 = vadd.f32 %v277, %v750
      %v752 = vpop.f32.mrf.mxu0
      %v753 = vpop.f32.mrf.mxu0
      %v754 = vadd.f32 %v277, %v753
      %v755 = vpop.f32.mrf.mxu0
      %756 = vmatprep.mubr.bf16.mxu0 %v458
      %757 = vmatmul.mubr.bf16.gmra.mxu0 %v457
      %v758 = vpop.f32.mrf.mxu0
      %v759 = vadd.f32 %v277, %v758
      %v760 = vpop.f32.mrf.mxu0
      %v761 = vpop.f32.mrf.mxu0
      %v762 = vadd.f32 %v277, %v761
      %v763 = vpop.f32.mrf.mxu0
      %764 = vmatprep.mubr.bf16.mxu0 %v461
      %765 = vmatmul.mubr.bf16.gmra.mxu0 %v460
      %v766 = vpop.f32.mrf.mxu0
      %v767 = vadd.f32 %v277, %v766
      %v768 = vpop.f32.mrf.mxu0
      %v769 = vpop.f32.mrf.mxu0
      %v770 = vadd.f32 %v277, %v769
      %v771 = vpop.f32.mrf.mxu0
      %772 = vmatprep.mubr.bf16.mxu0 %v464
      %773 = vmatmul.mubr.bf16.gmra.mxu0 %v463
      %v774 = vpop.f32.mrf.mxu0
      %v775 = vadd.f32 %v277, %v774
      %v776 = vpop.f32.mrf.mxu0
      %v777 = vpop.f32.mrf.mxu0
      %v778 = vadd.f32 %v277, %v777
      %v779 = vpop.f32.mrf.mxu0
      %780 = vmatprep.mubr.bf16.mxu0 %v467
      %781 = vmatmul.mubr.bf16.gmra.mxu0 %v466
      %v782 = vpop.f32.mrf.mxu0
      %v783 = vadd.f32 %v277, %v782
      %v784 = vpop.f32.mrf.mxu0
      %v785 = vpop.f32.mrf.mxu0
      %v786 = vadd.f32 %v277, %v785
      %v787 = vpop.f32.mrf.mxu0
      %788 = vmatprep.mubr.bf16.mxu0 %v470
      %789 = vmatmul.mubr.bf16.gmra.mxu0 %v469
      %v790 = vpop.f32.mrf.mxu0
      %v791 = vadd.f32 %v277, %v790
      %v792 = vpop.f32.mrf.mxu0
      %v793 = vpop.f32.mrf.mxu0
      %v794 = vadd.f32 %v277, %v793
      %v795 = vpop.f32.mrf.mxu0
      %796 = vmatprep.mubr.bf16.mxu0 %v473
      %797 = vmatmul.mubr.bf16.gmra.mxu0 %v472
      %v798 = vpop.f32.mrf.mxu0
      %v799 = vadd.f32 %v277, %v798
      %v800 = vpop.f32.mrf.mxu0
      %v801 = vpop.f32.mrf.mxu0
      %v802 = vadd.f32 %v277, %v801
      %v803 = vpop.f32.mrf.mxu0
      %804 = vmatprep.mubr.bf16.mxu0 %v476
      %805 = vmatmul.mubr.bf16.gmra.mxu0 %v475
      %v806 = vpop.f32.mrf.mxu0
      %v807 = vadd.f32 %v277, %v806
      %v808 = vpop.f32.mrf.mxu0
      %v809 = vpop.f32.mrf.mxu0
      %v810 = vadd.f32 %v277, %v809
      %v811 = vpop.f32.mrf.mxu0
      %812 = vmatprep.mubr.bf16.mxu0 %v479
      %813 = vmatmul.mubr.bf16.gmra.mxu0 %v478
      %v814 = vpop.f32.mrf.mxu0
      %v815 = vadd.f32 %v277, %v814
      %v816 = vpop.f32.mrf.mxu0
      %v817 = vpop.f32.mrf.mxu0
      %v818 = vadd.f32 %v277, %v817
      %v819 = vpop.f32.mrf.mxu0
      %820 = vmatprep.mubr.bf16.mxu0 %v482
      %821 = vmatmul.mubr.bf16.gmra.mxu0 %v481
      %v822 = vpop.f32.mrf.mxu0
      %v823 = vadd.f32 %v277, %v822
      %v824 = vpop.f32.mrf.mxu0
      %v825 = vpop.f32.mrf.mxu0
      %v826 = vadd.f32 %v277, %v825
      %v827 = vpop.f32.mrf.mxu0
      %828 = vmatprep.mubr.bf16.mxu0 %v485
      %829 = vmatmul.mubr.bf16.gmra.mxu0 %v484
      %v830 = vpop.f32.mrf.mxu0
      %v831 = vadd.f32 %v277, %v830
      %v832 = vpop.f32.mrf.mxu0
      %v833 = vpop.f32.mrf.mxu0
      %v834 = vadd.f32 %v277, %v833
      %v835 = vpop.f32.mrf.mxu0
      %836 = vdwg.mxu0
      %837 = vmatprep.subr.bf16.mxu0 0
      %838 = vmatpush1.bf16.msra.mxu0 0
      %839 = vmatprep.subr.bf16.mxu0 0
      %840 = vmatpush1.bf16.msra.mxu0 0
      %841 = vmatprep.subr.bf16.mxu0 0
      %842 = vmatpush1.bf16.msra.mxu0 0
      %843 = vmatprep.subr.bf16.mxu0 0
      %844 = vmatpush1.bf16.msra.mxu0 0
      %845 = vmatprep.subr.bf16.mxu0 0
      %846 = vmatpush1.bf16.msra.mxu0 0
      %847 = vmatprep.subr.bf16.mxu0 0
      %848 = vmatpush1.bf16.msra.mxu0 0
      %849 = vmatprep.subr.bf16.mxu0 0
      %850 = vmatpush1.bf16.msra.mxu0 %v608
      %851 = vmatprep.subr.bf16.mxu0 0
      %852 = vmatpush1.bf16.msra.mxu0 %v607
      %853 = vmatprep.subr.bf16.mxu0 0
      %854 = vmatpush2.bf16.msra.mxu0 0
      %855 = vmatprep.subr.bf16.mxu0 0
      %856 = vmatpush2.bf16.msra.mxu0 0
      %857 = vmatprep.subr.bf16.mxu0 0
      %858 = vmatpush2.bf16.msra.mxu0 0
      %859 = vmatprep.subr.bf16.mxu0 0
      %860 = vmatpush2.bf16.msra.mxu0 0
      %861 = vmatprep.subr.bf16.mxu0 0
      %862 = vmatpush2.bf16.msra.mxu0 0
      %863 = vmatprep.subr.bf16.mxu0 0
      %864 = vmatpush2.bf16.msra.mxu0 0
      %865 = vmatprep.subr.bf16.mxu0 0
      %866 = vmatpush2.bf16.msra.mxu0 0
      %867 = vmatprep.subr.bf16.mxu0 0
      %868 = vmatpush2.bf16.msra.mxu0 0
      %869 = vmatprep.mubr.bf16.mxu0 0
      %870 = vmatmul.mubr.bf16.gmra.mxu0 %v629
      %v871 = vpop.f32.mrf.mxu0
      %v872 = vadd.f32 %v711, %v871
      %v873 = vpop.f32.mrf.mxu0
      %v874 = vpop.f32.mrf.mxu0
      %v875 = vadd.f32 %v714, %v874
      %v876 = vpop.f32.mrf.mxu0
      %877 = vmatprep.mubr.bf16.mxu0 0
      %878 = vmatmul.mubr.bf16.gmra.mxu0 %v632
      %v879 = vpop.f32.mrf.mxu0
      %v880 = vadd.f32 %v719, %v879
      %v881 = vpop.f32.mrf.mxu0
      %v882 = vpop.f32.mrf.mxu0
      %v883 = vadd.f32 %v722, %v882
      %v884 = vpop.f32.mrf.mxu0
      %885 = vmatprep.mubr.bf16.mxu0 0
      %886 = vmatmul.mubr.bf16.gmra.mxu0 %v635
      %v887 = vpop.f32.mrf.mxu0
      %v888 = vadd.f32 %v727, %v887
      %v889 = vpop.f32.mrf.mxu0
      %v890 = vpop.f32.mrf.mxu0
      %v891 = vadd.f32 %v730, %v890
      %v892 = vpop.f32.mrf.mxu0
      %893 = vmatprep.mubr.bf16.mxu0 0
      %894 = vmatmul.mubr.bf16.gmra.mxu0 %v638
      %v895 = vpop.f32.mrf.mxu0
      %v896 = vadd.f32 %v735, %v895
      %v897 = vpop.f32.mrf.mxu0
      %v898 = vpop.f32.mrf.mxu0
      %v899 = vadd.f32 %v738, %v898
      %v900 = vpop.f32.mrf.mxu0
      %901 = vmatprep.mubr.bf16.mxu0 0
      %902 = vmatmul.mubr.bf16.gmra.mxu0 %v641
      %v903 = vpop.f32.mrf.mxu0
      %v904 = vadd.f32 %v743, %v903
      %v905 = vpop.f32.mrf.mxu0
      %v906 = vpop.f32.mrf.mxu0
      %v907 = vadd.f32 %v746, %v906
      %v908 = vpop.f32.mrf.mxu0
      %909 = vmatprep.mubr.bf16.mxu0 0
      %910 = vmatmul.mubr.bf16.gmra.mxu0 %v644
      %v911 = vpop.f32.mrf.mxu0
      %v912 = vadd.f32 %v751, %v911
      %v913 = vpop.f32.mrf.mxu0
      %v914 = vpop.f32.mrf.mxu0
      %v915 = vadd.f32 %v754, %v914
      %v916 = vpop.f32.mrf.mxu0
      %917 = vmatprep.mubr.bf16.mxu0 0
      %918 = vmatmul.mubr.bf16.gmra.mxu0 %v647
      %v919 = vpop.f32.mrf.mxu0
      %v920 = vadd.f32 %v759, %v919
      %v921 = vpop.f32.mrf.mxu0
      %v922 = vpop.f32.mrf.mxu0
      %v923 = vadd.f32 %v762, %v922
      %v924 = vpop.f32.mrf.mxu0
      %925 = vmatprep.mubr.bf16.mxu0 0
      %926 = vmatmul.mubr.bf16.gmra.mxu0 %v650
      %v927 = vpop.f32.mrf.mxu0
      %v928 = vadd.f32 %v767, %v927
      %v929 = vpop.f32.mrf.mxu0
      %v930 = vpop.f32.mrf.mxu0
      %v931 = vadd.f32 %v770, %v930
      %v932 = vpop.f32.mrf.mxu0
      %933 = vmatprep.mubr.bf16.mxu0 0
      %934 = vmatmul.mubr.bf16.gmra.mxu0 %v653
      %v935 = vpop.f32.mrf.mxu0
      %v936 = vadd.f32 %v775, %v935
      %v937 = vpop.f32.mrf.mxu0
      %v938 = vpop.f32.mrf.mxu0
      %v939 = vadd.f32 %v778, %v938
      %v940 = vpop.f32.mrf.mxu0
      %941 = vmatprep.mubr.bf16.mxu0 0
      %942 = vmatmul.mubr.bf16.gmra.mxu0 %v656
      %v943 = vpop.f32.mrf.mxu0
      %v944 = vadd.f32 %v783, %v943
      %v945 = vpop.f32.mrf.mxu0
      %v946 = vpop.f32.mrf.mxu0
      %v947 = vadd.f32 %v786, %v946
      %v948 = vpop.f32.mrf.mxu0
      %949 = vmatprep.mubr.bf16.mxu0 0
      %950 = vmatmul.mubr.bf16.gmra.mxu0 %v659
      %v951 = vpop.f32.mrf.mxu0
      %v952 = vadd.f32 %v791, %v951
      %v953 = vpop.f32.mrf.mxu0
      %v954 = vpop.f32.mrf.mxu0
      %v955 = vadd.f32 %v794, %v954
      %v956 = vpop.f32.mrf.mxu0
      %957 = vmatprep.mubr.bf16.mxu0 0
      %958 = vmatmul.mubr.bf16.gmra.mxu0 %v662
      %v959 = vpop.f32.mrf.mxu0
      %v960 = vadd.f32 %v799, %v959
      %v961 = vpop.f32.mrf.mxu0
      %v962 = vpop.f32.mrf.mxu0
      %v963 = vadd.f32 %v802, %v962
      %v964 = vpop.f32.mrf.mxu0
      %965 = vmatprep.mubr.bf16.mxu0 0
      %966 = vmatmul.mubr.bf16.gmra.mxu0 %v665
      %v967 = vpop.f32.mrf.mxu0
      %v968 = vadd.f32 %v807, %v967
      %v969 = vpop.f32.mrf.mxu0
      %v970 = vpop.f32.mrf.mxu0
      %v971 = vadd.f32 %v810, %v970
      %v972 = vpop.f32.mrf.mxu0
      %973 = vmatprep.mubr.bf16.mxu0 0
      %974 = vmatmul.mubr.bf16.gmra.mxu0 %v668
      %v975 = vpop.f32.mrf.mxu0
      %v976 = vadd.f32 %v815, %v975
      %v977 = vpop.f32.mrf.mxu0
      %v978 = vpop.f32.mrf.mxu0
      %v979 = vadd.f32 %v818, %v978
      %v980 = vpop.f32.mrf.mxu0
      %981 = vmatprep.mubr.bf16.mxu0 0
      %982 = vmatmul.mubr.bf16.gmra.mxu0 %v671
      %v983 = vpop.f32.mrf.mxu0
      %v984 = vadd.f32 %v823, %v983
      %v985 = vpop.f32.mrf.mxu0
      %v986 = vpop.f32.mrf.mxu0
      %v987 = vadd.f32 %v826, %v986
      %v988 = vpop.f32.mrf.mxu0
      %989 = vmatprep.mubr.bf16.mxu0 0
      %990 = vmatmul.mubr.bf16.gmra.mxu0 %v674
      %v991 = vpop.f32.mrf.mxu0
      %v992 = vadd.f32 %v831, %v991
      %v993 = vpop.f32.mrf.mxu0
      %v994 = vpop.f32.mrf.mxu0
      %v995 = vadd.f32 %v834, %v994
      %v996 = vpop.f32.mrf.mxu0
      %997 = vdwg.mxu0
      %v998 = vmax.f32 %v872, 0.0
      %v999 = vmax.f32 %v875, 0.0
      %v1000 = vmax.f32 %v880, 0.0
      %v1001 = vmax.f32 %v883, 0.0
      %v1002 = vmax.f32 %v888, 0.0
      %v1003 = vmax.f32 %v891, 0.0
      %v1004 = vmax.f32 %v896, 0.0
      %v1005 = vmax.f32 %v899, 0.0
      %v1006 = vmax.f32 %v904, 0.0
      %v1007 = vmax.f32 %v907, 0.0
      %v1008 = vmax.f32 %v912, 0.0
      %v1009 = vmax.f32 %v915, 0.0
      %v1010 = vmax.f32 %v920, 0.0
      %v1011 = vmax.f32 %v923, 0.0
      %v1012 = vmax.f32 %v928, 0.0
      %v1013 = vmax.f32 %v931, 0.0
      %v1014 = vmax.f32 %v936, 0.0
      %v1015 = vmax.f32 %v939, 0.0
      %v1016 = vmax.f32 %v944, 0.0
      %v1017 = vmax.f32 %v947, 0.0
      %v1018 = vmax.f32 %v952, 0.0
      %v1019 = vmax.f32 %v955, 0.0
      %v1020 = vmax.f32 %v960, 0.0
      %v1021 = vmax.f32 %v963, 0.0
      %v1022 = vmax.f32 %v968, 0.0
      %v1023 = vmax.f32 %v971, 0.0
      %v1024 = vmax.f32 %v976, 0.0
      %v1025 = vmax.f32 %v979, 0.0
      %v1026 = vmax.f32 %v984, 0.0
      %v1027 = vmax.f32 %v987, 0.0
      %v1028 = vmax.f32 %v992, 0.0
      %v1029 = vmax.f32 %v995, 0.0
      %v1030 = vmax.f32 %v998, %v1006
      %v1031 = vmax.f32 %v999, %v1007
      %v1032 = vmax.f32 %v1000, %v1008
      %v1033 = vmax.f32 %v1001, %v1009
      %v1034 = vmax.f32 %v1002, %v1010
      %v1035 = vmax.f32 %v1003, %v1011
      %v1036 = vmax.f32 %v1004, %v1012
      %v1037 = vmax.f32 %v1005, %v1013
      %v1038 = vmax.f32 %v1014, %v1022
      %v1039 = vmax.f32 %v1015, %v1023
      %v1040 = vmax.f32 %v1016, %v1024
      %v1041 = vmax.f32 %v1017, %v1025
      %v1042 = vmax.f32 %v1018, %v1026
      %v1043 = vmax.f32 %v1019, %v1027
      %v1044 = vmax.f32 %v1020, %v1028
      %v1045 = vmax.f32 %v1021, %v1029
      %v1046 = vmax.f32 %v1030, %v1038
      %v1047 = vmax.f32 %v1031, %v1039
      %v1048 = vmax.f32 %v1032, %v1040
      %v1049 = vmax.f32 %v1033, %v1041
      %v1050 = vmax.f32 %v1034, %v1042
      %v1051 = vmax.f32 %v1035, %v1043
      %v1052 = vmax.f32 %v1036, %v1044
      %v1053 = vmax.f32 %v1037, %v1045
      %v1054 = vpack.c.bf16 %v1047, %v1046
      %v1055 = vpack.c.bf16 %v1049, %v1048
      %v1056 = vpack.c.bf16 %v1051, %v1050
      %v1057 = vpack.c.bf16 %v1053, %v1052
      %v1062 = vunpack.c.l.b16 %v1054
      %v1063 = vunpack.c.h.b16 %v1054
      %v1064 = vunpack.c.l.b16 %v1055
      %v1065 = vunpack.c.h.b16 %v1055
      %v1066 = vunpack.c.l.b16 %v1056
      %v1067 = vunpack.c.h.b16 %v1056
      %v1068 = vunpack.c.l.b16 %v1057
      %v1069 = vunpack.c.h.b16 %v1057
      %v1070 = vpack.c.b16 %v1062, %v1062
      %v1071 = vpack.c.b16 %v1063, %v1063
      %v1072 = vpack.c.b16 %v1064, %v1064
      %v1073 = vpack.c.b16 %v1065, %v1065
      %v1074 = vpack.c.b16 %v1066, %v1066
      %v1075 = vpack.c.b16 %v1067, %v1067
      %v1076 = vpack.c.b16 %v1068, %v1068
      %v1077 = vpack.c.b16 %v1069, %v1069
      %vm1086 = vcmask 519168
      %1087 = vst.msk [vmem:[%s170] sm:$0xf] %vm1086, %v1070
      %1088 = vst.msk [vmem:[%s170 + $0x4] sm:$0xf] %vm1086, %v1071
      %1089 = vst.msk [vmem:[%s170 + $0x8] sm:$0xf] %vm1086, %v1072
      %1090 = vst.msk [vmem:[%s170 + $0xc] sm:$0xf] %vm1086, %v1073
      %1091 = vst.msk [vmem:[%s170 + $0x10] sm:$0xf] %vm1086, %v1074
      %1092 = vst.msk [vmem:[%s170 + $0x14] sm:$0xf] %vm1086, %v1075
      %1093 = vst.msk [vmem:[%s170 + $0x18] sm:$0xf] %vm1086, %v1076
      %1094 = vst.msk [vmem:[%s170 + $0x1c] sm:$0xf] %vm1086, %v1077
      %p1095 = scmp.lt.s32.totalorder %s14, 1
      %s1096 = scalar_select %p1095, %s14, 1
      %s1097 = smul.addr %s1096, 8
      %s1098 = smul.addr %s1097, 4
      %s1099 = scalar_lea.vmem %s3, %s1098
      // Predicated region
      $region33: #{simple_cnn_forward.4} parent=31 // pred_check
        %p1100 = pneg %p100
      $region34: #{simple_cnn_forward.4} parent=31 // pred_check_branch
        %1102 = sbr.rel (%p1100) target = $region36
      $region35: #{simple_cnn_forward.4} parent=31 // pred_region
        _
      $region36: #{simple_cnn_forward.4} parent=31 // pred_fallthru
        _
    $region32: #{simple_cnn_forward.4} parent=5 // pred_fallthru
      _
    %p1103 = scmp.le.s32.totalorder 2, %s9
    // Predicated region
    $region37: #{simple_cnn_forward.4} parent=5 // pred_check
      %p1104 = pneg %p1103
    $region38: #{simple_cnn_forward.4} parent=5 // pred_check_branch
      %1106 = sbr.rel (%p1104) target = $region40
    $region39: #{simple_cnn_forward.4} parent=5 // pred_region
      %s1107 = ssub.s32 %s9, 2
      // Predicated region
      $region41: #{simple_cnn_forward.4} parent=39 // pred_check
        %p1108 = pneg %p106
      $region42: #{simple_cnn_forward.4} parent=39 // pred_check_branch
        %1110 = sbr.rel (%p1108) target = $region44
      $region43: #{simple_cnn_forward.4} parent=39 // pred_region
        %p1111 = scmp.lt.s32.totalorder %s15, 1
        %s1112 = scalar_select %p1111, %s15, 1
        %s1113 = smul.addr %s1112, 8
        %s1114 = smul.addr %s1113, 4
        %s1115 = scalar_lea.vmem %s3, %s1114
      $region44: #{simple_cnn_forward.4} parent=39 // pred_fallthru
        _
    $region40: #{simple_cnn_forward.4} parent=5 // pred_fallthru
      _
  $region6: #{simple_cnn_forward.4} parent=0 // loop_footer
    %s13 = sadd.s32 1, %s9
  $region7: #{simple_cnn_forward.4} parent=0 // loop_footer_branch
    %8 = sbr.rel target = $region3
  $region8: #{simple_cnn_forward.4} parent=0 // loop_exit
    _

// kernel: simple_cnn_forward.5
$region0: #{simple_cnn_forward.5}
  #allocation0 [shape = 'u32[]', space=smem, size = 0x4, offset = 0x4, fixed_abs, tag = 'smem constant byte address 0x4 - core index']
  #allocation1 [shape = 'u32[144,128]{1,0:T(1,128)}', space=vmem, size = 0x12000, scoped, tag = 'internal scratch']
  %s0 = inlined_call_operand.vmem [shape: bf16[2,4096], index: 0, kind: input, shape index: {}]
  %s1 = inlined_call_operand.vmem [shape: bf16[4096,128], index: 1, kind: input, shape index: {}]
  %s2 = inlined_call_operand.vmem [shape: f32[1,128], index: 2, kind: input, shape index: {}]
  %s3 = inlined_call_operand.vmem [shape: bf16[128,10], index: 3, kind: input, shape index: {}]
  %s4 = inlined_call_operand.vmem [shape: f32[1,10], index: 4, kind: input, shape index: {}]
  %s5 = inlined_call_operand.hbm [shape: f32[2,10], index: 5, kind: output, shape index: {}]
  %s6 = sld [smem:[#allocation0]]
  $region30: #{simple_cnn_forward.5} parent=0
    _
  %s8 = ssub.s32 1, %s6
  %s9 = scalar_select 0, %s8, %s6
  $region1: #{simple_cnn_forward.5} parent=0
    #allocation2 [shape = 'u8[1024]{0}', space=vmem, size = 0x400, scoped, tag = 'output window, operand 0, single buffered']
    #allocation3 [shape = 's32[1]{0}', space=sflag, size = 0x4, scoped, tag = 'scoped memory for simple_cnn_forward.5']
    %10 = vsyncpa [#allocation3], 0
    // Predicated region
    $region2: #{simple_cnn_forward.5} parent=1 // pred_check
      _
    $region3: #{simple_cnn_forward.5} parent=1 // pred_check_branch
      %12 = sbr.rel (0) target = $region5
    $region4: #{simple_cnn_forward.5} parent=1 // pred_region
      _
    $region5: #{simple_cnn_forward.5} parent=1 // pred_fallthru
      _
    // Predicated region
    $region6: #{simple_cnn_forward.5} parent=1 // pred_check
      _
    $region7: #{simple_cnn_forward.5} parent=1 // pred_check_branch
      %14 = sbr.rel (0) target = $region9
    $region8: #{simple_cnn_forward.5} parent=1 // pred_region
      _
    $region9: #{simple_cnn_forward.5} parent=1 // pred_fallthru
      _
    // Predicated region
    $region10: #{simple_cnn_forward.5} parent=1 // pred_check
      _
    $region11: #{simple_cnn_forward.5} parent=1 // pred_check_branch
      %16 = sbr.rel (0) target = $region13
    $region12: #{simple_cnn_forward.5} parent=1 // pred_region
      _
    $region13: #{simple_cnn_forward.5} parent=1 // pred_fallthru
      _
    // Predicated region
    $region14: #{simple_cnn_forward.5} parent=1 // pred_check
      _
    $region15: #{simple_cnn_forward.5} parent=1 // pred_check_branch
      %18 = sbr.rel (0) target = $region17
    $region16: #{simple_cnn_forward.5} parent=1 // pred_region
      _
    $region17: #{simple_cnn_forward.5} parent=1 // pred_fallthru
      _
    // Predicated region
    $region18: #{simple_cnn_forward.5} parent=1 // pred_check
      _
    $region19: #{simple_cnn_forward.5} parent=1 // pred_check_branch
      %20 = sbr.rel (0) target = $region21
    $region20: #{simple_cnn_forward.5} parent=1 // pred_region
      _
    $region21: #{simple_cnn_forward.5} parent=1 // pred_fallthru
      _
    %v22 = vld [vmem:[%s0] sm:$0xff]
    %v23 = vld [vmem:[%s0 + $0x8] sm:$0xff]
    %v24 = vld [vmem:[%s0 + $0x10] sm:$0xff]
    %v25 = vld [vmem:[%s0 + $0x18] sm:$0xff]
    %v26 = vld [vmem:[%s1] sm:$0xf]
    %v27 = vld [vmem:[%s1 + $0x4] sm:$0xf]
    %v28 = vld [vmem:[%s1 + $0x8] sm:$0xf]
    %v29 = vld [vmem:[%s1 + $0xc] sm:$0xf]
    %v30 = vld [vmem:[%s1 + $0x10] sm:$0xf]
    %v31 = vld [vmem:[%s1 + $0x14] sm:$0xf]
    %v32 = vld [vmem:[%s1 + $0x18] sm:$0xf]
    %v33 = vld [vmem:[%s1 + $0x1c] sm:$0xf]
    %v34 = vld [vmem:[%s1 + $0x20] sm:$0xf]
    %v35 = vld [vmem:[%s1 + $0x24] sm:$0xf]
    %v36 = vld [vmem:[%s1 + $0x28] sm:$0xf]
    %v37 = vld [vmem:[%s1 + $0x2c] sm:$0xf]
    %v38 = vld [vmem:[%s1 + $0x30] sm:$0xf]
    %v39 = vld [vmem:[%s1 + $0x34] sm:$0xf]
    %v40 = vld [vmem:[%s1 + $0x38] sm:$0xf]
    %v41 = vld [vmem:[%s1 + $0x3c] sm:$0xf]
    %v42 = vld [vmem:[%s1 + $0x40] sm:$0xf]
    %v43 = vld [vmem:[%s1 + $0x44] sm:$0xf]
    %v44 = vld [vmem:[%s1 + $0x48] sm:$0xf]
    %v45 = vld [vmem:[%s1 + $0x4c] sm:$0xf]
    %v46 = vld [vmem:[%s1 + $0x50] sm:$0xf]
    %v47 = vld [vmem:[%s1 + $0x54] sm:$0xf]
    %v48 = vld [vmem:[%s1 + $0x58] sm:$0xf]
    %v49 = vld [vmem:[%s1 + $0x5c] sm:$0xf]
    %v50 = vld [vmem:[%s1 + $0x60] sm:$0xf]
    %v51 = vld [vmem:[%s1 + $0x64] sm:$0xf]
    %v52 = vld [vmem:[%s1 + $0x68] sm:$0xf]
    %v53 = vld [vmem:[%s1 + $0x6c] sm:$0xf]
    %v54 = vld [vmem:[%s1 + $0x70] sm:$0xf]
    %v55 = vld [vmem:[%s1 + $0x74] sm:$0xf]
    %v56 = vld [vmem:[%s1 + $0x78] sm:$0xf]
    %v57 = vld [vmem:[%s1 + $0x7c] sm:$0xf]
    %v58 = vld [vmem:[%s1 + $0x80] sm:$0xf]
    %v59 = vld [vmem:[%s1 + $0x84] sm:$0xf]
    %v60 = vld [vmem:[%s1 + $0x88] sm:$0xf]
    %v61 = vld [vmem:[%s1 + $0x8c] sm:$0xf]
    %v62 = vld [vmem:[%s1 + $0x90] sm:$0xf]
    %v63 = vld [vmem:[%s1 + $0x94] sm:$0xf]
    %v64 = vld [vmem:[%s1 + $0x98] sm:$0xf]
    %v65 = vld [vmem:[%s1 + $0x9c] sm:$0xf]
    %v66 = vld [vmem:[%s1 + $0xa0] sm:$0xf]
    %v67 = vld [vmem:[%s1 + $0xa4] sm:$0xf]
    %v68 = vld [vmem:[%s1 + $0xa8] sm:$0xf]
    %v69 = vld [vmem:[%s1 + $0xac] sm:$0xf]
    %v70 = vld [vmem:[%s1 + $0xb0] sm:$0xf]
    %v71 = vld [vmem:[%s1 + $0xb4] sm:$0xf]
    %v72 = vld [vmem:[%s1 + $0xb8] sm:$0xf]
    %v73 = vld [vmem:[%s1 + $0xbc] sm:$0xf]
    %v74 = vld [vmem:[%s1 + $0xc0] sm:$0xf]
    %v75 = vld [vmem:[%s1 + $0xc4] sm:$0xf]
    %v76 = vld [vmem:[%s1 + $0xc8] sm:$0xf]
    %v77 = vld [vmem:[%s1 + $0xcc] sm:$0xf]
    %v78 = vld [vmem:[%s1 + $0xd0] sm:$0xf]
    %v79 = vld [vmem:[%s1 + $0xd4] sm:$0xf]
    %v80 = vld [vmem:[%s1 + $0xd8] sm:$0xf]
    %v81 = vld [vmem:[%s1 + $0xdc] sm:$0xf]
    %v82 = vld [vmem:[%s1 + $0xe0] sm:$0xf]
    %v83 = vld [vmem:[%s1 + $0xe4] sm:$0xf]
    %v84 = vld [vmem:[%s1 + $0xe8] sm:$0xf]
    %v85 = vld [vmem:[%s1 + $0xec] sm:$0xf]
    %v86 = vld [vmem:[%s1 + $0xf0] sm:$0xf]
    %v87 = vld [vmem:[%s1 + $0xf4] sm:$0xf]
    %v88 = vld [vmem:[%s1 + $0xf8] sm:$0xf]
    %v89 = vld [vmem:[%s1 + $0xfc] sm:$0xf]
    %v90 = vld [vmem:[%s1 + $0x100] sm:$0xf]
    %v91 = vld [vmem:[%s1 + $0x104] sm:$0xf]
    %v92 = vld [vmem:[%s1 + $0x108] sm:$0xf]
    %v93 = vld [vmem:[%s1 + $0x10c] sm:$0xf]
    %v94 = vld [vmem:[%s1 + $0x110] sm:$0xf]
    %v95 = vld [vmem:[%s1 + $0x114] sm:$0xf]
    %v96 = vld [vmem:[%s1 + $0x118] sm:$0xf]
    %v97 = vld [vmem:[%s1 + $0x11c] sm:$0xf]
    %v98 = vld [vmem:[%s1 + $0x120] sm:$0xf]
    %v99 = vld [vmem:[%s1 + $0x124] sm:$0xf]
    %v100 = vld [vmem:[%s1 + $0x128] sm:$0xf]
    %v101 = vld [vmem:[%s1 + $0x12c] sm:$0xf]
    %v102 = vld [vmem:[%s1 + $0x130] sm:$0xf]
    %v103 = vld [vmem:[%s1 + $0x134] sm:$0xf]
    %v104 = vld [vmem:[%s1 + $0x138] sm:$0xf]
    %v105 = vld [vmem:[%s1 + $0x13c] sm:$0xf]
    %v106 = vld [vmem:[%s1 + $0x140] sm:$0xf]
    %v107 = vld [vmem:[%s1 + $0x144] sm:$0xf]
    %v108 = vld [vmem:[%s1 + $0x148] sm:$0xf]
    %v109 = vld [vmem:[%s1 + $0x14c] sm:$0xf]
    %v110 = vld [vmem:[%s1 + $0x150] sm:$0xf]
    %v111 = vld [vmem:[%s1 + $0x154] sm:$0xf]
    %v112 = vld [vmem:[%s1 + $0x158] sm:$0xf]
    %v113 = vld [vmem:[%s1 + $0x15c] sm:$0xf]
    %v114 = vld [vmem:[%s1 + $0x160] sm:$0xf]
    %v115 = vld [vmem:[%s1 + $0x164] sm:$0xf]
    %v116 = vld [vmem:[%s1 + $0x168] sm:$0xf]
    %v117 = vld [vmem:[%s1 + $0x16c] sm:$0xf]
    %v118 = vld [vmem:[%s1 + $0x170] sm:$0xf]
    %v119 = vld [vmem:[%s1 + $0x174] sm:$0xf]
    %v120 = vld [vmem:[%s1 + $0x178] sm:$0xf]
    %v121 = vld [vmem:[%s1 + $0x17c] sm:$0xf]
    %v122 = vld [vmem:[%s1 + $0x180] sm:$0xf]
    %v123 = vld [vmem:[%s1 + $0x184] sm:$0xf]
    %v124 = vld [vmem:[%s1 + $0x188] sm:$0xf]
    %v125 = vld [vmem:[%s1 + $0x18c] sm:$0xf]
    %v126 = vld [vmem:[%s1 + $0x190] sm:$0xf]
    %v127 = vld [vmem:[%s1 + $0x194] sm:$0xf]
    %v128 = vld [vmem:[%s1 + $0x198] sm:$0xf]
    %v129 = vld [vmem:[%s1 + $0x19c] sm:$0xf]
    %v130 = vld [vmem:[%s1 + $0x1a0] sm:$0xf]
    %v131 = vld [vmem:[%s1 + $0x1a4] sm:$0xf]
    %v132 = vld [vmem:[%s1 + $0x1a8] sm:$0xf]
    %v133 = vld [vmem:[%s1 + $0x1ac] sm:$0xf]
    %v134 = vld [vmem:[%s1 + $0x1b0] sm:$0xf]
    %v135 = vld [vmem:[%s1 + $0x1b4] sm:$0xf]
    %v136 = vld [vmem:[%s1 + $0x1b8] sm:$0xf]
    %v137 = vld [vmem:[%s1 + $0x1bc] sm:$0xf]
    %v138 = vld [vmem:[%s1 + $0x1c0] sm:$0xf]
    %v139 = vld [vmem:[%s1 + $0x1c4] sm:$0xf]
    %v140 = vld [vmem:[%s1 + $0x1c8] sm:$0xf]
    %v141 = vld [vmem:[%s1 + $0x1cc] sm:$0xf]
    %v142 = vld [vmem:[%s1 + $0x1d0] sm:$0xf]
    %v143 = vld [vmem:[%s1 + $0x1d4] sm:$0xf]
    %v144 = vld [vmem:[%s1 + $0x1d8] sm:$0xf]
    %v145 = vld [vmem:[%s1 + $0x1dc] sm:$0xf]
    %v146 = vld [vmem:[%s1 + $0x1e0] sm:$0xf]
    %v147 = vld [vmem:[%s1 + $0x1e4] sm:$0xf]
    %v148 = vld [vmem:[%s1 + $0x1e8] sm:$0xf]
    %v149 = vld [vmem:[%s1 + $0x1ec] sm:$0xf]
    %v150 = vld [vmem:[%s1 + $0x1f0] sm:$0xf]
    %v151 = vld [vmem:[%s1 + $0x1f4] sm:$0xf]
    %v152 = vld [vmem:[%s1 + $0x1f8] sm:$0xf]
    %v153 = vld [vmem:[%s1 + $0x1fc] sm:$0xf]
    %v154 = vld [vmem:[%s1 + $0x200] sm:$0xf]
    %v155 = vld [vmem:[%s1 + $0x204] sm:$0xf]
    %v156 = vld [vmem:[%s1 + $0x208] sm:$0xf]
    %v157 = vld [vmem:[%s1 + $0x20c] sm:$0xf]
    %v158 = vld [vmem:[%s1 + $0x210] sm:$0xf]
    %v159 = vld [vmem:[%s1 + $0x214] sm:$0xf]
    %v160 = vld [vmem:[%s1 + $0x218] sm:$0xf]
    %v161 = vld [vmem:[%s1 + $0x21c] sm:$0xf]
    %v162 = vld [vmem:[%s1 + $0x220] sm:$0xf]
    %v163 = vld [vmem:[%s1 + $0x224] sm:$0xf]
    %v164 = vld [vmem:[%s1 + $0x228] sm:$0xf]
    %v165 = vld [vmem:[%s1 + $0x22c] sm:$0xf]
    %v166 = vld [vmem:[%s1 + $0x230] sm:$0xf]
    %v167 = vld [vmem:[%s1 + $0x234] sm:$0xf]
    %v168 = vld [vmem:[%s1 + $0x238] sm:$0xf]
    %v169 = vld [vmem:[%s1 + $0x23c] sm:$0xf]
    %v170 = vld [vmem:[%s1 + $0x240] sm:$0xf]
    %v171 = vld [vmem:[%s1 + $0x244] sm:$0xf]
    %v172 = vld [vmem:[%s1 + $0x248] sm:$0xf]
    %v173 = vld [vmem:[%s1 + $0x24c] sm:$0xf]
    %v174 = vld [vmem:[%s1 + $0x250] sm:$0xf]
    %v175 = vld [vmem:[%s1 + $0x254] sm:$0xf]
    %v176 = vld [vmem:[%s1 + $0x258] sm:$0xf]
    %v177 = vld [vmem:[%s1 + $0x25c] sm:$0xf]
    %v178 = vld [vmem:[%s1 + $0x260] sm:$0xf]
    %v179 = vld [vmem:[%s1 + $0x264] sm:$0xf]
    %v180 = vld [vmem:[%s1 + $0x268] sm:$0xf]
    %v181 = vld [vmem:[%s1 + $0x26c] sm:$0xf]
    %v182 = vld [vmem:[%s1 + $0x270] sm:$0xf]
    %v183 = vld [vmem:[%s1 + $0x274] sm:$0xf]
    %v184 = vld [vmem:[%s1 + $0x278] sm:$0xf]
    %v185 = vld [vmem:[%s1 + $0x27c] sm:$0xf]
    %v186 = vld [vmem:[%s1 + $0x280] sm:$0xf]
    %v187 = vld [vmem:[%s1 + $0x284] sm:$0xf]
    %v188 = vld [vmem:[%s1 + $0x288] sm:$0xf]
    %v189 = vld [vmem:[%s1 + $0x28c] sm:$0xf]
    %v190 = vld [vmem:[%s1 + $0x290] sm:$0xf]
    %v191 = vld [vmem:[%s1 + $0x294] sm:$0xf]
    %v192 = vld [vmem:[%s1 + $0x298] sm:$0xf]
    %v193 = vld [vmem:[%s1 + $0x29c] sm:$0xf]
    %v194 = vld [vmem:[%s1 + $0x2a0] sm:$0xf]
    %v195 = vld [vmem:[%s1 + $0x2a4] sm:$0xf]
    %v196 = vld [vmem:[%s1 + $0x2a8] sm:$0xf]
    %v197 = vld [vmem:[%s1 + $0x2ac] sm:$0xf]
    %v198 = vld [vmem:[%s1 + $0x2b0] sm:$0xf]
    %v199 = vld [vmem:[%s1 + $0x2b4] sm:$0xf]
    %v200 = vld [vmem:[%s1 + $0x2b8] sm:$0xf]
    %v201 = vld [vmem:[%s1 + $0x2bc] sm:$0xf]
    %v202 = vld [vmem:[%s1 + $0x2c0] sm:$0xf]
    %v203 = vld [vmem:[%s1 + $0x2c4] sm:$0xf]
    %v204 = vld [vmem:[%s1 + $0x2c8] sm:$0xf]
    %v205 = vld [vmem:[%s1 + $0x2cc] sm:$0xf]
    %v206 = vld [vmem:[%s1 + $0x2d0] sm:$0xf]
    %v207 = vld [vmem:[%s1 + $0x2d4] sm:$0xf]
    %v208 = vld [vmem:[%s1 + $0x2d8] sm:$0xf]
    %v209 = vld [vmem:[%s1 + $0x2dc] sm:$0xf]
    %v210 = vld [vmem:[%s1 + $0x2e0] sm:$0xf]
    %v211 = vld [vmem:[%s1 + $0x2e4] sm:$0xf]
    %v212 = vld [vmem:[%s1 + $0x2e8] sm:$0xf]
    %v213 = vld [vmem:[%s1 + $0x2ec] sm:$0xf]
    %v214 = vld [vmem:[%s1 + $0x2f0] sm:$0xf]
    %v215 = vld [vmem:[%s1 + $0x2f4] sm:$0xf]
    %v216 = vld [vmem:[%s1 + $0x2f8] sm:$0xf]
    %v217 = vld [vmem:[%s1 + $0x2fc] sm:$0xf]
    %v218 = vld [vmem:[%s1 + $0x300] sm:$0xf]
    %v219 = vld [vmem:[%s1 + $0x304] sm:$0xf]
    %v220 = vld [vmem:[%s1 + $0x308] sm:$0xf]
    %v221 = vld [vmem:[%s1 + $0x30c] sm:$0xf]
    %v222 = vld [vmem:[%s1 + $0x310] sm:$0xf]
    %v223 = vld [vmem:[%s1 + $0x314] sm:$0xf]
    %v224 = vld [vmem:[%s1 + $0x318] sm:$0xf]
    %v225 = vld [vmem:[%s1 + $0x31c] sm:$0xf]
    %v226 = vld [vmem:[%s1 + $0x320] sm:$0xf]
    %v227 = vld [vmem:[%s1 + $0x324] sm:$0xf]
    %v228 = vld [vmem:[%s1 + $0x328] sm:$0xf]
    %v229 = vld [vmem:[%s1 + $0x32c] sm:$0xf]
    %v230 = vld [vmem:[%s1 + $0x330] sm:$0xf]
    %v231 = vld [vmem:[%s1 + $0x334] sm:$0xf]
    %v232 = vld [vmem:[%s1 + $0x338] sm:$0xf]
    %v233 = vld [vmem:[%s1 + $0x33c] sm:$0xf]
    %v234 = vld [vmem:[%s1 + $0x340] sm:$0xf]
    %v235 = vld [vmem:[%s1 + $0x344] sm:$0xf]
    %v236 = vld [vmem:[%s1 + $0x348] sm:$0xf]
    %v237 = vld [vmem:[%s1 + $0x34c] sm:$0xf]
    %v238 = vld [vmem:[%s1 + $0x350] sm:$0xf]
    %v239 = vld [vmem:[%s1 + $0x354] sm:$0xf]
    %v240 = vld [vmem:[%s1 + $0x358] sm:$0xf]
    %v241 = vld [vmem:[%s1 + $0x35c] sm:$0xf]
    %v242 = vld [vmem:[%s1 + $0x360] sm:$0xf]
    %v243 = vld [vmem:[%s1 + $0x364] sm:$0xf]
    %v244 = vld [vmem:[%s1 + $0x368] sm:$0xf]
    %v245 = vld [vmem:[%s1 + $0x36c] sm:$0xf]
    %v246 = vld [vmem:[%s1 + $0x370] sm:$0xf]
    %v247 = vld [vmem:[%s1 + $0x374] sm:$0xf]
    %v248 = vld [vmem:[%s1 + $0x378] sm:$0xf]
    %v249 = vld [vmem:[%s1 + $0x37c] sm:$0xf]
    %v250 = vld [vmem:[%s1 + $0x380] sm:$0xf]
    %v251 = vld [vmem:[%s1 + $0x384] sm:$0xf]
    %v252 = vld [vmem:[%s1 + $0x388] sm:$0xf]
    %v253 = vld [vmem:[%s1 + $0x38c] sm:$0xf]
    %v254 = vld [vmem:[%s1 + $0x390] sm:$0xf]
    %v255 = vld [vmem:[%s1 + $0x394] sm:$0xf]
    %v256 = vld [vmem:[%s1 + $0x398] sm:$0xf]
    %v257 = vld [vmem:[%s1 + $0x39c] sm:$0xf]
    %v258 = vld [vmem:[%s1 + $0x3a0] sm:$0xf]
    %v259 = vld [vmem:[%s1 + $0x3a4] sm:$0xf]
    %v260 = vld [vmem:[%s1 + $0x3a8] sm:$0xf]
    %v261 = vld [vmem:[%s1 + $0x3ac] sm:$0xf]
    %v262 = vld [vmem:[%s1 + $0x3b0] sm:$0xf]
    %v263 = vld [vmem:[%s1 + $0x3b4] sm:$0xf]
    %v264 = vld [vmem:[%s1 + $0x3b8] sm:$0xf]
    %v265 = vld [vmem:[%s1 + $0x3bc] sm:$0xf]
    %v266 = vld [vmem:[%s1 + $0x3c0] sm:$0xf]
    %v267 = vld [vmem:[%s1 + $0x3c4] sm:$0xf]
    %v268 = vld [vmem:[%s1 + $0x3c8] sm:$0xf]
    %v269 = vld [vmem:[%s1 + $0x3cc] sm:$0xf]
    %v270 = vld [vmem:[%s1 + $0x3d0] sm:$0xf]
    %v271 = vld [vmem:[%s1 + $0x3d4] sm:$0xf]
    %v272 = vld [vmem:[%s1 + $0x3d8] sm:$0xf]
    %v273 = vld [vmem:[%s1 + $0x3dc] sm:$0xf]
    %v274 = vld [vmem:[%s1 + $0x3e0] sm:$0xf]
    %v275 = vld [vmem:[%s1 + $0x3e4] sm:$0xf]
    %v276 = vld [vmem:[%s1 + $0x3e8] sm:$0xf]
    %v277 = vld [vmem:[%s1 + $0x3ec] sm:$0xf]
    %v278 = vld [vmem:[%s1 + $0x3f0] sm:$0xf]
    %v279 = vld [vmem:[%s1 + $0x3f4] sm:$0xf]
    %v280 = vld [vmem:[%s1 + $0x3f8] sm:$0xf]
    %v281 = vld [vmem:[%s1 + $0x3fc] sm:$0xf]
    %v282 = vld [vmem:[%s1 + $0x400] sm:$0xf]
    %v283 = vld [vmem:[%s1 + $0x404] sm:$0xf]
    %v284 = vld [vmem:[%s1 + $0x408] sm:$0xf]
    %v285 = vld [vmem:[%s1 + $0x40c] sm:$0xf]
    %v286 = vld [vmem:[%s1 + $0x410] sm:$0xf]
    %v287 = vld [vmem:[%s1 + $0x414] sm:$0xf]
    %v288 = vld [vmem:[%s1 + $0x418] sm:$0xf]
    %v289 = vld [vmem:[%s1 + $0x41c] sm:$0xf]
    %v290 = vld [vmem:[%s1 + $0x420] sm:$0xf]
    %v291 = vld [vmem:[%s1 + $0x424] sm:$0xf]
    %v292 = vld [vmem:[%s1 + $0x428] sm:$0xf]
    %v293 = vld [vmem:[%s1 + $0x42c] sm:$0xf]
    %v294 = vld [vmem:[%s1 + $0x430] sm:$0xf]
    %v295 = vld [vmem:[%s1 + $0x434] sm:$0xf]
    %v296 = vld [vmem:[%s1 + $0x438] sm:$0xf]
    %v297 = vld [vmem:[%s1 + $0x43c] sm:$0xf]
    %v298 = vld [vmem:[%s1 + $0x440] sm:$0xf]
    %v299 = vld [vmem:[%s1 + $0x444] sm:$0xf]
    %v300 = vld [vmem:[%s1 + $0x448] sm:$0xf]
    %v301 = vld [vmem:[%s1 + $0x44c] sm:$0xf]
    %v302 = vld [vmem:[%s1 + $0x450] sm:$0xf]
    %v303 = vld [vmem:[%s1 + $0x454] sm:$0xf]
    %v304 = vld [vmem:[%s1 + $0x458] sm:$0xf]
    %v305 = vld [vmem:[%s1 + $0x45c] sm:$0xf]
    %v306 = vld [vmem:[%s1 + $0x460] sm:$0xf]
    %v307 = vld [vmem:[%s1 + $0x464] sm:$0xf]
    %v308 = vld [vmem:[%s1 + $0x468] sm:$0xf]
    %v309 = vld [vmem:[%s1 + $0x46c] sm:$0xf]
    %v310 = vld [vmem:[%s1 + $0x470] sm:$0xf]
    %v311 = vld [vmem:[%s1 + $0x474] sm:$0xf]
    %v312 = vld [vmem:[%s1 + $0x478] sm:$0xf]
    %v313 = vld [vmem:[%s1 + $0x47c] sm:$0xf]
    %v314 = vld [vmem:[%s1 + $0x480] sm:$0xf]
    %v315 = vld [vmem:[%s1 + $0x484] sm:$0xf]
    %v316 = vld [vmem:[%s1 + $0x488] sm:$0xf]
    %v317 = vld [vmem:[%s1 + $0x48c] sm:$0xf]
    %v318 = vld [vmem:[%s1 + $0x490] sm:$0xf]
    %v319 = vld [vmem:[%s1 + $0x494] sm:$0xf]
    %v320 = vld [vmem:[%s1 + $0x498] sm:$0xf]
    %v321 = vld [vmem:[%s1 + $0x49c] sm:$0xf]
    %v322 = vld [vmem:[%s1 + $0x4a0] sm:$0xf]
    %v323 = vld [vmem:[%s1 + $0x4a4] sm:$0xf]
    %v324 = vld [vmem:[%s1 + $0x4a8] sm:$0xf]
    %v325 = vld [vmem:[%s1 + $0x4ac] sm:$0xf]
    %v326 = vld [vmem:[%s1 + $0x4b0] sm:$0xf]
    %v327 = vld [vmem:[%s1 + $0x4b4] sm:$0xf]
    %v328 = vld [vmem:[%s1 + $0x4b8] sm:$0xf]
    %v329 = vld [vmem:[%s1 + $0x4bc] sm:$0xf]
    %v330 = vld [vmem:[%s1 + $0x4c0] sm:$0xf]
    %v331 = vld [vmem:[%s1 + $0x4c4] sm:$0xf]
    %v332 = vld [vmem:[%s1 + $0x4c8] sm:$0xf]
    %v333 = vld [vmem:[%s1 + $0x4cc] sm:$0xf]
    %v334 = vld [vmem:[%s1 + $0x4d0] sm:$0xf]
    %v335 = vld [vmem:[%s1 + $0x4d4] sm:$0xf]
    %v336 = vld [vmem:[%s1 + $0x4d8] sm:$0xf]
    %v337 = vld [vmem:[%s1 + $0x4dc] sm:$0xf]
    %v338 = vld [vmem:[%s1 + $0x4e0] sm:$0xf]
    %v339 = vld [vmem:[%s1 + $0x4e4] sm:$0xf]
    %v340 = vld [vmem:[%s1 + $0x4e8] sm:$0xf]
    %v341 = vld [vmem:[%s1 + $0x4ec] sm:$0xf]
    %v342 = vld [vmem:[%s1 + $0x4f0] sm:$0xf]
    %v343 = vld [vmem:[%s1 + $0x4f4] sm:$0xf]
    %v344 = vld [vmem:[%s1 + $0x4f8] sm:$0xf]
    %v345 = vld [vmem:[%s1 + $0x4fc] sm:$0xf]
    %v346 = vld [vmem:[%s1 + $0x500] sm:$0xf]
    %v347 = vld [vmem:[%s1 + $0x504] sm:$0xf]
    %v348 = vld [vmem:[%s1 + $0x508] sm:$0xf]
    %v349 = vld [vmem:[%s1 + $0x50c] sm:$0xf]
    %v350 = vld [vmem:[%s1 + $0x510] sm:$0xf]
    %v351 = vld [vmem:[%s1 + $0x514] sm:$0xf]
    %v352 = vld [vmem:[%s1 + $0x518] sm:$0xf]
    %v353 = vld [vmem:[%s1 + $0x51c] sm:$0xf]
    %v354 = vld [vmem:[%s1 + $0x520] sm:$0xf]
    %v355 = vld [vmem:[%s1 + $0x524] sm:$0xf]
    %v356 = vld [vmem:[%s1 + $0x528] sm:$0xf]
    %v357 = vld [vmem:[%s1 + $0x52c] sm:$0xf]
    %v358 = vld [vmem:[%s1 + $0x530] sm:$0xf]
    %v359 = vld [vmem:[%s1 + $0x534] sm:$0xf]
    %v360 = vld [vmem:[%s1 + $0x538] sm:$0xf]
    %v361 = vld [vmem:[%s1 + $0x53c] sm:$0xf]
    %v362 = vld [vmem:[%s1 + $0x540] sm:$0xf]
    %v363 = vld [vmem:[%s1 + $0x544] sm:$0xf]
    %v364 = vld [vmem:[%s1 + $0x548] sm:$0xf]
    %v365 = vld [vmem:[%s1 + $0x54c] sm:$0xf]
    %v366 = vld [vmem:[%s1 + $0x550] sm:$0xf]
    %v367 = vld [vmem:[%s1 + $0x554] sm:$0xf]
    %v368 = vld [vmem:[%s1 + $0x558] sm:$0xf]
    %v369 = vld [vmem:[%s1 + $0x55c] sm:$0xf]
    %v370 = vld [vmem:[%s1 + $0x560] sm:$0xf]
    %v371 = vld [vmem:[%s1 + $0x564] sm:$0xf]
    %v372 = vld [vmem:[%s1 + $0x568] sm:$0xf]
    %v373 = vld [vmem:[%s1 + $0x56c] sm:$0xf]
    %v374 = vld [vmem:[%s1 + $0x570] sm:$0xf]
    %v375 = vld [vmem:[%s1 + $0x574] sm:$0xf]
    %v376 = vld [vmem:[%s1 + $0x578] sm:$0xf]
    %v377 = vld [vmem:[%s1 + $0x57c] sm:$0xf]
    %v378 = vld [vmem:[%s1 + $0x580] sm:$0xf]
    %v379 = vld [vmem:[%s1 + $0x584] sm:$0xf]
    %v380 = vld [vmem:[%s1 + $0x588] sm:$0xf]
    %v381 = vld [vmem:[%s1 + $0x58c] sm:$0xf]
    %v382 = vld [vmem:[%s1 + $0x590] sm:$0xf]
    %v383 = vld [vmem:[%s1 + $0x594] sm:$0xf]
    %v384 = vld [vmem:[%s1 + $0x598] sm:$0xf]
    %v385 = vld [vmem:[%s1 + $0x59c] sm:$0xf]
    %v386 = vld [vmem:[%s1 + $0x5a0] sm:$0xf]
    %v387 = vld [vmem:[%s1 + $0x5a4] sm:$0xf]
    %v388 = vld [vmem:[%s1 + $0x5a8] sm:$0xf]
    %v389 = vld [vmem:[%s1 + $0x5ac] sm:$0xf]
    %v390 = vld [vmem:[%s1 + $0x5b0] sm:$0xf]
    %v391 = vld [vmem:[%s1 + $0x5b4] sm:$0xf]
    %v392 = vld [vmem:[%s1 + $0x5b8] sm:$0xf]
    %v393 = vld [vmem:[%s1 + $0x5bc] sm:$0xf]
    %v394 = vld [vmem:[%s1 + $0x5c0] sm:$0xf]
    %v395 = vld [vmem:[%s1 + $0x5c4] sm:$0xf]
    %v396 = vld [vmem:[%s1 + $0x5c8] sm:$0xf]
    %v397 = vld [vmem:[%s1 + $0x5cc] sm:$0xf]
    %v398 = vld [vmem:[%s1 + $0x5d0] sm:$0xf]
    %v399 = vld [vmem:[%s1 + $0x5d4] sm:$0xf]
    %v400 = vld [vmem:[%s1 + $0x5d8] sm:$0xf]
    %v401 = vld [vmem:[%s1 + $0x5dc] sm:$0xf]
    %v402 = vld [vmem:[%s1 + $0x5e0] sm:$0xf]
    %v403 = vld [vmem:[%s1 + $0x5e4] sm:$0xf]
    %v404 = vld [vmem:[%s1 + $0x5e8] sm:$0xf]
    %v405 = vld [vmem:[%s1 + $0x5ec] sm:$0xf]
    %v406 = vld [vmem:[%s1 + $0x5f0] sm:$0xf]
    %v407 = vld [vmem:[%s1 + $0x5f4] sm:$0xf]
    %v408 = vld [vmem:[%s1 + $0x5f8] sm:$0xf]
    %v409 = vld [vmem:[%s1 + $0x5fc] sm:$0xf]
    %v410 = vld [vmem:[%s1 + $0x600] sm:$0xf]
    %v411 = vld [vmem:[%s1 + $0x604] sm:$0xf]
    %v412 = vld [vmem:[%s1 + $0x608] sm:$0xf]
    %v413 = vld [vmem:[%s1 + $0x60c] sm:$0xf]
    %v414 = vld [vmem:[%s1 + $0x610] sm:$0xf]
    %v415 = vld [vmem:[%s1 + $0x614] sm:$0xf]
    %v416 = vld [vmem:[%s1 + $0x618] sm:$0xf]
    %v417 = vld [vmem:[%s1 + $0x61c] sm:$0xf]
    %v418 = vld [vmem:[%s1 + $0x620] sm:$0xf]
    %v419 = vld [vmem:[%s1 + $0x624] sm:$0xf]
    %v420 = vld [vmem:[%s1 + $0x628] sm:$0xf]
    %v421 = vld [vmem:[%s1 + $0x62c] sm:$0xf]
    %v422 = vld [vmem:[%s1 + $0x630] sm:$0xf]
    %v423 = vld [vmem:[%s1 + $0x634] sm:$0xf]
    %v424 = vld [vmem:[%s1 + $0x638] sm:$0xf]
    %v425 = vld [vmem:[%s1 + $0x63c] sm:$0xf]
    %v426 = vld [vmem:[%s1 + $0x640] sm:$0xf]
    %v427 = vld [vmem:[%s1 + $0x644] sm:$0xf]
    %v428 = vld [vmem:[%s1 + $0x648] sm:$0xf]
    %v429 = vld [vmem:[%s1 + $0x64c] sm:$0xf]
    %v430 = vld [vmem:[%s1 + $0x650] sm:$0xf]
    %v431 = vld [vmem:[%s1 + $0x654] sm:$0xf]
    %v432 = vld [vmem:[%s1 + $0x658] sm:$0xf]
    %v433 = vld [vmem:[%s1 + $0x65c] sm:$0xf]
    %v434 = vld [vmem:[%s1 + $0x660] sm:$0xf]
    %v435 = vld [vmem:[%s1 + $0x664] sm:$0xf]
    %v436 = vld [vmem:[%s1 + $0x668] sm:$0xf]
    %v437 = vld [vmem:[%s1 + $0x66c] sm:$0xf]
    %v438 = vld [vmem:[%s1 + $0x670] sm:$0xf]
    %v439 = vld [vmem:[%s1 + $0x674] sm:$0xf]
    %v440 = vld [vmem:[%s1 + $0x678] sm:$0xf]
    %v441 = vld [vmem:[%s1 + $0x67c] sm:$0xf]
    %v442 = vld [vmem:[%s1 + $0x680] sm:$0xf]
    %v443 = vld [vmem:[%s1 + $0x684] sm:$0xf]
    %v444 = vld [vmem:[%s1 + $0x688] sm:$0xf]
    %v445 = vld [vmem:[%s1 + $0x68c] sm:$0xf]
    %v446 = vld [vmem:[%s1 + $0x690] sm:$0xf]
    %v447 = vld [vmem:[%s1 + $0x694] sm:$0xf]
    %v448 = vld [vmem:[%s1 + $0x698] sm:$0xf]
    %v449 = vld [vmem:[%s1 + $0x69c] sm:$0xf]
    %v450 = vld [vmem:[%s1 + $0x6a0] sm:$0xf]
    %v451 = vld [vmem:[%s1 + $0x6a4] sm:$0xf]
    %v452 = vld [vmem:[%s1 + $0x6a8] sm:$0xf]
    %v453 = vld [vmem:[%s1 + $0x6ac] sm:$0xf]
    %v454 = vld [vmem:[%s1 + $0x6b0] sm:$0xf]
    %v455 = vld [vmem:[%s1 + $0x6b4] sm:$0xf]
    %v456 = vld [vmem:[%s1 + $0x6b8] sm:$0xf]
    %v457 = vld [vmem:[%s1 + $0x6bc] sm:$0xf]
    %v458 = vld [vmem:[%s1 + $0x6c0] sm:$0xf]
    %v459 = vld [vmem:[%s1 + $0x6c4] sm:$0xf]
    %v460 = vld [vmem:[%s1 + $0x6c8] sm:$0xf]
    %v461 = vld [vmem:[%s1 + $0x6cc] sm:$0xf]
    %v462 = vld [vmem:[%s1 + $0x6d0] sm:$0xf]
    %v463 = vld [vmem:[%s1 + $0x6d4] sm:$0xf]
    %v464 = vld [vmem:[%s1 + $0x6d8] sm:$0xf]
    %v465 = vld [vmem:[%s1 + $0x6dc] sm:$0xf]
    %v466 = vld [vmem:[%s1 + $0x6e0] sm:$0xf]
    %v467 = vld [vmem:[%s1 + $0x6e4] sm:$0xf]
    %v468 = vld [vmem:[%s1 + $0x6e8] sm:$0xf]
    %v469 = vld [vmem:[%s1 + $0x6ec] sm:$0xf]
    %v470 = vld [vmem:[%s1 + $0x6f0] sm:$0xf]
    %v471 = vld [vmem:[%s1 + $0x6f4] sm:$0xf]
    %v472 = vld [vmem:[%s1 + $0x6f8] sm:$0xf]
    %v473 = vld [vmem:[%s1 + $0x6fc] sm:$0xf]
    %v474 = vld [vmem:[%s1 + $0x700] sm:$0xf]
    %v475 = vld [vmem:[%s1 + $0x704] sm:$0xf]
    %v476 = vld [vmem:[%s1 + $0x708] sm:$0xf]
    %v477 = vld [vmem:[%s1 + $0x70c] sm:$0xf]
    %v478 = vld [vmem:[%s1 + $0x710] sm:$0xf]
    %v479 = vld [vmem:[%s1 + $0x714] sm:$0xf]
    %v480 = vld [vmem:[%s1 + $0x718] sm:$0xf]
    %v481 = vld [vmem:[%s1 + $0x71c] sm:$0xf]
    %v482 = vld [vmem:[%s1 + $0x720] sm:$0xf]
    %v483 = vld [vmem:[%s1 + $0x724] sm:$0xf]
    %v484 = vld [vmem:[%s1 + $0x728] sm:$0xf]
    %v485 = vld [vmem:[%s1 + $0x72c] sm:$0xf]
    %v486 = vld [vmem:[%s1 + $0x730] sm:$0xf]
    %v487 = vld [vmem:[%s1 + $0x734] sm:$0xf]
    %v488 = vld [vmem:[%s1 + $0x738] sm:$0xf]
    %v489 = vld [vmem:[%s1 + $0x73c] sm:$0xf]
    %v490 = vld [vmem:[%s1 + $0x740] sm:$0xf]
    %v491 = vld [vmem:[%s1 + $0x744] sm:$0xf]
    %v492 = vld [vmem:[%s1 + $0x748] sm:$0xf]
    %v493 = vld [vmem:[%s1 + $0x74c] sm:$0xf]
    %v494 = vld [vmem:[%s1 + $0x750] sm:$0xf]
    %v495 = vld [vmem:[%s1 + $0x754] sm:$0xf]
    %v496 = vld [vmem:[%s1 + $0x758] sm:$0xf]
    %v497 = vld [vmem:[%s1 + $0x75c] sm:$0xf]
    %v498 = vld [vmem:[%s1 + $0x760] sm:$0xf]
    %v499 = vld [vmem:[%s1 + $0x764] sm:$0xf]
    %v500 = vld [vmem:[%s1 + $0x768] sm:$0xf]
    %v501 = vld [vmem:[%s1 + $0x76c] sm:$0xf]
    %v502 = vld [vmem:[%s1 + $0x770] sm:$0xf]
    %v503 = vld [vmem:[%s1 + $0x774] sm:$0xf]
    %v504 = vld [vmem:[%s1 + $0x778] sm:$0xf]
    %v505 = vld [vmem:[%s1 + $0x77c] sm:$0xf]
    %v506 = vld [vmem:[%s1 + $0x780] sm:$0xf]
    %v507 = vld [vmem:[%s1 + $0x784] sm:$0xf]
    %v508 = vld [vmem:[%s1 + $0x788] sm:$0xf]
    %v509 = vld [vmem:[%s1 + $0x78c] sm:$0xf]
    %v510 = vld [vmem:[%s1 + $0x790] sm:$0xf]
    %v511 = vld [vmem:[%s1 + $0x794] sm:$0xf]
    %v512 = vld [vmem:[%s1 + $0x798] sm:$0xf]
    %v513 = vld [vmem:[%s1 + $0x79c] sm:$0xf]
    %v514 = vld [vmem:[%s1 + $0x7a0] sm:$0xf]
    %v515 = vld [vmem:[%s1 + $0x7a4] sm:$0xf]
    %v516 = vld [vmem:[%s1 + $0x7a8] sm:$0xf]
    %v517 = vld [vmem:[%s1 + $0x7ac] sm:$0xf]
    %v518 = vld [vmem:[%s1 + $0x7b0] sm:$0xf]
    %v519 = vld [vmem:[%s1 + $0x7b4] sm:$0xf]
    %v520 = vld [vmem:[%s1 + $0x7b8] sm:$0xf]
    %v521 = vld [vmem:[%s1 + $0x7bc] sm:$0xf]
    %v522 = vld [vmem:[%s1 + $0x7c0] sm:$0xf]
    %v523 = vld [vmem:[%s1 + $0x7c4] sm:$0xf]
    %v524 = vld [vmem:[%s1 + $0x7c8] sm:$0xf]
    %v525 = vld [vmem:[%s1 + $0x7cc] sm:$0xf]
    %v526 = vld [vmem:[%s1 + $0x7d0] sm:$0xf]
    %v527 = vld [vmem:[%s1 + $0x7d4] sm:$0xf]
    %v528 = vld [vmem:[%s1 + $0x7d8] sm:$0xf]
    %v529 = vld [vmem:[%s1 + $0x7dc] sm:$0xf]
    %v530 = vld [vmem:[%s1 + $0x7e0] sm:$0xf]
    %v531 = vld [vmem:[%s1 + $0x7e4] sm:$0xf]
    %v532 = vld [vmem:[%s1 + $0x7e8] sm:$0xf]
    %v533 = vld [vmem:[%s1 + $0x7ec] sm:$0xf]
    %v534 = vld [vmem:[%s1 + $0x7f0] sm:$0xf]
    %v535 = vld [vmem:[%s1 + $0x7f4] sm:$0xf]
    %v536 = vld [vmem:[%s1 + $0x7f8] sm:$0xf]
    %v537 = vld [vmem:[%s1 + $0x7fc] sm:$0xf]
    %v538 = vld [vmem:[%s2] sm:$0x1]
    %v540 = vlaneseq
    %v541 = vshrl.u32 %v540, 7
    %v542 = vsub.s32 0, %v541
    %v543 = vrot.slane %v538, %v542
    %v549 = vcombine.high %v22, %v22
    %v551 = vunpack.c.l.s4 1966171168
    %v552 = vunpack.c.0.s8 %v551
    %v553 = vlaneseq
    %v554 = vshrl.u32 %v553, 7
    %v555 = vsub.s32 %v552, %v554
    %v556 = vrot.slane %v22, %v555
    %v558 = vunpack.c.l.s4 1966171168
    %v559 = vunpack.c.0.s8 %v558
    %v560 = vlaneseq
    %v561 = vshrl.u32 %v560, 7
    %v562 = vsub.s32 %v559, %v561
    %v563 = vrot.slane %v549, %v562
    %v564 = vcombine.high %v556, %v556
    %v565 = vcombine.high %v563, %v563
    %v567 = vunpack.c.l.s4 1966171168
    %v568 = vunpack.c.0.s8 %v567
    %v569 = vlaneseq
    %v570 = vshrl.u32 %v569, 7
    %v571 = vsub.s32 %v568, %v570
    %v572 = vrot.slane %v556, %v571
    %v574 = vunpack.c.l.s4 1966171168
    %v575 = vunpack.c.0.s8 %v574
    %v576 = vlaneseq
    %v577 = vshrl.u32 %v576, 7
    %v578 = vsub.s32 %v575, %v577
    %v579 = vrot.slane %v563, %v578
    %v581 = vunpack.c.l.s4 1966171168
    %v582 = vunpack.c.0.s8 %v581
    %v583 = vlaneseq
    %v584 = vshrl.u32 %v583, 7
    %v585 = vsub.s32 %v582, %v584
    %v586 = vrot.slane %v564, %v585
    %v588 = vunpack.c.l.s4 1966171168
    %v589 = vunpack.c.0.s8 %v588
    %v590 = vlaneseq
    %v591 = vshrl.u32 %v590, 7
    %v592 = vsub.s32 %v589, %v591
    %v593 = vrot.slane %v565, %v592
    %v594 = vcombine.high %v572, %v572
    %v595 = vcombine.high %v579, %v579
    %v596 = vcombine.high %v586, %v586
    %v597 = vcombine.high %v593, %v593
    %v598 = vcombine.high %v23, %v23
    %v600 = vunpack.c.l.s4 1966171168
    %v601 = vunpack.c.0.s8 %v600
    %v602 = vlaneseq
    %v603 = vshrl.u32 %v602, 7
    %v604 = vsub.s32 %v601, %v603
    %v605 = vrot.slane %v23, %v604
    %v607 = vunpack.c.l.s4 1966171168
    %v608 = vunpack.c.0.s8 %v607
    %v609 = vlaneseq
    %v610 = vshrl.u32 %v609, 7
    %v611 = vsub.s32 %v608, %v610
    %v612 = vrot.slane %v598, %v611
    %v613 = vcombine.high %v605, %v605
    %v614 = vcombine.high %v612, %v612
    %v616 = vunpack.c.l.s4 1966171168
    %v617 = vunpack.c.0.s8 %v616
    %v618 = vlaneseq
    %v619 = vshrl.u32 %v618, 7
    %v620 = vsub.s32 %v617, %v619
    %v621 = vrot.slane %v605, %v620
    %v623 = vunpack.c.l.s4 1966171168
    %v624 = vunpack.c.0.s8 %v623
    %v625 = vlaneseq
    %v626 = vshrl.u32 %v625, 7
    %v627 = vsub.s32 %v624, %v626
    %v628 = vrot.slane %v612, %v627
    %v630 = vunpack.c.l.s4 1966171168
    %v631 = vunpack.c.0.s8 %v630
    %v632 = vlaneseq
    %v633 = vshrl.u32 %v632, 7
    %v634 = vsub.s32 %v631, %v633
    %v635 = vrot.slane %v613, %v634
    %v637 = vunpack.c.l.s4 1966171168
    %v638 = vunpack.c.0.s8 %v637
    %v639 = vlaneseq
    %v640 = vshrl.u32 %v639, 7
    %v641 = vsub.s32 %v638, %v640
    %v642 = vrot.slane %v614, %v641
    %v643 = vcombine.high %v621, %v621
    %v644 = vcombine.high %v628, %v628
    %v645 = vcombine.high %v635, %v635
    %v646 = vcombine.high %v642, %v642
    %v647 = vcombine.high %v24, %v24
    %v649 = vunpack.c.l.s4 1966171168
    %v650 = vunpack.c.0.s8 %v649
    %v651 = vlaneseq
    %v652 = vshrl.u32 %v651, 7
    %v653 = vsub.s32 %v650, %v652
    %v654 = vrot.slane %v24, %v653
    %v656 = vunpack.c.l.s4 1966171168
    %v657 = vunpack.c.0.s8 %v656
    %v658 = vlaneseq
    %v659 = vshrl.u32 %v658, 7
    %v660 = vsub.s32 %v657, %v659
    %v661 = vrot.slane %v647, %v660
    %v662 = vcombine.high %v654, %v654
    %v663 = vcombine.high %v661, %v661
    %v665 = vunpack.c.l.s4 1966171168
    %v666 = vunpack.c.0.s8 %v665
    %v667 = vlaneseq
    %v668 = vshrl.u32 %v667, 7
    %v669 = vsub.s32 %v666, %v668
    %v670 = vrot.slane %v654, %v669
    %v672 = vunpack.c.l.s4 1966171168
    %v673 = vunpack.c.0.s8 %v672
    %v674 = vlaneseq
    %v675 = vshrl.u32 %v674, 7
    %v676 = vsub.s32 %v673, %v675
    %v677 = vrot.slane %v661, %v676
    %v679 = vunpack.c.l.s4 1966171168
    %v680 = vunpack.c.0.s8 %v679
    %v681 = vlaneseq
    %v682 = vshrl.u32 %v681, 7
    %v683 = vsub.s32 %v680, %v682
    %v684 = vrot.slane %v662, %v683
    %v686 = vunpack.c.l.s4 1966171168
    %v687 = vunpack.c.0.s8 %v686
    %v688 = vlaneseq
    %v689 = vshrl.u32 %v688, 7
    %v690 = vsub.s32 %v687, %v689
    %v691 = vrot.slane %v663, %v690
    %v692 = vcombine.high %v670, %v670
    %v693 = vcombine.high %v677, %v677
    %v694 = vcombine.high %v684, %v684
    %v695 = vcombine.high %v691, %v691
    %v696 = vcombine.high %v25, %v25
    %v698 = vunpack.c.l.s4 1966171168
    %v699 = vunpack.c.0.s8 %v698
    %v700 = vlaneseq
    %v701 = vshrl.u32 %v700, 7
    %v702 = vsub.s32 %v699, %v701
    %v703 = vrot.slane %v25, %v702
    %v705 = vunpack.c.l.s4 1966171168
    %v706 = vunpack.c.0.s8 %v705
    %v707 = vlaneseq
    %v708 = vshrl.u32 %v707, 7
    %v709 = vsub.s32 %v706, %v708
    %v710 = vrot.slane %v696, %v709
    %v711 = vcombine.high %v703, %v703
    %v712 = vcombine.high %v710, %v710
    %v714 = vunpack.c.l.s4 1966171168
    %v715 = vunpack.c.0.s8 %v714
    %v716 = vlaneseq
    %v717 = vshrl.u32 %v716, 7
    %v718 = vsub.s32 %v715, %v717
    %v719 = vrot.slane %v703, %v718
    %v721 = vunpack.c.l.s4 1966171168
    %v722 = vunpack.c.0.s8 %v721
    %v723 = vlaneseq
    %v724 = vshrl.u32 %v723, 7
    %v725 = vsub.s32 %v722, %v724
    %v726 = vrot.slane %v710, %v725
    %v728 = vunpack.c.l.s4 1966171168
    %v729 = vunpack.c.0.s8 %v728
    %v730 = vlaneseq
    %v731 = vshrl.u32 %v730, 7
    %v732 = vsub.s32 %v729, %v731
    %v733 = vrot.slane %v711, %v732
    %v735 = vunpack.c.l.s4 1966171168
    %v736 = vunpack.c.0.s8 %v735
    %v737 = vlaneseq
    %v738 = vshrl.u32 %v737, 7
    %v739 = vsub.s32 %v736, %v738
    %v740 = vrot.slane %v712, %v739
    %v741 = vcombine.high %v719, %v719
    %v742 = vcombine.high %v726, %v726
    %v743 = vcombine.high %v733, %v733
    %v744 = vcombine.high %v740, %v740
    %v1289 = vunpack.c.l.b16 %v26
    %v1290 = vunpack.c.l.b16 %v27
    %v1291 = vunpack.c.l.b16 %v28
    %v1292 = vunpack.c.l.b16 %v29
    %v1293 = vunpack.c.l.b16 %v30
    %v1294 = vunpack.c.l.b16 %v31
    %v1295 = vunpack.c.l.b16 %v32
    %v1296 = vunpack.c.l.b16 %v33
    %v1297 = vunpack.c.l.b16 %v34
    %v1298 = vunpack.c.l.b16 %v35
    %v1299 = vunpack.c.l.b16 %v36
    %v1300 = vunpack.c.l.b16 %v37
    %v1301 = vunpack.c.l.b16 %v38
    %v1302 = vunpack.c.l.b16 %v39
    %v1303 = vunpack.c.l.b16 %v40
    %v1304 = vunpack.c.l.b16 %v41
    %v1305 = vunpack.c.l.b16 %v42
    %v1306 = vunpack.c.l.b16 %v43
    %v1307 = vunpack.c.l.b16 %v44
    %v1308 = vunpack.c.l.b16 %v45
    %v1309 = vunpack.c.l.b16 %v46
    %v1310 = vunpack.c.l.b16 %v47
    %v1311 = vunpack.c.l.b16 %v48
    %v1312 = vunpack.c.l.b16 %v49
    %v1313 = vunpack.c.l.b16 %v50
    %v1314 = vunpack.c.l.b16 %v51
    %v1315 = vunpack.c.l.b16 %v52
    %v1316 = vunpack.c.l.b16 %v53
    %v1317 = vunpack.c.l.b16 %v54
    %v1318 = vunpack.c.l.b16 %v55
    %v1319 = vunpack.c.l.b16 %v56
    %v1320 = vunpack.c.l.b16 %v57
    %v1321 = vunpack.c.l.b16 %v58
    %v1322 = vunpack.c.l.b16 %v59
    %v1323 = vunpack.c.l.b16 %v60
    %v1324 = vunpack.c.l.b16 %v61
    %v1325 = vunpack.c.l.b16 %v62
    %v1326 = vunpack.c.l.b16 %v63
    %v1327 = vunpack.c.l.b16 %v64
    %v1328 = vunpack.c.l.b16 %v65
    %v1329 = vunpack.c.l.b16 %v66
    %v1330 = vunpack.c.l.b16 %v67
    %v1331 = vunpack.c.l.b16 %v68
    %v1332 = vunpack.c.l.b16 %v69
    %v1333 = vunpack.c.l.b16 %v70
    %v1334 = vunpack.c.l.b16 %v71
    %v1335 = vunpack.c.l.b16 %v72
    %v1336 = vunpack.c.l.b16 %v73
    %v1337 = vunpack.c.l.b16 %v74
    %v1338 = vunpack.c.l.b16 %v75
    %v1339 = vunpack.c.l.b16 %v76
    %v1340 = vunpack.c.l.b16 %v77
    %v1341 = vunpack.c.l.b16 %v78
    %v1342 = vunpack.c.l.b16 %v79
    %v1343 = vunpack.c.l.b16 %v80
    %v1344 = vunpack.c.l.b16 %v81
    %v1345 = vunpack.c.l.b16 %v82
    %v1346 = vunpack.c.l.b16 %v83
    %v1347 = vunpack.c.l.b16 %v84
    %v1348 = vunpack.c.l.b16 %v85
    %v1349 = vunpack.c.l.b16 %v86
    %v1350 = vunpack.c.l.b16 %v87
    %v1351 = vunpack.c.l.b16 %v88
    %v1352 = vunpack.c.l.b16 %v89
    %v1353 = vunpack.c.l.b16 %v90
    %v1354 = vunpack.c.l.b16 %v91
    %v1355 = vunpack.c.l.b16 %v92
    %v1356 = vunpack.c.l.b16 %v93
    %v1357 = vunpack.c.l.b16 %v94
    %v1358 = vunpack.c.l.b16 %v95
    %v1359 = vunpack.c.l.b16 %v96
    %v1360 = vunpack.c.l.b16 %v97
    %v1361 = vunpack.c.l.b16 %v98
    %v1362 = vunpack.c.l.b16 %v99
    %v1363 = vunpack.c.l.b16 %v100
    %v1364 = vunpack.c.l.b16 %v101
    %v1365 = vunpack.c.l.b16 %v102
    %v1366 = vunpack.c.l.b16 %v103
    %v1367 = vunpack.c.l.b16 %v104
    %v1368 = vunpack.c.l.b16 %v105
    %v1369 = vunpack.c.l.b16 %v106
    %v1370 = vunpack.c.l.b16 %v107
    %v1371 = vunpack.c.l.b16 %v108
    %v1372 = vunpack.c.l.b16 %v109
    %v1373 = vunpack.c.l.b16 %v110
    %v1374 = vunpack.c.l.b16 %v111
    %v1375 = vunpack.c.l.b16 %v112
    %v1376 = vunpack.c.l.b16 %v113
    %v1377 = vunpack.c.l.b16 %v114
    %v1378 = vunpack.c.l.b16 %v115
    %v1379 = vunpack.c.l.b16 %v116
    %v1380 = vunpack.c.l.b16 %v117
    %v1381 = vunpack.c.l.b16 %v118
    %v1382 = vunpack.c.l.b16 %v119
    %v1383 = vunpack.c.l.b16 %v120
    %v1384 = vunpack.c.l.b16 %v121
    %v1385 = vunpack.c.l.b16 %v122
    %v1386 = vunpack.c.l.b16 %v123
    %v1387 = vunpack.c.l.b16 %v124
    %v1388 = vunpack.c.l.b16 %v125
    %v1389 = vunpack.c.l.b16 %v126
    %v1390 = vunpack.c.l.b16 %v127
    %v1391 = vunpack.c.l.b16 %v128
    %v1392 = vunpack.c.l.b16 %v129
    %v1393 = vunpack.c.l.b16 %v130
    %v1394 = vunpack.c.l.b16 %v131
    %v1395 = vunpack.c.l.b16 %v132
    %v1396 = vunpack.c.l.b16 %v133
    %v1397 = vunpack.c.l.b16 %v134
    %v1398 = vunpack.c.l.b16 %v135
    %v1399 = vunpack.c.l.b16 %v136
    %v1400 = vunpack.c.l.b16 %v137
    %v1401 = vunpack.c.l.b16 %v138
    %v1402 = vunpack.c.l.b16 %v139
    %v1403 = vunpack.c.l.b16 %v140
    %v1404 = vunpack.c.l.b16 %v141
    %v1405 = vunpack.c.l.b16 %v142
    %v1406 = vunpack.c.l.b16 %v143
    %v1407 = vunpack.c.l.b16 %v144
    %v1408 = vunpack.c.l.b16 %v145
    %v1409 = vunpack.c.l.b16 %v146
    %v1410 = vunpack.c.l.b16 %v147
    %v1411 = vunpack.c.l.b16 %v148
    %v1412 = vunpack.c.l.b16 %v149
    %v1413 = vunpack.c.l.b16 %v150
    %v1414 = vunpack.c.l.b16 %v151
    %v1415 = vunpack.c.l.b16 %v152
    %v1416 = vunpack.c.l.b16 %v153
    %v1417 = vunpack.c.l.b16 %v154
    %v1418 = vunpack.c.l.b16 %v155
    %v1419 = vunpack.c.l.b16 %v156
    %v1420 = vunpack.c.l.b16 %v157
    %v1421 = vunpack.c.l.b16 %v158
    %v1422 = vunpack.c.l.b16 %v159
    %v1423 = vunpack.c.l.b16 %v160
    %v1424 = vunpack.c.l.b16 %v161
    %v1425 = vunpack.c.l.b16 %v162
    %v1426 = vunpack.c.l.b16 %v163
    %v1427 = vunpack.c.l.b16 %v164
    %v1428 = vunpack.c.l.b16 %v165
    %v1429 = vunpack.c.l.b16 %v166
    %v1430 = vunpack.c.l.b16 %v167
    %v1431 = vunpack.c.l.b16 %v168
    %v1432 = vunpack.c.l.b16 %v169
    %v1433 = vunpack.c.l.b16 %v170
    %v1434 = vunpack.c.l.b16 %v171
    %v1435 = vunpack.c.l.b16 %v172
    %v1436 = vunpack.c.l.b16 %v173
    %v1437 = vunpack.c.l.b16 %v174
    %v1438 = vunpack.c.l.b16 %v175
    %v1439 = vunpack.c.l.b16 %v176
    %v1440 = vunpack.c.l.b16 %v177
    %v1441 = vunpack.c.l.b16 %v178
    %v1442 = vunpack.c.l.b16 %v179
    %v1443 = vunpack.c.l.b16 %v180
    %v1444 = vunpack.c.l.b16 %v181
    %v1445 = vunpack.c.l.b16 %v182
    %v1446 = vunpack.c.l.b16 %v183
    %v1447 = vunpack.c.l.b16 %v184
    %v1448 = vunpack.c.l.b16 %v185
    %v1449 = vunpack.c.l.b16 %v186
    %v1450 = vunpack.c.l.b16 %v187
    %v1451 = vunpack.c.l.b16 %v188
    %v1452 = vunpack.c.l.b16 %v189
    %v1453 = vunpack.c.l.b16 %v190
    %v1454 = vunpack.c.l.b16 %v191
    %v1455 = vunpack.c.l.b16 %v192
    %v1456 = vunpack.c.l.b16 %v193
    %v1457 = vunpack.c.l.b16 %v194
    %v1458 = vunpack.c.l.b16 %v195
    %v1459 = vunpack.c.l.b16 %v196
    %v1460 = vunpack.c.l.b16 %v197
    %v1461 = vunpack.c.l.b16 %v198
    %v1462 = vunpack.c.l.b16 %v199
    %v1463 = vunpack.c.l.b16 %v200
    %v1464 = vunpack.c.l.b16 %v201
    %v1465 = vunpack.c.l.b16 %v202
    %v1466 = vunpack.c.l.b16 %v203
    %v1467 = vunpack.c.l.b16 %v204
    %v1468 = vunpack.c.l.b16 %v205
    %v1469 = vunpack.c.l.b16 %v206
    %v1470 = vunpack.c.l.b16 %v207
    %v1471 = vunpack.c.l.b16 %v208
    %v1472 = vunpack.c.l.b16 %v209
    %v1473 = vunpack.c.l.b16 %v210
    %v1474 = vunpack.c.l.b16 %v211
    %v1475 = vunpack.c.l.b16 %v212
    %v1476 = vunpack.c.l.b16 %v213
    %v1477 = vunpack.c.l.b16 %v214
    %v1478 = vunpack.c.l.b16 %v215
    %v1479 = vunpack.c.l.b16 %v216
    %v1480 = vunpack.c.l.b16 %v217
    %v1481 = vunpack.c.l.b16 %v218
    %v1482 = vunpack.c.l.b16 %v219
    %v1483 = vunpack.c.l.b16 %v220
    %v1484 = vunpack.c.l.b16 %v221
    %v1485 = vunpack.c.l.b16 %v222
    %v1486 = vunpack.c.l.b16 %v223
    %v1487 = vunpack.c.l.b16 %v224
    %v1488 = vunpack.c.l.b16 %v225
    %v1489 = vunpack.c.l.b16 %v226
    %v1490 = vunpack.c.l.b16 %v227
    %v1491 = vunpack.c.l.b16 %v228
    %v1492 = vunpack.c.l.b16 %v229
    %v1493 = vunpack.c.l.b16 %v230
    %v1494 = vunpack.c.l.b16 %v231
    %v1495 = vunpack.c.l.b16 %v232
    %v1496 = vunpack.c.l.b16 %v233
    %v1497 = vunpack.c.l.b16 %v234
    %v1498 = vunpack.c.l.b16 %v235
    %v1499 = vunpack.c.l.b16 %v236
    %v1500 = vunpack.c.l.b16 %v237
    %v1501 = vunpack.c.l.b16 %v238
    %v1502 = vunpack.c.l.b16 %v239
    %v1503 = vunpack.c.l.b16 %v240
    %v1504 = vunpack.c.l.b16 %v241
    %v1505 = vunpack.c.l.b16 %v242
    %v1506 = vunpack.c.l.b16 %v243
    %v1507 = vunpack.c.l.b16 %v244
    %v1508 = vunpack.c.l.b16 %v245
    %v1509 = vunpack.c.l.b16 %v246
    %v1510 = vunpack.c.l.b16 %v247
    %v1511 = vunpack.c.l.b16 %v248
    %v1512 = vunpack.c.l.b16 %v249
    %v1513 = vunpack.c.l.b16 %v250
    %v1514 = vunpack.c.l.b16 %v251
    %v1515 = vunpack.c.l.b16 %v252
    %v1516 = vunpack.c.l.b16 %v253
    %v1517 = vunpack.c.l.b16 %v254
    %v1518 = vunpack.c.l.b16 %v255
    %v1519 = vunpack.c.l.b16 %v256
    %v1520 = vunpack.c.l.b16 %v257
    %v1521 = vunpack.c.l.b16 %v258
    %v1522 = vunpack.c.l.b16 %v259
    %v1523 = vunpack.c.l.b16 %v260
    %v1524 = vunpack.c.l.b16 %v261
    %v1525 = vunpack.c.l.b16 %v262
    %v1526 = vunpack.c.l.b16 %v263
    %v1527 = vunpack.c.l.b16 %v264
    %v1528 = vunpack.c.l.b16 %v265
    %v1529 = vunpack.c.l.b16 %v266
    %v1530 = vunpack.c.l.b16 %v267
    %v1531 = vunpack.c.l.b16 %v268
    %v1532 = vunpack.c.l.b16 %v269
    %v1533 = vunpack.c.l.b16 %v270
    %v1534 = vunpack.c.l.b16 %v271
    %v1535 = vunpack.c.l.b16 %v272
    %v1536 = vunpack.c.l.b16 %v273
    %v1537 = vunpack.c.l.b16 %v274
    %v1538 = vunpack.c.l.b16 %v275
    %v1539 = vunpack.c.l.b16 %v276
    %v1540 = vunpack.c.l.b16 %v277
    %v1541 = vunpack.c.l.b16 %v278
    %v1542 = vunpack.c.l.b16 %v279
    %v1543 = vunpack.c.l.b16 %v280
    %v1544 = vunpack.c.l.b16 %v281
    %v1545 = vunpack.c.l.b16 %v282
    %v1546 = vunpack.c.l.b16 %v283
    %v1547 = vunpack.c.l.b16 %v284
    %v1548 = vunpack.c.l.b16 %v285
    %v1549 = vunpack.c.l.b16 %v286
    %v1550 = vunpack.c.l.b16 %v287
    %v1551 = vunpack.c.l.b16 %v288
    %v1552 = vunpack.c.l.b16 %v289
    %v1553 = vunpack.c.l.b16 %v290
    %v1554 = vunpack.c.l.b16 %v291
    %v1555 = vunpack.c.l.b16 %v292
    %v1556 = vunpack.c.l.b16 %v293
    %v1557 = vunpack.c.l.b16 %v294
    %v1558 = vunpack.c.l.b16 %v295
    %v1559 = vunpack.c.l.b16 %v296
    %v1560 = vunpack.c.l.b16 %v297
    %v1561 = vunpack.c.l.b16 %v298
    %v1562 = vunpack.c.l.b16 %v299
    %v1563 = vunpack.c.l.b16 %v300
    %v1564 = vunpack.c.l.b16 %v301
    %v1565 = vunpack.c.l.b16 %v302
    %v1566 = vunpack.c.l.b16 %v303
    %v1567 = vunpack.c.l.b16 %v304
    %v1568 = vunpack.c.l.b16 %v305
    %v1569 = vunpack.c.l.b16 %v306
    %v1570 = vunpack.c.l.b16 %v307
    %v1571 = vunpack.c.l.b16 %v308
    %v1572 = vunpack.c.l.b16 %v309
    %v1573 = vunpack.c.l.b16 %v310
    %v1574 = vunpack.c.l.b16 %v311
    %v1575 = vunpack.c.l.b16 %v312
    %v1576 = vunpack.c.l.b16 %v313
    %v1577 = vunpack.c.l.b16 %v314
    %v1578 = vunpack.c.l.b16 %v315
    %v1579 = vunpack.c.l.b16 %v316
    %v1580 = vunpack.c.l.b16 %v317
    %v1581 = vunpack.c.l.b16 %v318
    %v1582 = vunpack.c.l.b16 %v319
    %v1583 = vunpack.c.l.b16 %v320
    %v1584 = vunpack.c.l.b16 %v321
    %v1585 = vunpack.c.l.b16 %v322
    %v1586 = vunpack.c.l.b16 %v323
    %v1587 = vunpack.c.l.b16 %v324
    %v1588 = vunpack.c.l.b16 %v325
    %v1589 = vunpack.c.l.b16 %v326
    %v1590 = vunpack.c.l.b16 %v327
    %v1591 = vunpack.c.l.b16 %v328
    %v1592 = vunpack.c.l.b16 %v329
    %v1593 = vunpack.c.l.b16 %v330
    %v1594 = vunpack.c.l.b16 %v331
    %v1595 = vunpack.c.l.b16 %v332
    %v1596 = vunpack.c.l.b16 %v333
    %v1597 = vunpack.c.l.b16 %v334
    %v1598 = vunpack.c.l.b16 %v335
    %v1599 = vunpack.c.l.b16 %v336
    %v1600 = vunpack.c.l.b16 %v337
    %v1601 = vunpack.c.l.b16 %v338
    %v1602 = vunpack.c.l.b16 %v339
    %v1603 = vunpack.c.l.b16 %v340
    %v1604 = vunpack.c.l.b16 %v341
    %v1605 = vunpack.c.l.b16 %v342
    %v1606 = vunpack.c.l.b16 %v343
    %v1607 = vunpack.c.l.b16 %v344
    %v1608 = vunpack.c.l.b16 %v345
    %v1609 = vunpack.c.l.b16 %v346
    %v1610 = vunpack.c.l.b16 %v347
    %v1611 = vunpack.c.l.b16 %v348
    %v1612 = vunpack.c.l.b16 %v349
    %v1613 = vunpack.c.l.b16 %v350
    %v1614 = vunpack.c.l.b16 %v351
    %v1615 = vunpack.c.l.b16 %v352
    %v1616 = vunpack.c.l.b16 %v353
    %v1617 = vunpack.c.l.b16 %v354
    %v1618 = vunpack.c.l.b16 %v355
    %v1619 = vunpack.c.l.b16 %v356
    %v1620 = vunpack.c.l.b16 %v357
    %v1621 = vunpack.c.l.b16 %v358
    %v1622 = vunpack.c.l.b16 %v359
    %v1623 = vunpack.c.l.b16 %v360
    %v1624 = vunpack.c.l.b16 %v361
    %v1625 = vunpack.c.l.b16 %v362
    %v1626 = vunpack.c.l.b16 %v363
    %v1627 = vunpack.c.l.b16 %v364
    %v1628 = vunpack.c.l.b16 %v365
    %v1629 = vunpack.c.l.b16 %v366
    %v1630 = vunpack.c.l.b16 %v367
    %v1631 = vunpack.c.l.b16 %v368
    %v1632 = vunpack.c.l.b16 %v369
    %v1633 = vunpack.c.l.b16 %v370
    %v1634 = vunpack.c.l.b16 %v371
    %v1635 = vunpack.c.l.b16 %v372
    %v1636 = vunpack.c.l.b16 %v373
    %v1637 = vunpack.c.l.b16 %v374
    %v1638 = vunpack.c.l.b16 %v375
    %v1639 = vunpack.c.l.b16 %v376
    %v1640 = vunpack.c.l.b16 %v377
    %v1641 = vunpack.c.l.b16 %v378
    %v1642 = vunpack.c.l.b16 %v379
    %v1643 = vunpack.c.l.b16 %v380
    %v1644 = vunpack.c.l.b16 %v381
    %v1645 = vunpack.c.l.b16 %v382
    %v1646 = vunpack.c.l.b16 %v383
    %v1647 = vunpack.c.l.b16 %v384
    %v1648 = vunpack.c.l.b16 %v385
    %v1649 = vunpack.c.l.b16 %v386
    %v1650 = vunpack.c.l.b16 %v387
    %v1651 = vunpack.c.l.b16 %v388
    %v1652 = vunpack.c.l.b16 %v389
    %v1653 = vunpack.c.l.b16 %v390
    %v1654 = vunpack.c.l.b16 %v391
    %v1655 = vunpack.c.l.b16 %v392
    %v1656 = vunpack.c.l.b16 %v393
    %v1657 = vunpack.c.l.b16 %v394
    %v1658 = vunpack.c.l.b16 %v395
    %v1659 = vunpack.c.l.b16 %v396
    %v1660 = vunpack.c.l.b16 %v397
    %v1661 = vunpack.c.l.b16 %v398
    %v1662 = vunpack.c.l.b16 %v399
    %v1663 = vunpack.c.l.b16 %v400
    %v1664 = vunpack.c.l.b16 %v401
    %v1665 = vunpack.c.l.b16 %v402
    %v1666 = vunpack.c.l.b16 %v403
    %v1667 = vunpack.c.l.b16 %v404
    %v1668 = vunpack.c.l.b16 %v405
    %v1669 = vunpack.c.l.b16 %v406
    %v1670 = vunpack.c.l.b16 %v407
    %v1671 = vunpack.c.l.b16 %v408
    %v1672 = vunpack.c.l.b16 %v409
    %v1673 = vunpack.c.l.b16 %v410
    %v1674 = vunpack.c.l.b16 %v411
    %v1675 = vunpack.c.l.b16 %v412
    %v1676 = vunpack.c.l.b16 %v413
    %v1677 = vunpack.c.l.b16 %v414
    %v1678 = vunpack.c.l.b16 %v415
    %v1679 = vunpack.c.l.b16 %v416
    %v1680 = vunpack.c.l.b16 %v417
    %v1681 = vunpack.c.l.b16 %v418
    %v1682 = vunpack.c.l.b16 %v419
    %v1683 = vunpack.c.l.b16 %v420
    %v1684 = vunpack.c.l.b16 %v421
    %v1685 = vunpack.c.l.b16 %v422
    %v1686 = vunpack.c.l.b16 %v423
    %v1687 = vunpack.c.l.b16 %v424
    %v1688 = vunpack.c.l.b16 %v425
    %v1689 = vunpack.c.l.b16 %v426
    %v1690 = vunpack.c.l.b16 %v427
    %v1691 = vunpack.c.l.b16 %v428
    %v1692 = vunpack.c.l.b16 %v429
    %v1693 = vunpack.c.l.b16 %v430
    %v1694 = vunpack.c.l.b16 %v431
    %v1695 = vunpack.c.l.b16 %v432
    %v1696 = vunpack.c.l.b16 %v433
    %v1697 = vunpack.c.l.b16 %v434
    %v1698 = vunpack.c.l.b16 %v435
    %v1699 = vunpack.c.l.b16 %v436
    %v1700 = vunpack.c.l.b16 %v437
    %v1701 = vunpack.c.l.b16 %v438
    %v1702 = vunpack.c.l.b16 %v439
    %v1703 = vunpack.c.l.b16 %v440
    %v1704 = vunpack.c.l.b16 %v441
    %v1705 = vunpack.c.l.b16 %v442
    %v1706 = vunpack.c.l.b16 %v443
    %v1707 = vunpack.c.l.b16 %v444
    %v1708 = vunpack.c.l.b16 %v445
    %v1709 = vunpack.c.l.b16 %v446
    %v1710 = vunpack.c.l.b16 %v447
    %v1711 = vunpack.c.l.b16 %v448
    %v1712 = vunpack.c.l.b16 %v449
    %v1713 = vunpack.c.l.b16 %v450
    %v1714 = vunpack.c.l.b16 %v451
    %v1715 = vunpack.c.l.b16 %v452
    %v1716 = vunpack.c.l.b16 %v453
    %v1717 = vunpack.c.l.b16 %v454
    %v1718 = vunpack.c.l.b16 %v455
    %v1719 = vunpack.c.l.b16 %v456
    %v1720 = vunpack.c.l.b16 %v457
    %v1721 = vunpack.c.l.b16 %v458
    %v1722 = vunpack.c.l.b16 %v459
    %v1723 = vunpack.c.l.b16 %v460
    %v1724 = vunpack.c.l.b16 %v461
    %v1725 = vunpack.c.l.b16 %v462
    %v1726 = vunpack.c.l.b16 %v463
    %v1727 = vunpack.c.l.b16 %v464
    %v1728 = vunpack.c.l.b16 %v465
    %v1729 = vunpack.c.l.b16 %v466
    %v1730 = vunpack.c.l.b16 %v467
    %v1731 = vunpack.c.l.b16 %v468
    %v1732 = vunpack.c.l.b16 %v469
    %v1733 = vunpack.c.l.b16 %v470
    %v1734 = vunpack.c.l.b16 %v471
    %v1735 = vunpack.c.l.b16 %v472
    %v1736 = vunpack.c.l.b16 %v473
    %v1737 = vunpack.c.l.b16 %v474
    %v1738 = vunpack.c.l.b16 %v475
    %v1739 = vunpack.c.l.b16 %v476
    %v1740 = vunpack.c.l.b16 %v477
    %v1741 = vunpack.c.l.b16 %v478
    %v1742 = vunpack.c.l.b16 %v479
    %v1743 = vunpack.c.l.b16 %v480
    %v1744 = vunpack.c.l.b16 %v481
    %v1745 = vunpack.c.l.b16 %v482
    %v1746 = vunpack.c.l.b16 %v483
    %v1747 = vunpack.c.l.b16 %v484
    %v1748 = vunpack.c.l.b16 %v485
    %v1749 = vunpack.c.l.b16 %v486
    %v1750 = vunpack.c.l.b16 %v487
    %v1751 = vunpack.c.l.b16 %v488
    %v1752 = vunpack.c.l.b16 %v489
    %v1753 = vunpack.c.l.b16 %v490
    %v1754 = vunpack.c.l.b16 %v491
    %v1755 = vunpack.c.l.b16 %v492
    %v1756 = vunpack.c.l.b16 %v493
    %v1757 = vunpack.c.l.b16 %v494
    %v1758 = vunpack.c.l.b16 %v495
    %v1759 = vunpack.c.l.b16 %v496
    %v1760 = vunpack.c.l.b16 %v497
    %v1761 = vunpack.c.l.b16 %v498
    %v1762 = vunpack.c.l.b16 %v499
    %v1763 = vunpack.c.l.b16 %v500
    %v1764 = vunpack.c.l.b16 %v501
    %v1765 = vunpack.c.l.b16 %v502
    %v1766 = vunpack.c.l.b16 %v503
    %v1767 = vunpack.c.l.b16 %v504
    %v1768 = vunpack.c.l.b16 %v505
    %v1769 = vunpack.c.l.b16 %v506
    %v1770 = vunpack.c.l.b16 %v507
    %v1771 = vunpack.c.l.b16 %v508
    %v1772 = vunpack.c.l.b16 %v509
    %v1773 = vunpack.c.l.b16 %v510
    %v1774 = vunpack.c.l.b16 %v511
    %v1775 = vunpack.c.l.b16 %v512
    %v1776 = vunpack.c.l.b16 %v513
    %v1777 = vunpack.c.l.b16 %v514
    %v1778 = vunpack.c.l.b16 %v515
    %v1779 = vunpack.c.l.b16 %v516
    %v1780 = vunpack.c.l.b16 %v517
    %v1781 = vunpack.c.l.b16 %v518
    %v1782 = vunpack.c.l.b16 %v519
    %v1783 = vunpack.c.l.b16 %v520
    %v1784 = vunpack.c.l.b16 %v521
    %v1785 = vunpack.c.l.b16 %v522
    %v1786 = vunpack.c.l.b16 %v523
    %v1787 = vunpack.c.l.b16 %v524
    %v1788 = vunpack.c.l.b16 %v525
    %v1789 = vunpack.c.l.b16 %v526
    %v1790 = vunpack.c.l.b16 %v527
    %v1791 = vunpack.c.l.b16 %v528
    %v1792 = vunpack.c.l.b16 %v529
    %v1793 = vunpack.c.l.b16 %v530
    %v1794 = vunpack.c.l.b16 %v531
    %v1795 = vunpack.c.l.b16 %v532
    %v1796 = vunpack.c.l.b16 %v533
    %v1797 = vunpack.c.l.b16 %v534
    %v1798 = vunpack.c.l.b16 %v535
    %v1799 = vunpack.c.l.b16 %v536
    %v1800 = vunpack.c.l.b16 %v537
    %v1801 = vpack.c.b16 %v1290, %v1289
    %v1802 = vpack.c.b16 %v1292, %v1291
    %v1803 = vpack.c.b16 %v1294, %v1293
    %v1804 = vpack.c.b16 %v1296, %v1295
    %v1805 = vpack.c.b16 %v1298, %v1297
    %v1806 = vpack.c.b16 %v1300, %v1299
    %v1807 = vpack.c.b16 %v1302, %v1301
    %v1808 = vpack.c.b16 %v1304, %v1303
    %v1809 = vpack.c.b16 %v1306, %v1305
    %v1810 = vpack.c.b16 %v1308, %v1307
    %v1811 = vpack.c.b16 %v1310, %v1309
    %v1812 = vpack.c.b16 %v1312, %v1311
    %v1813 = vpack.c.b16 %v1314, %v1313
    %v1814 = vpack.c.b16 %v1316, %v1315
    %v1815 = vpack.c.b16 %v1318, %v1317
    %v1816 = vpack.c.b16 %v1320, %v1319
    %v1817 = vpack.c.b16 %v1322, %v1321
    %v1818 = vpack.c.b16 %v1324, %v1323
    %v1819 = vpack.c.b16 %v1326, %v1325
    %v1820 = vpack.c.b16 %v1328, %v1327
    %v1821 = vpack.c.b16 %v1330, %v1329
    %v1822 = vpack.c.b16 %v1332, %v1331
    %v1823 = vpack.c.b16 %v1334, %v1333
    %v1824 = vpack.c.b16 %v1336, %v1335
    %v1825 = vpack.c.b16 %v1338, %v1337
    %v1826 = vpack.c.b16 %v1340, %v1339
    %v1827 = vpack.c.b16 %v1342, %v1341
    %v1828 = vpack.c.b16 %v1344, %v1343
    %v1829 = vpack.c.b16 %v1346, %v1345
    %v1830 = vpack.c.b16 %v1348, %v1347
    %v1831 = vpack.c.b16 %v1350, %v1349
    %v1832 = vpack.c.b16 %v1352, %v1351
    %v1833 = vpack.c.b16 %v1354, %v1353
    %v1834 = vpack.c.b16 %v1356, %v1355
    %v1835 = vpack.c.b16 %v1358, %v1357
    %v1836 = vpack.c.b16 %v1360, %v1359
    %v1837 = vpack.c.b16 %v1362, %v1361
    %v1838 = vpack.c.b16 %v1364, %v1363
    %v1839 = vpack.c.b16 %v1366, %v1365
    %v1840 = vpack.c.b16 %v1368, %v1367
    %v1841 = vpack.c.b16 %v1370, %v1369
    %v1842 = vpack.c.b16 %v1372, %v1371
    %v1843 = vpack.c.b16 %v1374, %v1373
    %v1844 = vpack.c.b16 %v1376, %v1375
    %v1845 = vpack.c.b16 %v1378, %v1377
    %v1846 = vpack.c.b16 %v1380, %v1379
    %v1847 = vpack.c.b16 %v1382, %v1381
    %v1848 = vpack.c.b16 %v1384, %v1383
    %v1849 = vpack.c.b16 %v1386, %v1385
    %v1850 = vpack.c.b16 %v1388, %v1387
    %v1851 = vpack.c.b16 %v1390, %v1389
    %v1852 = vpack.c.b16 %v1392, %v1391
    %v1853 = vpack.c.b16 %v1394, %v1393
    %v1854 = vpack.c.b16 %v1396, %v1395
    %v1855 = vpack.c.b16 %v1398, %v1397
    %v1856 = vpack.c.b16 %v1400, %v1399
    %v1857 = vpack.c.b16 %v1402, %v1401
    %v1858 = vpack.c.b16 %v1404, %v1403
    %v1859 = vpack.c.b16 %v1406, %v1405
    %v1860 = vpack.c.b16 %v1408, %v1407
    %v1861 = vpack.c.b16 %v1410, %v1409
    %v1862 = vpack.c.b16 %v1412, %v1411
    %v1863 = vpack.c.b16 %v1414, %v1413
    %v1864 = vpack.c.b16 %v1416, %v1415
    %v1865 = vpack.c.b16 %v1418, %v1417
    %v1866 = vpack.c.b16 %v1420, %v1419
    %v1867 = vpack.c.b16 %v1422, %v1421
    %v1868 = vpack.c.b16 %v1424, %v1423
    %v1869 = vpack.c.b16 %v1426, %v1425
    %v1870 = vpack.c.b16 %v1428, %v1427
    %v1871 = vpack.c.b16 %v1430, %v1429
    %v1872 = vpack.c.b16 %v1432, %v1431
    %v1873 = vpack.c.b16 %v1434, %v1433
    %v1874 = vpack.c.b16 %v1436, %v1435
    %v1875 = vpack.c.b16 %v1438, %v1437
    %v1876 = vpack.c.b16 %v1440, %v1439
    %v1877 = vpack.c.b16 %v1442, %v1441
    %v1878 = vpack.c.b16 %v1444, %v1443
    %v1879 = vpack.c.b16 %v1446, %v1445
    %v1880 = vpack.c.b16 %v1448, %v1447
    %v1881 = vpack.c.b16 %v1450, %v1449
    %v1882 = vpack.c.b16 %v1452, %v1451
    %v1883 = vpack.c.b16 %v1454, %v1453
    %v1884 = vpack.c.b16 %v1456, %v1455
    %v1885 = vpack.c.b16 %v1458, %v1457
    %v1886 = vpack.c.b16 %v1460, %v1459
    %v1887 = vpack.c.b16 %v1462, %v1461
    %v1888 = vpack.c.b16 %v1464, %v1463
    %v1889 = vpack.c.b16 %v1466, %v1465
    %v1890 = vpack.c.b16 %v1468, %v1467
    %v1891 = vpack.c.b16 %v1470, %v1469
    %v1892 = vpack.c.b16 %v1472, %v1471
    %v1893 = vpack.c.b16 %v1474, %v1473
    %v1894 = vpack.c.b16 %v1476, %v1475
    %v1895 = vpack.c.b16 %v1478, %v1477
    %v1896 = vpack.c.b16 %v1480, %v1479
    %v1897 = vpack.c.b16 %v1482, %v1481
    %v1898 = vpack.c.b16 %v1484, %v1483
    %v1899 = vpack.c.b16 %v1486, %v1485
    %v1900 = vpack.c.b16 %v1488, %v1487
    %v1901 = vpack.c.b16 %v1490, %v1489
    %v1902 = vpack.c.b16 %v1492, %v1491
    %v1903 = vpack.c.b16 %v1494, %v1493
    %v1904 = vpack.c.b16 %v1496, %v1495
    %v1905 = vpack.c.b16 %v1498, %v1497
    %v1906 = vpack.c.b16 %v1500, %v1499
    %v1907 = vpack.c.b16 %v1502, %v1501
    %v1908 = vpack.c.b16 %v1504, %v1503
    %v1909 = vpack.c.b16 %v1506, %v1505
    %v1910 = vpack.c.b16 %v1508, %v1507
    %v1911 = vpack.c.b16 %v1510, %v1509
    %v1912 = vpack.c.b16 %v1512, %v1511
    %v1913 = vpack.c.b16 %v1514, %v1513
    %v1914 = vpack.c.b16 %v1516, %v1515
    %v1915 = vpack.c.b16 %v1518, %v1517
    %v1916 = vpack.c.b16 %v1520, %v1519
    %v1917 = vpack.c.b16 %v1522, %v1521
    %v1918 = vpack.c.b16 %v1524, %v1523
    %v1919 = vpack.c.b16 %v1526, %v1525
    %v1920 = vpack.c.b16 %v1528, %v1527
    %v1921 = vpack.c.b16 %v1530, %v1529
    %v1922 = vpack.c.b16 %v1532, %v1531
    %v1923 = vpack.c.b16 %v1534, %v1533
    %v1924 = vpack.c.b16 %v1536, %v1535
    %v1925 = vpack.c.b16 %v1538, %v1537
    %v1926 = vpack.c.b16 %v1540, %v1539
    %v1927 = vpack.c.b16 %v1542, %v1541
    %v1928 = vpack.c.b16 %v1544, %v1543
    %v1929 = vpack.c.b16 %v1546, %v1545
    %v1930 = vpack.c.b16 %v1548, %v1547
    %v1931 = vpack.c.b16 %v1550, %v1549
    %v1932 = vpack.c.b16 %v1552, %v1551
    %v1933 = vpack.c.b16 %v1554, %v1553
    %v1934 = vpack.c.b16 %v1556, %v1555
    %v1935 = vpack.c.b16 %v1558, %v1557
    %v1936 = vpack.c.b16 %v1560, %v1559
    %v1937 = vpack.c.b16 %v1562, %v1561
    %v1938 = vpack.c.b16 %v1564, %v1563
    %v1939 = vpack.c.b16 %v1566, %v1565
    %v1940 = vpack.c.b16 %v1568, %v1567
    %v1941 = vpack.c.b16 %v1570, %v1569
    %v1942 = vpack.c.b16 %v1572, %v1571
    %v1943 = vpack.c.b16 %v1574, %v1573
    %v1944 = vpack.c.b16 %v1576, %v1575
    %v1945 = vpack.c.b16 %v1578, %v1577
    %v1946 = vpack.c.b16 %v1580, %v1579
    %v1947 = vpack.c.b16 %v1582, %v1581
    %v1948 = vpack.c.b16 %v1584, %v1583
    %v1949 = vpack.c.b16 %v1586, %v1585
    %v1950 = vpack.c.b16 %v1588, %v1587
    %v1951 = vpack.c.b16 %v1590, %v1589
    %v1952 = vpack.c.b16 %v1592, %v1591
    %v1953 = vpack.c.b16 %v1594, %v1593
    %v1954 = vpack.c.b16 %v1596, %v1595
    %v1955 = vpack.c.b16 %v1598, %v1597
    %v1956 = vpack.c.b16 %v1600, %v1599
    %v1957 = vpack.c.b16 %v1602, %v1601
    %v1958 = vpack.c.b16 %v1604, %v1603
    %v1959 = vpack.c.b16 %v1606, %v1605
    %v1960 = vpack.c.b16 %v1608, %v1607
    %v1961 = vpack.c.b16 %v1610, %v1609
    %v1962 = vpack.c.b16 %v1612, %v1611
    %v1963 = vpack.c.b16 %v1614, %v1613
    %v1964 = vpack.c.b16 %v1616, %v1615
    %v1965 = vpack.c.b16 %v1618, %v1617
    %v1966 = vpack.c.b16 %v1620, %v1619
    %v1967 = vpack.c.b16 %v1622, %v1621
    %v1968 = vpack.c.b16 %v1624, %v1623
    %v1969 = vpack.c.b16 %v1626, %v1625
    %v1970 = vpack.c.b16 %v1628, %v1627
    %v1971 = vpack.c.b16 %v1630, %v1629
    %v1972 = vpack.c.b16 %v1632, %v1631
    %v1973 = vpack.c.b16 %v1634, %v1633
    %v1974 = vpack.c.b16 %v1636, %v1635
    %v1975 = vpack.c.b16 %v1638, %v1637
    %v1976 = vpack.c.b16 %v1640, %v1639
    %v1977 = vpack.c.b16 %v1642, %v1641
    %v1978 = vpack.c.b16 %v1644, %v1643
    %v1979 = vpack.c.b16 %v1646, %v1645
    %v1980 = vpack.c.b16 %v1648, %v1647
    %v1981 = vpack.c.b16 %v1650, %v1649
    %v1982 = vpack.c.b16 %v1652, %v1651
    %v1983 = vpack.c.b16 %v1654, %v1653
    %v1984 = vpack.c.b16 %v1656, %v1655
    %v1985 = vpack.c.b16 %v1658, %v1657
    %v1986 = vpack.c.b16 %v1660, %v1659
    %v1987 = vpack.c.b16 %v1662, %v1661
    %v1988 = vpack.c.b16 %v1664, %v1663
    %v1989 = vpack.c.b16 %v1666, %v1665
    %v1990 = vpack.c.b16 %v1668, %v1667
    %v1991 = vpack.c.b16 %v1670, %v1669
    %v1992 = vpack.c.b16 %v1672, %v1671
    %v1993 = vpack.c.b16 %v1674, %v1673
    %v1994 = vpack.c.b16 %v1676, %v1675
    %v1995 = vpack.c.b16 %v1678, %v1677
    %v1996 = vpack.c.b16 %v1680, %v1679
    %v1997 = vpack.c.b16 %v1682, %v1681
    %v1998 = vpack.c.b16 %v1684, %v1683
    %v1999 = vpack.c.b16 %v1686, %v1685
    %v2000 = vpack.c.b16 %v1688, %v1687
    %v2001 = vpack.c.b16 %v1690, %v1689
    %v2002 = vpack.c.b16 %v1692, %v1691
    %v2003 = vpack.c.b16 %v1694, %v1693
    %v2004 = vpack.c.b16 %v1696, %v1695
    %v2005 = vpack.c.b16 %v1698, %v1697
    %v2006 = vpack.c.b16 %v1700, %v1699
    %v2007 = vpack.c.b16 %v1702, %v1701
    %v2008 = vpack.c.b16 %v1704, %v1703
    %v2009 = vpack.c.b16 %v1706, %v1705
    %v2010 = vpack.c.b16 %v1708, %v1707
    %v2011 = vpack.c.b16 %v1710, %v1709
    %v2012 = vpack.c.b16 %v1712, %v1711
    %v2013 = vpack.c.b16 %v1714, %v1713
    %v2014 = vpack.c.b16 %v1716, %v1715
    %v2015 = vpack.c.b16 %v1718, %v1717
    %v2016 = vpack.c.b16 %v1720, %v1719
    %v2017 = vpack.c.b16 %v1722, %v1721
    %v2018 = vpack.c.b16 %v1724, %v1723
    %v2019 = vpack.c.b16 %v1726, %v1725
    %v2020 = vpack.c.b16 %v1728, %v1727
    %v2021 = vpack.c.b16 %v1730, %v1729
    %v2022 = vpack.c.b16 %v1732, %v1731
    %v2023 = vpack.c.b16 %v1734, %v1733
    %v2024 = vpack.c.b16 %v1736, %v1735
    %v2025 = vpack.c.b16 %v1738, %v1737
    %v2026 = vpack.c.b16 %v1740, %v1739
    %v2027 = vpack.c.b16 %v1742, %v1741
    %v2028 = vpack.c.b16 %v1744, %v1743
    %v2029 = vpack.c.b16 %v1746, %v1745
    %v2030 = vpack.c.b16 %v1748, %v1747
    %v2031 = vpack.c.b16 %v1750, %v1749
    %v2032 = vpack.c.b16 %v1752, %v1751
    %v2033 = vpack.c.b16 %v1754, %v1753
    %v2034 = vpack.c.b16 %v1756, %v1755
    %v2035 = vpack.c.b16 %v1758, %v1757
    %v2036 = vpack.c.b16 %v1760, %v1759
    %v2037 = vpack.c.b16 %v1762, %v1761
    %v2038 = vpack.c.b16 %v1764, %v1763
    %v2039 = vpack.c.b16 %v1766, %v1765
    %v2040 = vpack.c.b16 %v1768, %v1767
    %v2041 = vpack.c.b16 %v1770, %v1769
    %v2042 = vpack.c.b16 %v1772, %v1771
    %v2043 = vpack.c.b16 %v1774, %v1773
    %v2044 = vpack.c.b16 %v1776, %v1775
    %v2045 = vpack.c.b16 %v1778, %v1777
    %v2046 = vpack.c.b16 %v1780, %v1779
    %v2047 = vpack.c.b16 %v1782, %v1781
    %v2048 = vpack.c.b16 %v1784, %v1783
    %v2049 = vpack.c.b16 %v1786, %v1785
    %v2050 = vpack.c.b16 %v1788, %v1787
    %v2051 = vpack.c.b16 %v1790, %v1789
    %v2052 = vpack.c.b16 %v1792, %v1791
    %v2053 = vpack.c.b16 %v1794, %v1793
    %v2054 = vpack.c.b16 %v1796, %v1795
    %v2055 = vpack.c.b16 %v1798, %v1797
    %v2056 = vpack.c.b16 %v1800, %v1799
    %2313 = vmatprep.subr.bf16.mxu0 0
    %2314 = vmatpush1.bf16.msra.mxu0 %v1808
    %2315 = vmatprep.subr.bf16.mxu0 0
    %2316 = vmatpush1.bf16.msra.mxu0 %v1807
    %2317 = vmatprep.subr.bf16.mxu0 0
    %2318 = vmatpush1.bf16.msra.mxu0 %v1806
    %2319 = vmatprep.subr.bf16.mxu0 0
    %2320 = vmatpush1.bf16.msra.mxu0 %v1805
    %2321 = vmatprep.subr.bf16.mxu0 0
    %2322 = vmatpush1.bf16.msra.mxu0 %v1804
    %2323 = vmatprep.subr.bf16.mxu0 0
    %2324 = vmatpush1.bf16.msra.mxu0 %v1803
    %2325 = vmatprep.subr.bf16.mxu0 0
    %2326 = vmatpush1.bf16.msra.mxu0 %v1802
    %2327 = vmatprep.subr.bf16.mxu0 0
    %2328 = vmatpush1.bf16.msra.mxu0 %v1801
    %2329 = vmatprep.subr.bf16.mxu0 0
    %2330 = vmatpush2.bf16.msra.mxu0 %v1816
    %2331 = vmatprep.subr.bf16.mxu0 0
    %2332 = vmatpush2.bf16.msra.mxu0 %v1815
    %2333 = vmatprep.subr.bf16.mxu0 0
    %2334 = vmatpush2.bf16.msra.mxu0 %v1814
    %2335 = vmatprep.subr.bf16.mxu0 0
    %2336 = vmatpush2.bf16.msra.mxu0 %v1813
    %2337 = vmatprep.subr.bf16.mxu0 0
    %2338 = vmatpush2.bf16.msra.mxu0 %v1812
    %2339 = vmatprep.subr.bf16.mxu0 0
    %2340 = vmatpush2.bf16.msra.mxu0 %v1811
    %2341 = vmatprep.subr.bf16.mxu0 0
    %2342 = vmatpush2.bf16.msra.mxu0 %v1810
    %2343 = vmatprep.subr.bf16.mxu0 0
    %2344 = vmatpush2.bf16.msra.mxu0 %v1809
    %2345 = vmatprep.mubr.bf16.mxu0 %v586
    %2346 = vmatmul.mubr.bf16.gmra.mxu0 %v572
    %v2347 = vpop.f32.mrf.mxu0
    %v2348 = vadd.f32 %v543, %v2347
    %v2349 = vpop.f32.mrf.mxu0
    %v2350 = vpop.f32.mrf.mxu0
    %v2351 = vpop.f32.mrf.mxu0
    %2352 = vdwg.mxu0
    %2353 = vmatprep.subr.bf16.mxu0 0
    %2354 = vmatpush1.bf16.msra.mxu0 %v1824
    %2355 = vmatprep.subr.bf16.mxu0 0
    %2356 = vmatpush1.bf16.msra.mxu0 %v1823
    %2357 = vmatprep.subr.bf16.mxu0 0
    %2358 = vmatpush1.bf16.msra.mxu0 %v1822
    %2359 = vmatprep.subr.bf16.mxu0 0
    %2360 = vmatpush1.bf16.msra.mxu0 %v1821
    %2361 = vmatprep.subr.bf16.mxu0 0
    %2362 = vmatpush1.bf16.msra.mxu0 %v1820
    %2363 = vmatprep.subr.bf16.mxu0 0
    %2364 = vmatpush1.bf16.msra.mxu0 %v1819
    %2365 = vmatprep.subr.bf16.mxu0 0
    %2366 = vmatpush1.bf16.msra.mxu0 %v1818
    %2367 = vmatprep.subr.bf16.mxu0 0
    %2368 = vmatpush1.bf16.msra.mxu0 %v1817
    %2369 = vmatprep.subr.bf16.mxu0 0
    %2370 = vmatpush2.bf16.msra.mxu0 %v1832
    %2371 = vmatprep.subr.bf16.mxu0 0
    %2372 = vmatpush2.bf16.msra.mxu0 %v1831
    %2373 = vmatprep.subr.bf16.mxu0 0
    %2374 = vmatpush2.bf16.msra.mxu0 %v1830
    %2375 = vmatprep.subr.bf16.mxu0 0
    %2376 = vmatpush2.bf16.msra.mxu0 %v1829
    %2377 = vmatprep.subr.bf16.mxu0 0
    %2378 = vmatpush2.bf16.msra.mxu0 %v1828
    %2379 = vmatprep.subr.bf16.mxu0 0
    %2380 = vmatpush2.bf16.msra.mxu0 %v1827
    %2381 = vmatprep.subr.bf16.mxu0 0
    %2382 = vmatpush2.bf16.msra.mxu0 %v1826
    %2383 = vmatprep.subr.bf16.mxu0 0
    %2384 = vmatpush2.bf16.msra.mxu0 %v1825
    %2385 = vmatprep.mubr.bf16.mxu0 %v596
    %2386 = vmatmul.mubr.bf16.gmra.mxu0 %v594
    %v2387 = vpop.f32.mrf.mxu0
    %v2388 = vadd.f32 %v2348, %v2387
    %v2389 = vpop.f32.mrf.mxu0
    %v2390 = vpop.f32.mrf.mxu0
    %v2391 = vpop.f32.mrf.mxu0
    %2392 = vdwg.mxu0
    %2393 = vmatprep.subr.bf16.mxu0 0
    %2394 = vmatpush1.bf16.msra.mxu0 %v1840
    %2395 = vmatprep.subr.bf16.mxu0 0
    %2396 = vmatpush1.bf16.msra.mxu0 %v1839
    %2397 = vmatprep.subr.bf16.mxu0 0
    %2398 = vmatpush1.bf16.msra.mxu0 %v1838
    %2399 = vmatprep.subr.bf16.mxu0 0
    %2400 = vmatpush1.bf16.msra.mxu0 %v1837
    %2401 = vmatprep.subr.bf16.mxu0 0
    %2402 = vmatpush1.bf16.msra.mxu0 %v1836
    %2403 = vmatprep.subr.bf16.mxu0 0
    %2404 = vmatpush1.bf16.msra.mxu0 %v1835
    %2405 = vmatprep.subr.bf16.mxu0 0
    %2406 = vmatpush1.bf16.msra.mxu0 %v1834
    %2407 = vmatprep.subr.bf16.mxu0 0
    %2408 = vmatpush1.bf16.msra.mxu0 %v1833
    %2409 = vmatprep.subr.bf16.mxu0 0
    %2410 = vmatpush2.bf16.msra.mxu0 %v1848
    %2411 = vmatprep.subr.bf16.mxu0 0
    %2412 = vmatpush2.bf16.msra.mxu0 %v1847
    %2413 = vmatprep.subr.bf16.mxu0 0
    %2414 = vmatpush2.bf16.msra.mxu0 %v1846
    %2415 = vmatprep.subr.bf16.mxu0 0
    %2416 = vmatpush2.bf16.msra.mxu0 %v1845
    %2417 = vmatprep.subr.bf16.mxu0 0
    %2418 = vmatpush2.bf16.msra.mxu0 %v1844
    %2419 = vmatprep.subr.bf16.mxu0 0
    %2420 = vmatpush2.bf16.msra.mxu0 %v1843
    %2421 = vmatprep.subr.bf16.mxu0 0
    %2422 = vmatpush2.bf16.msra.mxu0 %v1842
    %2423 = vmatprep.subr.bf16.mxu0 0
    %2424 = vmatpush2.bf16.msra.mxu0 %v1841
    %2425 = vmatprep.mubr.bf16.mxu0 %v593
    %2426 = vmatmul.mubr.bf16.gmra.mxu0 %v579
    %v2427 = vpop.f32.mrf.mxu0
    %v2428 = vadd.f32 %v2388, %v2427
    %v2429 = vpop.f32.mrf.mxu0
    %v2430 = vpop.f32.mrf.mxu0
    %v2431 = vpop.f32.mrf.mxu0
    %2432 = vdwg.mxu0
    %2433 = vmatprep.subr.bf16.mxu0 0
    %2434 = vmatpush1.bf16.msra.mxu0 %v1856
    %2435 = vmatprep.subr.bf16.mxu0 0
    %2436 = vmatpush1.bf16.msra.mxu0 %v1855
    %2437 = vmatprep.subr.bf16.mxu0 0
    %2438 = vmatpush1.bf16.msra.mxu0 %v1854
    %2439 = vmatprep.subr.bf16.mxu0 0
    %2440 = vmatpush1.bf16.msra.mxu0 %v1853
    %2441 = vmatprep.subr.bf16.mxu0 0
    %2442 = vmatpush1.bf16.msra.mxu0 %v1852
    %2443 = vmatprep.subr.bf16.mxu0 0
    %2444 = vmatpush1.bf16.msra.mxu0 %v1851
    %2445 = vmatprep.subr.bf16.mxu0 0
    %2446 = vmatpush1.bf16.msra.mxu0 %v1850
    %2447 = vmatprep.subr.bf16.mxu0 0
    %2448 = vmatpush1.bf16.msra.mxu0 %v1849
    %2449 = vmatprep.subr.bf16.mxu0 0
    %2450 = vmatpush2.bf16.msra.mxu0 %v1864
    %2451 = vmatprep.subr.bf16.mxu0 0
    %2452 = vmatpush2.bf16.msra.mxu0 %v1863
    %2453 = vmatprep.subr.bf16.mxu0 0
    %2454 = vmatpush2.bf16.msra.mxu0 %v1862
    %2455 = vmatprep.subr.bf16.mxu0 0
    %2456 = vmatpush2.bf16.msra.mxu0 %v1861
    %2457 = vmatprep.subr.bf16.mxu0 0
    %2458 = vmatpush2.bf16.msra.mxu0 %v1860
    %2459 = vmatprep.subr.bf16.mxu0 0
    %2460 = vmatpush2.bf16.msra.mxu0 %v1859
    %2461 = vmatprep.subr.bf16.mxu0 0
    %2462 = vmatpush2.bf16.msra.mxu0 %v1858
    %2463 = vmatprep.subr.bf16.mxu0 0
    %2464 = vmatpush2.bf16.msra.mxu0 %v1857
    %2465 = vmatprep.mubr.bf16.mxu0 %v597
    %2466 = vmatmul.mubr.bf16.gmra.mxu0 %v595
    %v2467 = vpop.f32.mrf.mxu0
    %v2468 = vadd.f32 %v2428, %v2467
    %v2469 = vpop.f32.mrf.mxu0
    %v2470 = vpop.f32.mrf.mxu0
    %v2471 = vpop.f32.mrf.mxu0
    %2472 = vdwg.mxu0
    %2473 = vmatprep.subr.bf16.mxu0 0
    %2474 = vmatpush1.bf16.msra.mxu0 %v1872
    %2475 = vmatprep.subr.bf16.mxu0 0
    %2476 = vmatpush1.bf16.msra.mxu0 %v1871
    %2477 = vmatprep.subr.bf16.mxu0 0
    %2478 = vmatpush1.bf16.msra.mxu0 %v1870
    %2479 = vmatprep.subr.bf16.mxu0 0
    %2480 = vmatpush1.bf16.msra.mxu0 %v1869
    %2481 = vmatprep.subr.bf16.mxu0 0
    %2482 = vmatpush1.bf16.msra.mxu0 %v1868
    %2483 = vmatprep.subr.bf16.mxu0 0
    %2484 = vmatpush1.bf16.msra.mxu0 %v1867
    %2485 = vmatprep.subr.bf16.mxu0 0
    %2486 = vmatpush1.bf16.msra.mxu0 %v1866
    %2487 = vmatprep.subr.bf16.mxu0 0
    %2488 = vmatpush1.bf16.msra.mxu0 %v1865
    %2489 = vmatprep.subr.bf16.mxu0 0
    %2490 = vmatpush2.bf16.msra.mxu0 %v1880
    %2491 = vmatprep.subr.bf16.mxu0 0
    %2492 = vmatpush2.bf16.msra.mxu0 %v1879
    %2493 = vmatprep.subr.bf16.mxu0 0
    %2494 = vmatpush2.bf16.msra.mxu0 %v1878
    %2495 = vmatprep.subr.bf16.mxu0 0
    %2496 = vmatpush2.bf16.msra.mxu0 %v1877
    %2497 = vmatprep.subr.bf16.mxu0 0
    %2498 = vmatpush2.bf16.msra.mxu0 %v1876
    %2499 = vmatprep.subr.bf16.mxu0 0
    %2500 = vmatpush2.bf16.msra.mxu0 %v1875
    %2501 = vmatprep.subr.bf16.mxu0 0
    %2502 = vmatpush2.bf16.msra.mxu0 %v1874
    %2503 = vmatprep.subr.bf16.mxu0 0
    %2504 = vmatpush2.bf16.msra.mxu0 %v1873
    %2505 = vmatprep.mubr.bf16.mxu0 %v635
    %2506 = vmatmul.mubr.bf16.gmra.mxu0 %v621
    %v2507 = vpop.f32.mrf.mxu0
    %v2508 = vadd.f32 %v2468, %v2507
    %v2509 = vpop.f32.mrf.mxu0
    %v2510 = vpop.f32.mrf.mxu0
    %v2511 = vpop.f32.mrf.mxu0
    %2512 = vdwg.mxu0
    %2513 = vmatprep.subr.bf16.mxu0 0
    %2514 = vmatpush1.bf16.msra.mxu0 %v1888
    %2515 = vmatprep.subr.bf16.mxu0 0
    %2516 = vmatpush1.bf16.msra.mxu0 %v1887
    %2517 = vmatprep.subr.bf16.mxu0 0
    %2518 = vmatpush1.bf16.msra.mxu0 %v1886
    %2519 = vmatprep.subr.bf16.mxu0 0
    %2520 = vmatpush1.bf16.msra.mxu0 %v1885
    %2521 = vmatprep.subr.bf16.mxu0 0
    %2522 = vmatpush1.bf16.msra.mxu0 %v1884
    %2523 = vmatprep.subr.bf16.mxu0 0
    %2524 = vmatpush1.bf16.msra.mxu0 %v1883
    %2525 = vmatprep.subr.bf16.mxu0 0
    %2526 = vmatpush1.bf16.msra.mxu0 %v1882
    %2527 = vmatprep.subr.bf16.mxu0 0
    %2528 = vmatpush1.bf16.msra.mxu0 %v1881
    %2529 = vmatprep.subr.bf16.mxu0 0
    %2530 = vmatpush2.bf16.msra.mxu0 %v1896
    %2531 = vmatprep.subr.bf16.mxu0 0
    %2532 = vmatpush2.bf16.msra.mxu0 %v1895
    %2533 = vmatprep.subr.bf16.mxu0 0
    %2534 = vmatpush2.bf16.msra.mxu0 %v1894
    %2535 = vmatprep.subr.bf16.mxu0 0
    %2536 = vmatpush2.bf16.msra.mxu0 %v1893
    %2537 = vmatprep.subr.bf16.mxu0 0
    %2538 = vmatpush2.bf16.msra.mxu0 %v1892
    %2539 = vmatprep.subr.bf16.mxu0 0
    %2540 = vmatpush2.bf16.msra.mxu0 %v1891
    %2541 = vmatprep.subr.bf16.mxu0 0
    %2542 = vmatpush2.bf16.msra.mxu0 %v1890
    %2543 = vmatprep.subr.bf16.mxu0 0
    %2544 = vmatpush2.bf16.msra.mxu0 %v1889
    %2545 = vmatprep.mubr.bf16.mxu0 %v645
    %2546 = vmatmul.mubr.bf16.gmra.mxu0 %v643
    %v2547 = vpop.f32.mrf.mxu0
    %v2548 = vadd.f32 %v2508, %v2547
    %v2549 = vpop.f32.mrf.mxu0
    %v2550 = vpop.f32.mrf.mxu0
    %v2551 = vpop.f32.mrf.mxu0
    %2552 = vdwg.mxu0
    %2553 = vmatprep.subr.bf16.mxu0 0
    %2554 = vmatpush1.bf16.msra.mxu0 %v1904
    %2555 = vmatprep.subr.bf16.mxu0 0
    %2556 = vmatpush1.bf16.msra.mxu0 %v1903
    %2557 = vmatprep.subr.bf16.mxu0 0
    %2558 = vmatpush1.bf16.msra.mxu0 %v1902
    %2559 = vmatprep.subr.bf16.mxu0 0
    %2560 = vmatpush1.bf16.msra.mxu0 %v1901
    %2561 = vmatprep.subr.bf16.mxu0 0
    %2562 = vmatpush1.bf16.msra.mxu0 %v1900
    %2563 = vmatprep.subr.bf16.mxu0 0
    %2564 = vmatpush1.bf16.msra.mxu0 %v1899
    %2565 = vmatprep.subr.bf16.mxu0 0
    %2566 = vmatpush1.bf16.msra.mxu0 %v1898
    %2567 = vmatprep.subr.bf16.mxu0 0
    %2568 = vmatpush1.bf16.msra.mxu0 %v1897
    %2569 = vmatprep.subr.bf16.mxu0 0
    %2570 = vmatpush2.bf16.msra.mxu0 %v1912
    %2571 = vmatprep.subr.bf16.mxu0 0
    %2572 = vmatpush2.bf16.msra.mxu0 %v1911
    %2573 = vmatprep.subr.bf16.mxu0 0
    %2574 = vmatpush2.bf16.msra.mxu0 %v1910
    %2575 = vmatprep.subr.bf16.mxu0 0
    %2576 = vmatpush2.bf16.msra.mxu0 %v1909
    %2577 = vmatprep.subr.bf16.mxu0 0
    %2578 = vmatpush2.bf16.msra.mxu0 %v1908
    %2579 = vmatprep.subr.bf16.mxu0 0
    %2580 = vmatpush2.bf16.msra.mxu0 %v1907
    %2581 = vmatprep.subr.bf16.mxu0 0
    %2582 = vmatpush2.bf16.msra.mxu0 %v1906
    %2583 = vmatprep.subr.bf16.mxu0 0
    %2584 = vmatpush2.bf16.msra.mxu0 %v1905
    %2585 = vmatprep.mubr.bf16.mxu0 %v642
    %2586 = vmatmul.mubr.bf16.gmra.mxu0 %v628
    %v2587 = vpop.f32.mrf.mxu0
    %v2588 = vadd.f32 %v2548, %v2587
    %v2589 = vpop.f32.mrf.mxu0
    %v2590 = vpop.f32.mrf.mxu0
    %v2591 = vpop.f32.mrf.mxu0
    %2592 = vdwg.mxu0
    %2593 = vmatprep.subr.bf16.mxu0 0
    %2594 = vmatpush1.bf16.msra.mxu0 %v1920
    %2595 = vmatprep.subr.bf16.mxu0 0
    %2596 = vmatpush1.bf16.msra.mxu0 %v1919
    %2597 = vmatprep.subr.bf16.mxu0 0
    %2598 = vmatpush1.bf16.msra.mxu0 %v1918
    %2599 = vmatprep.subr.bf16.mxu0 0
    %2600 = vmatpush1.bf16.msra.mxu0 %v1917
    %2601 = vmatprep.subr.bf16.mxu0 0
    %2602 = vmatpush1.bf16.msra.mxu0 %v1916
    %2603 = vmatprep.subr.bf16.mxu0 0
    %2604 = vmatpush1.bf16.msra.mxu0 %v1915
    %2605 = vmatprep.subr.bf16.mxu0 0
    %2606 = vmatpush1.bf16.msra.mxu0 %v1914
    %2607 = vmatprep.subr.bf16.mxu0 0
    %2608 = vmatpush1.bf16.msra.mxu0 %v1913
    %2609 = vmatprep.subr.bf16.mxu0 0
    %2610 = vmatpush2.bf16.msra.mxu0 %v1928
    %2611 = vmatprep.subr.bf16.mxu0 0
    %2612 = vmatpush2.bf16.msra.mxu0 %v1927
    %2613 = vmatprep.subr.bf16.mxu0 0
    %2614 = vmatpush2.bf16.msra.mxu0 %v1926
    %2615 = vmatprep.subr.bf16.mxu0 0
    %2616 = vmatpush2.bf16.msra.mxu0 %v1925
    %2617 = vmatprep.subr.bf16.mxu0 0
    %2618 = vmatpush2.bf16.msra.mxu0 %v1924
    %2619 = vmatprep.subr.bf16.mxu0 0
    %2620 = vmatpush2.bf16.msra.mxu0 %v1923
    %2621 = vmatprep.subr.bf16.mxu0 0
    %2622 = vmatpush2.bf16.msra.mxu0 %v1922
    %2623 = vmatprep.subr.bf16.mxu0 0
    %2624 = vmatpush2.bf16.msra.mxu0 %v1921
    %2625 = vmatprep.mubr.bf16.mxu0 %v646
    %2626 = vmatmul.mubr.bf16.gmra.mxu0 %v644
    %v2627 = vpop.f32.mrf.mxu0
    %v2628 = vadd.f32 %v2588, %v2627
    %v2629 = vpop.f32.mrf.mxu0
    %v2630 = vpop.f32.mrf.mxu0
    %v2631 = vpop.f32.mrf.mxu0
    %2632 = vdwg.mxu0
    %2633 = vmatprep.subr.bf16.mxu0 0
    %2634 = vmatpush1.bf16.msra.mxu0 %v1936
    %2635 = vmatprep.subr.bf16.mxu0 0
    %2636 = vmatpush1.bf16.msra.mxu0 %v1935
    %2637 = vmatprep.subr.bf16.mxu0 0
    %2638 = vmatpush1.bf16.msra.mxu0 %v1934
    %2639 = vmatprep.subr.bf16.mxu0 0
    %2640 = vmatpush1.bf16.msra.mxu0 %v1933
    %2641 = vmatprep.subr.bf16.mxu0 0
    %2642 = vmatpush1.bf16.msra.mxu0 %v1932
    %2643 = vmatprep.subr.bf16.mxu0 0
    %2644 = vmatpush1.bf16.msra.mxu0 %v1931
    %2645 = vmatprep.subr.bf16.mxu0 0
    %2646 = vmatpush1.bf16.msra.mxu0 %v1930
    %2647 = vmatprep.subr.bf16.mxu0 0
    %2648 = vmatpush1.bf16.msra.mxu0 %v1929
    %2649 = vmatprep.subr.bf16.mxu0 0
    %2650 = vmatpush2.bf16.msra.mxu0 %v1944
    %2651 = vmatprep.subr.bf16.mxu0 0
    %2652 = vmatpush2.bf16.msra.mxu0 %v1943
    %2653 = vmatprep.subr.bf16.mxu0 0
    %2654 = vmatpush2.bf16.msra.mxu0 %v1942
    %2655 = vmatprep.subr.bf16.mxu0 0
    %2656 = vmatpush2.bf16.msra.mxu0 %v1941
    %2657 = vmatprep.subr.bf16.mxu0 0
    %2658 = vmatpush2.bf16.msra.mxu0 %v1940
    %2659 = vmatprep.subr.bf16.mxu0 0
    %2660 = vmatpush2.bf16.msra.mxu0 %v1939
    %2661 = vmatprep.subr.bf16.mxu0 0
    %2662 = vmatpush2.bf16.msra.mxu0 %v1938
    %2663 = vmatprep.subr.bf16.mxu0 0
    %2664 = vmatpush2.bf16.msra.mxu0 %v1937
    %2665 = vmatprep.mubr.bf16.mxu0 %v684
    %2666 = vmatmul.mubr.bf16.gmra.mxu0 %v670
    %v2667 = vpop.f32.mrf.mxu0
    %v2668 = vadd.f32 %v2628, %v2667
    %v2669 = vpop.f32.mrf.mxu0
    %v2670 = vpop.f32.mrf.mxu0
    %v2671 = vpop.f32.mrf.mxu0
    %2672 = vdwg.mxu0
    %2673 = vmatprep.subr.bf16.mxu0 0
    %2674 = vmatpush1.bf16.msra.mxu0 %v1952
    %2675 = vmatprep.subr.bf16.mxu0 0
    %2676 = vmatpush1.bf16.msra.mxu0 %v1951
    %2677 = vmatprep.subr.bf16.mxu0 0
    %2678 = vmatpush1.bf16.msra.mxu0 %v1950
    %2679 = vmatprep.subr.bf16.mxu0 0
    %2680 = vmatpush1.bf16.msra.mxu0 %v1949
    %2681 = vmatprep.subr.bf16.mxu0 0
    %2682 = vmatpush1.bf16.msra.mxu0 %v1948
    %2683 = vmatprep.subr.bf16.mxu0 0
    %2684 = vmatpush1.bf16.msra.mxu0 %v1947
    %2685 = vmatprep.subr.bf16.mxu0 0
    %2686 = vmatpush1.bf16.msra.mxu0 %v1946
    %2687 = vmatprep.subr.bf16.mxu0 0
    %2688 = vmatpush1.bf16.msra.mxu0 %v1945
    %2689 = vmatprep.subr.bf16.mxu0 0
    %2690 = vmatpush2.bf16.msra.mxu0 %v1960
    %2691 = vmatprep.subr.bf16.mxu0 0
    %2692 = vmatpush2.bf16.msra.mxu0 %v1959
    %2693 = vmatprep.subr.bf16.mxu0 0
    %2694 = vmatpush2.bf16.msra.mxu0 %v1958
    %2695 = vmatprep.subr.bf16.mxu0 0
    %2696 = vmatpush2.bf16.msra.mxu0 %v1957
    %2697 = vmatprep.subr.bf16.mxu0 0
    %2698 = vmatpush2.bf16.msra.mxu0 %v1956
    %2699 = vmatprep.subr.bf16.mxu0 0
    %2700 = vmatpush2.bf16.msra.mxu0 %v1955
    %2701 = vmatprep.subr.bf16.mxu0 0
    %2702 = vmatpush2.bf16.msra.mxu0 %v1954
    %2703 = vmatprep.subr.bf16.mxu0 0
    %2704 = vmatpush2.bf16.msra.mxu0 %v1953
    %2705 = vmatprep.mubr.bf16.mxu0 %v694
    %2706 = vmatmul.mubr.bf16.gmra.mxu0 %v692
    %v2707 = vpop.f32.mrf.mxu0
    %v2708 = vadd.f32 %v2668, %v2707
    %v2709 = vpop.f32.mrf.mxu0
    %v2710 = vpop.f32.mrf.mxu0
    %v2711 = vpop.f32.mrf.mxu0
    %2712 = vdwg.mxu0
    %2713 = vmatprep.subr.bf16.mxu0 0
    %2714 = vmatpush1.bf16.msra.mxu0 %v1968
    %2715 = vmatprep.subr.bf16.mxu0 0
    %2716 = vmatpush1.bf16.msra.mxu0 %v1967
    %2717 = vmatprep.subr.bf16.mxu0 0
    %2718 = vmatpush1.bf16.msra.mxu0 %v1966
    %2719 = vmatprep.subr.bf16.mxu0 0
    %2720 = vmatpush1.bf16.msra.mxu0 %v1965
    %2721 = vmatprep.subr.bf16.mxu0 0
    %2722 = vmatpush1.bf16.msra.mxu0 %v1964
    %2723 = vmatprep.subr.bf16.mxu0 0
    %2724 = vmatpush1.bf16.msra.mxu0 %v1963
    %2725 = vmatprep.subr.bf16.mxu0 0
    %2726 = vmatpush1.bf16.msra.mxu0 %v1962
    %2727 = vmatprep.subr.bf16.mxu0 0
    %2728 = vmatpush1.bf16.msra.mxu0 %v1961
    %2729 = vmatprep.subr.bf16.mxu0 0
    %2730 = vmatpush2.bf16.msra.mxu0 %v1976
    %2731 = vmatprep.subr.bf16.mxu0 0
    %2732 = vmatpush2.bf16.msra.mxu0 %v1975
    %2733 = vmatprep.subr.bf16.mxu0 0
    %2734 = vmatpush2.bf16.msra.mxu0 %v1974
    %2735 = vmatprep.subr.bf16.mxu0 0
    %2736 = vmatpush2.bf16.msra.mxu0 %v1973
    %2737 = vmatprep.subr.bf16.mxu0 0
    %2738 = vmatpush2.bf16.msra.mxu0 %v1972
    %2739 = vmatprep.subr.bf16.mxu0 0
    %2740 = vmatpush2.bf16.msra.mxu0 %v1971
    %2741 = vmatprep.subr.bf16.mxu0 0
    %2742 = vmatpush2.bf16.msra.mxu0 %v1970
    %2743 = vmatprep.subr.bf16.mxu0 0
    %2744 = vmatpush2.bf16.msra.mxu0 %v1969
    %2745 = vmatprep.mubr.bf16.mxu0 %v691
    %2746 = vmatmul.mubr.bf16.gmra.mxu0 %v677
    %v2747 = vpop.f32.mrf.mxu0
    %v2748 = vadd.f32 %v2708, %v2747
    %v2749 = vpop.f32.mrf.mxu0
    %v2750 = vpop.f32.mrf.mxu0
    %v2751 = vpop.f32.mrf.mxu0
    %2752 = vdwg.mxu0
    %2753 = vmatprep.subr.bf16.mxu0 0
    %2754 = vmatpush1.bf16.msra.mxu0 %v1984
    %2755 = vmatprep.subr.bf16.mxu0 0
    %2756 = vmatpush1.bf16.msra.mxu0 %v1983
    %2757 = vmatprep.subr.bf16.mxu0 0
    %2758 = vmatpush1.bf16.msra.mxu0 %v1982
    %2759 = vmatprep.subr.bf16.mxu0 0
    %2760 = vmatpush1.bf16.msra.mxu0 %v1981
    %2761 = vmatprep.subr.bf16.mxu0 0
    %2762 = vmatpush1.bf16.msra.mxu0 %v1980
    %2763 = vmatprep.subr.bf16.mxu0 0
    %2764 = vmatpush1.bf16.msra.mxu0 %v1979
    %2765 = vmatprep.subr.bf16.mxu0 0
    %2766 = vmatpush1.bf16.msra.mxu0 %v1978
    %2767 = vmatprep.subr.bf16.mxu0 0
    %2768 = vmatpush1.bf16.msra.mxu0 %v1977
    %2769 = vmatprep.subr.bf16.mxu0 0
    %2770 = vmatpush2.bf16.msra.mxu0 %v1992
    %2771 = vmatprep.subr.bf16.mxu0 0
    %2772 = vmatpush2.bf16.msra.mxu0 %v1991
    %2773 = vmatprep.subr.bf16.mxu0 0
    %2774 = vmatpush2.bf16.msra.mxu0 %v1990
    %2775 = vmatprep.subr.bf16.mxu0 0
    %2776 = vmatpush2.bf16.msra.mxu0 %v1989
    %2777 = vmatprep.subr.bf16.mxu0 0
    %2778 = vmatpush2.bf16.msra.mxu0 %v1988
    %2779 = vmatprep.subr.bf16.mxu0 0
    %2780 = vmatpush2.bf16.msra.mxu0 %v1987
    %2781 = vmatprep.subr.bf16.mxu0 0
    %2782 = vmatpush2.bf16.msra.mxu0 %v1986
    %2783 = vmatprep.subr.bf16.mxu0 0
    %2784 = vmatpush2.bf16.msra.mxu0 %v1985
    %2785 = vmatprep.mubr.bf16.mxu0 %v695
    %2786 = vmatmul.mubr.bf16.gmra.mxu0 %v693
    %v2787 = vpop.f32.mrf.mxu0
    %v2788 = vadd.f32 %v2748, %v2787
    %v2789 = vpop.f32.mrf.mxu0
    %v2790 = vpop.f32.mrf.mxu0
    %v2791 = vpop.f32.mrf.mxu0
    %2792 = vdwg.mxu0
    %2793 = vmatprep.subr.bf16.mxu0 0
    %2794 = vmatpush1.bf16.msra.mxu0 %v2000
    %2795 = vmatprep.subr.bf16.mxu0 0
    %2796 = vmatpush1.bf16.msra.mxu0 %v1999
    %2797 = vmatprep.subr.bf16.mxu0 0
    %2798 = vmatpush1.bf16.msra.mxu0 %v1998
    %2799 = vmatprep.subr.bf16.mxu0 0
    %2800 = vmatpush1.bf16.msra.mxu0 %v1997
    %2801 = vmatprep.subr.bf16.mxu0 0
    %2802 = vmatpush1.bf16.msra.mxu0 %v1996
    %2803 = vmatprep.subr.bf16.mxu0 0
    %2804 = vmatpush1.bf16.msra.mxu0 %v1995
    %2805 = vmatprep.subr.bf16.mxu0 0
    %2806 = vmatpush1.bf16.msra.mxu0 %v1994
    %2807 = vmatprep.subr.bf16.mxu0 0
    %2808 = vmatpush1.bf16.msra.mxu0 %v1993
    %2809 = vmatprep.subr.bf16.mxu0 0
    %2810 = vmatpush2.bf16.msra.mxu0 %v2008
    %2811 = vmatprep.subr.bf16.mxu0 0
    %2812 = vmatpush2.bf16.msra.mxu0 %v2007
    %2813 = vmatprep.subr.bf16.mxu0 0
    %2814 = vmatpush2.bf16.msra.mxu0 %v2006
    %2815 = vmatprep.subr.bf16.mxu0 0
    %2816 = vmatpush2.bf16.msra.mxu0 %v2005
    %2817 = vmatprep.subr.bf16.mxu0 0
    %2818 = vmatpush2.bf16.msra.mxu0 %v2004
    %2819 = vmatprep.subr.bf16.mxu0 0
    %2820 = vmatpush2.bf16.msra.mxu0 %v2003
    %2821 = vmatprep.subr.bf16.mxu0 0
    %2822 = vmatpush2.bf16.msra.mxu0 %v2002
    %2823 = vmatprep.subr.bf16.mxu0 0
    %2824 = vmatpush2.bf16.msra.mxu0 %v2001
    %2825 = vmatprep.mubr.bf16.mxu0 %v733
    %2826 = vmatmul.mubr.bf16.gmra.mxu0 %v719
    %v2827 = vpop.f32.mrf.mxu0
    %v2828 = vadd.f32 %v2788, %v2827
    %v2829 = vpop.f32.mrf.mxu0
    %v2830 = vpop.f32.mrf.mxu0
    %v2831 = vpop.f32.mrf.mxu0
    %2832 = vdwg.mxu0
    %2833 = vmatprep.subr.bf16.mxu0 0
    %2834 = vmatpush1.bf16.msra.mxu0 %v2016
    %2835 = vmatprep.subr.bf16.mxu0 0
    %2836 = vmatpush1.bf16.msra.mxu0 %v2015
    %2837 = vmatprep.subr.bf16.mxu0 0
    %2838 = vmatpush1.bf16.msra.mxu0 %v2014
    %2839 = vmatprep.subr.bf16.mxu0 0
    %2840 = vmatpush1.bf16.msra.mxu0 %v2013
    %2841 = vmatprep.subr.bf16.mxu0 0
    %2842 = vmatpush1.bf16.msra.mxu0 %v2012
    %2843 = vmatprep.subr.bf16.mxu0 0
    %2844 = vmatpush1.bf16.msra.mxu0 %v2011
    %2845 = vmatprep.subr.bf16.mxu0 0
    %2846 = vmatpush1.bf16.msra.mxu0 %v2010
    %2847 = vmatprep.subr.bf16.mxu0 0
    %2848 = vmatpush1.bf16.msra.mxu0 %v2009
    %2849 = vmatprep.subr.bf16.mxu0 0
    %2850 = vmatpush2.bf16.msra.mxu0 %v2024
    %2851 = vmatprep.subr.bf16.mxu0 0
    %2852 = vmatpush2.bf16.msra.mxu0 %v2023
    %2853 = vmatprep.subr.bf16.mxu0 0
    %2854 = vmatpush2.bf16.msra.mxu0 %v2022
    %2855 = vmatprep.subr.bf16.mxu0 0
    %2856 = vmatpush2.bf16.msra.mxu0 %v2021
    %2857 = vmatprep.subr.bf16.mxu0 0
    %2858 = vmatpush2.bf16.msra.mxu0 %v2020
    %2859 = vmatprep.subr.bf16.mxu0 0
    %2860 = vmatpush2.bf16.msra.mxu0 %v2019
    %2861 = vmatprep.subr.bf16.mxu0 0
    %2862 = vmatpush2.bf16.msra.mxu0 %v2018
    %2863 = vmatprep.subr.bf16.mxu0 0
    %2864 = vmatpush2.bf16.msra.mxu0 %v2017
    %2865 = vmatprep.mubr.bf16.mxu0 %v743
    %2866 = vmatmul.mubr.bf16.gmra.mxu0 %v741
    %v2867 = vpop.f32.mrf.mxu0
    %v2868 = vadd.f32 %v2828, %v2867
    %v2869 = vpop.f32.mrf.mxu0
    %v2870 = vpop.f32.mrf.mxu0
    %v2871 = vpop.f32.mrf.mxu0
    %2872 = vdwg.mxu0
    %2873 = vmatprep.subr.bf16.mxu0 0
    %2874 = vmatpush1.bf16.msra.mxu0 %v2032
    %2875 = vmatprep.subr.bf16.mxu0 0
    %2876 = vmatpush1.bf16.msra.mxu0 %v2031
    %2877 = vmatprep.subr.bf16.mxu0 0
    %2878 = vmatpush1.bf16.msra.mxu0 %v2030
    %2879 = vmatprep.subr.bf16.mxu0 0
    %2880 = vmatpush1.bf16.msra.mxu0 %v2029
    %2881 = vmatprep.subr.bf16.mxu0 0
    %2882 = vmatpush1.bf16.msra.mxu0 %v2028
    %2883 = vmatprep.subr.bf16.mxu0 0
    %2884 = vmatpush1.bf16.msra.mxu0 %v2027
    %2885 = vmatprep.subr.bf16.mxu0 0
    %2886 = vmatpush1.bf16.msra.mxu0 %v2026
    %2887 = vmatprep.subr.bf16.mxu0 0
    %2888 = vmatpush1.bf16.msra.mxu0 %v2025
    %2889 = vmatprep.subr.bf16.mxu0 0
    %2890 = vmatpush2.bf16.msra.mxu0 %v2040
    %2891 = vmatprep.subr.bf16.mxu0 0
    %2892 = vmatpush2.bf16.msra.mxu0 %v2039
    %2893 = vmatprep.subr.bf16.mxu0 0
    %2894 = vmatpush2.bf16.msra.mxu0 %v2038
    %2895 = vmatprep.subr.bf16.mxu0 0
    %2896 = vmatpush2.bf16.msra.mxu0 %v2037
    %2897 = vmatprep.subr.bf16.mxu0 0
    %2898 = vmatpush2.bf16.msra.mxu0 %v2036
    %2899 = vmatprep.subr.bf16.mxu0 0
    %2900 = vmatpush2.bf16.msra.mxu0 %v2035
    %2901 = vmatprep.subr.bf16.mxu0 0
    %2902 = vmatpush2.bf16.msra.mxu0 %v2034
    %2903 = vmatprep.subr.bf16.mxu0 0
    %2904 = vmatpush2.bf16.msra.mxu0 %v2033
    %2905 = vmatprep.mubr.bf16.mxu0 %v740
    %2906 = vmatmul.mubr.bf16.gmra.mxu0 %v726
    %v2907 = vpop.f32.mrf.mxu0
    %v2908 = vadd.f32 %v2868, %v2907
    %v2909 = vpop.f32.mrf.mxu0
    %v2910 = vpop.f32.mrf.mxu0
    %v2911 = vpop.f32.mrf.mxu0
    %2912 = vdwg.mxu0
    %2913 = vmatprep.subr.bf16.mxu0 0
    %2914 = vmatpush1.bf16.msra.mxu0 %v2048
    %2915 = vmatprep.subr.bf16.mxu0 0
    %2916 = vmatpush1.bf16.msra.mxu0 %v2047
    %2917 = vmatprep.subr.bf16.mxu0 0
    %2918 = vmatpush1.bf16.msra.mxu0 %v2046
    %2919 = vmatprep.subr.bf16.mxu0 0
    %2920 = vmatpush1.bf16.msra.mxu0 %v2045
    %2921 = vmatprep.subr.bf16.mxu0 0
    %2922 = vmatpush1.bf16.msra.mxu0 %v2044
    %2923 = vmatprep.subr.bf16.mxu0 0
    %2924 = vmatpush1.bf16.msra.mxu0 %v2043
    %2925 = vmatprep.subr.bf16.mxu0 0
    %2926 = vmatpush1.bf16.msra.mxu0 %v2042
    %2927 = vmatprep.subr.bf16.mxu0 0
    %2928 = vmatpush1.bf16.msra.mxu0 %v2041
    %2929 = vmatprep.subr.bf16.mxu0 0
    %2930 = vmatpush2.bf16.msra.mxu0 %v2056
    %2931 = vmatprep.subr.bf16.mxu0 0
    %2932 = vmatpush2.bf16.msra.mxu0 %v2055
    %2933 = vmatprep.subr.bf16.mxu0 0
    %2934 = vmatpush2.bf16.msra.mxu0 %v2054
    %2935 = vmatprep.subr.bf16.mxu0 0
    %2936 = vmatpush2.bf16.msra.mxu0 %v2053
    %2937 = vmatprep.subr.bf16.mxu0 0
    %2938 = vmatpush2.bf16.msra.mxu0 %v2052
    %2939 = vmatprep.subr.bf16.mxu0 0
    %2940 = vmatpush2.bf16.msra.mxu0 %v2051
    %2941 = vmatprep.subr.bf16.mxu0 0
    %2942 = vmatpush2.bf16.msra.mxu0 %v2050
    %2943 = vmatprep.subr.bf16.mxu0 0
    %2944 = vmatpush2.bf16.msra.mxu0 %v2049
    %2945 = vmatprep.mubr.bf16.mxu0 %v744
    %2946 = vmatmul.mubr.bf16.gmra.mxu0 %v742
    %v2947 = vpop.f32.mrf.mxu0
    %v2948 = vadd.f32 %v2908, %v2947
    %v2949 = vpop.f32.mrf.mxu0
    %v2950 = vpop.f32.mrf.mxu0
    %v2951 = vpop.f32.mrf.mxu0
    %2952 = vdwg.mxu0
    %v2953 = vmax.f32 %v2948, 0.0
    %v2954 = vpack.c.bf16 %v2953, %v2953
    %v2955 = vld [vmem:[%s3] sm:$0xf]
    %v2956 = vld [vmem:[%s3 + $0x4] sm:$0xf]
    %v2957 = vld [vmem:[%s3 + $0x8] sm:$0xf]
    %v2958 = vld [vmem:[%s3 + $0xc] sm:$0xf]
    %v2959 = vld [vmem:[%s3 + $0x10] sm:$0xf]
    %v2960 = vld [vmem:[%s3 + $0x14] sm:$0xf]
    %v2961 = vld [vmem:[%s3 + $0x18] sm:$0xf]
    %v2962 = vld [vmem:[%s3 + $0x1c] sm:$0xf]
    %v2963 = vld [vmem:[%s3 + $0x20] sm:$0xf]
    %v2964 = vld [vmem:[%s3 + $0x24] sm:$0xf]
    %v2965 = vld [vmem:[%s3 + $0x28] sm:$0xf]
    %v2966 = vld [vmem:[%s3 + $0x2c] sm:$0xf]
    %v2967 = vld [vmem:[%s3 + $0x30] sm:$0xf]
    %v2968 = vld [vmem:[%s3 + $0x34] sm:$0xf]
    %v2969 = vld [vmem:[%s3 + $0x38] sm:$0xf]
    %v2970 = vld [vmem:[%s3 + $0x3c] sm:$0xf]
    %v2971 = vld [vmem:[%s4] sm:$0x1]
    %v2973 = vlaneseq
    %v2974 = vshrl.u32 %v2973, 7
    %v2975 = vsub.s32 0, %v2974
    %v2976 = vrot.slane %v2971, %v2975
    %v2994 = vunpack.c.l.b16 %v2955
    %v2995 = vunpack.c.l.b16 %v2956
    %v2996 = vunpack.c.l.b16 %v2957
    %v2997 = vunpack.c.l.b16 %v2958
    %v2998 = vunpack.c.l.b16 %v2959
    %v2999 = vunpack.c.l.b16 %v2960
    %v3000 = vunpack.c.l.b16 %v2961
    %v3001 = vunpack.c.l.b16 %v2962
    %v3002 = vunpack.c.l.b16 %v2963
    %v3003 = vunpack.c.l.b16 %v2964
    %v3004 = vunpack.c.l.b16 %v2965
    %v3005 = vunpack.c.l.b16 %v2966
    %v3006 = vunpack.c.l.b16 %v2967
    %v3007 = vunpack.c.l.b16 %v2968
    %v3008 = vunpack.c.l.b16 %v2969
    %v3009 = vunpack.c.l.b16 %v2970
    %v3010 = vpack.c.b16 %v2995, %v2994
    %v3011 = vpack.c.b16 %v2997, %v2996
    %v3012 = vpack.c.b16 %v2999, %v2998
    %v3013 = vpack.c.b16 %v3001, %v3000
    %v3014 = vpack.c.b16 %v3003, %v3002
    %v3015 = vpack.c.b16 %v3005, %v3004
    %v3016 = vpack.c.b16 %v3007, %v3006
    %v3017 = vpack.c.b16 %v3009, %v3008
    %3026 = vmatprep.subr.bf16.mxu0 0
    %3027 = vmatpush1.bf16.msra.mxu0 %v3017
    %3028 = vmatprep.subr.bf16.mxu0 0
    %3029 = vmatpush1.bf16.msra.mxu0 %v3016
    %3030 = vmatprep.subr.bf16.mxu0 0
    %3031 = vmatpush1.bf16.msra.mxu0 %v3015
    %3032 = vmatprep.subr.bf16.mxu0 0
    %3033 = vmatpush1.bf16.msra.mxu0 %v3014
    %3034 = vmatprep.subr.bf16.mxu0 0
    %3035 = vmatpush1.bf16.msra.mxu0 %v3013
    %3036 = vmatprep.subr.bf16.mxu0 0
    %3037 = vmatpush1.bf16.msra.mxu0 %v3012
    %3038 = vmatprep.subr.bf16.mxu0 0
    %3039 = vmatpush1.bf16.msra.mxu0 %v3011
    %3040 = vmatprep.subr.bf16.mxu0 0
    %3041 = vmatpush1.bf16.msra.mxu0 %v3010
    %3042 = vmatprep.subr.bf16.mxu0 0
    %3043 = vmatpush2.bf16.msra.mxu0 0
    %3044 = vmatprep.subr.bf16.mxu0 0
    %3045 = vmatpush2.bf16.msra.mxu0 0
    %3046 = vmatprep.subr.bf16.mxu0 0
    %3047 = vmatpush2.bf16.msra.mxu0 0
    %3048 = vmatprep.subr.bf16.mxu0 0
    %3049 = vmatpush2.bf16.msra.mxu0 0
    %3050 = vmatprep.subr.bf16.mxu0 0
    %3051 = vmatpush2.bf16.msra.mxu0 0
    %3052 = vmatprep.subr.bf16.mxu0 0
    %3053 = vmatpush2.bf16.msra.mxu0 0
    %3054 = vmatprep.subr.bf16.mxu0 0
    %3055 = vmatpush2.bf16.msra.mxu0 0
    %3056 = vmatprep.subr.bf16.mxu0 0
    %3057 = vmatpush2.bf16.msra.mxu0 0
    %3058 = vmatprep.mubr.bf16.mxu0 0
    %3059 = vmatmul.mubr.bf16.gmra.mxu0 %v2954
    %v3060 = vpop.f32.mrf.mxu0
    %v3061 = vadd.f32 %v2976, %v3060
    %v3062 = vpop.f32.mrf.mxu0
    %v3063 = vpop.f32.mrf.mxu0
    %v3064 = vpop.f32.mrf.mxu0
    %3065 = vdwg.mxu0
    %vm3066 = vcmask 74752
    %3067 = vst.msk [vmem:[#allocation2] sm:$0x3] %vm3066, %v3061
    // Predicated region
    $region22: #{simple_cnn_forward.5} parent=1 // pred_check
      _
    $region23: #{simple_cnn_forward.5} parent=1 // pred_check_branch
      %3069 = sbr.rel (0) target = $region25
    $region24: #{simple_cnn_forward.5} parent=1 // pred_region
      %s3071 = ssub.s32 32, 32
      %3072 = vsyncadd [#allocation3], %s3071
      %s3074 = sshll.u32 [#allocation2], 4
      %s3075 = int_to_ptr.vmem [resolvable:$true] %s3074
      %3077 = dma.vmem_to_hbm [thread:$0]  %s3075, 32, %s5, [#allocation3]
    $region25: #{simple_cnn_forward.5} parent=1 // pred_fallthru
      _
    // Predicated region
    $region26: #{simple_cnn_forward.5} parent=1 // pred_check
      _
    $region27: #{simple_cnn_forward.5} parent=1 // pred_check_branch
      %3079 = sbr.rel (0) target = $region29
    $region28: #{simple_cnn_forward.5} parent=1 // pred_region
      %3080 = dma.done [#allocation3], 32
    $region29: #{simple_cnn_forward.5} parent=1 // pred_fallthru
      _
    %3081 = vsyncpa [#allocation3], 1

</llo_original>
